<compile_context>
chip_gen: v7x
topology: tpu7x:2x2x1
jax: 0.10.0
libtpu: 0.0.40
codegen_flags: <defaults>
</compile_context>

<pallas_src>
import functools

import numpy as np
import jax
import jax.numpy as jnp
from jax.experimental import pallas as pl
from jax.experimental.pallas import tpu as pltpu


def _round_up(x, m):
    return ((x + m - 1) // m) * m


# ----------------------------------------------------------------------------
# Kernel
# ----------------------------------------------------------------------------
def _bottleneck_kernel(H, W, planes, dilation, pad, pad_l,
                       x_ref, w1_ref, b1_ref, w2_ref, b2_ref, w3_ref, b3_ref,
                       out_ref, pad_ref):
    # x_ref   : (1, H, W, Cin)              input image (Cin == 4*planes)
    # w1_ref  : (Cin, planes)      bf16     b1_ref : (1, planes)   f32
    # w2_ref  : (9*planes, planes) bf16     b2_ref : (1, planes)   f32
    # w3_ref  : (planes, Cout)     bf16     b3_ref : (1, Cout)     f32
    # out_ref : (1, H, W, Cout)
    # pad_ref : (H + 2*pad, pad_l + W + pad, planes) bf16 scratch
    cin = x_ref.shape[-1]
    cout = out_ref.shape[-1]
    w_scr = pad_ref.shape[1]
    d = dilation

    # --- conv1 (1x1) + folded BN1 + ReLU: bf16 MXU inputs, f32 accumulate ----
    x_bf = x_ref[0].reshape(H * W, cin).astype(jnp.bfloat16)
    h1 = jnp.dot(x_bf, w1_ref[...], preferred_element_type=jnp.float32)
    h1 = jnp.maximum(h1 + b1_ref[...], 0.0).astype(jnp.bfloat16)

    # --- conv2 (3x3, stride=1, dilation) via im2col ---------------------------
    # Zero only the halo strips the taps actually read (cheap, O(perimeter)).
    # Done every step so it is correct when the grid is sharded across cores.
    pad_ref[0:pad, :, :] = jnp.zeros((pad, w_scr, planes), jnp.bfloat16)
    pad_ref[pad + H:2 * pad + H, :, :] = jnp.zeros((pad, w_scr, planes),
                                                   jnp.bfloat16)
    pad_ref[:, pad_l - pad:pad_l, :] = jnp.zeros((H + 2 * pad, pad, planes),
                                                 jnp.bfloat16)
    pad_ref[:, pad_l + W:pad_l + W + pad, :] = jnp.zeros(
        (H + 2 * pad, pad, planes), jnp.bfloat16)
    # Sublane-aligned interior store (pad_l is a multiple of the bf16 tile).
    pad_ref[pad:pad + H, pad_l:pad_l + W, :] = h1.reshape(H, W, planes)

    # Hoist the three (sublane-unaligned) kx column shifts: one load each.
    # The ky shifts are free slices along the untiled leading (row) dim.
    c0 = pad_l - pad
    cols = [pad_ref[:, c0 + kx * d:c0 + kx * d + W, :] for kx in range(3)]
    views = [cols[kx][ky * d:ky * d + H]            # (H, W, planes)
             for ky in range(3) for kx in range(3)]  # tap t = ky*3 + kx

    if planes % 128 == 0:
        # Single K = 9*planes matmul (lane-aligned concatenation).
        patch = jnp.concatenate(views, axis=-1).reshape(H * W, 9 * planes)
        acc2 = jnp.dot(patch, w2_ref[...], preferred_element_type=jnp.float32)
    else:
        # Fallback for small / unaligned channel counts: 9 dots, hoisted loads.
        acc2 = jnp.zeros((H * W, planes), jnp.float32)
        for t, v in enumerate(views):
            acc2 = acc2 + jnp.dot(v.reshape(H * W, planes),
                                  w2_ref[t * planes:(t + 1) * planes, :],
                                  preferred_element_type=jnp.float32)
    h2 = jnp.maximum(acc2 + b2_ref[...], 0.0)

    # --- conv3 (1x1) + folded BN3, Identity residual, ReLU -------------------
    h3 = jnp.dot(h2.astype(jnp.bfloat16), w3_ref[...],
                 preferred_element_type=jnp.float32) + b3_ref[...]
    # Re-read the input for the residual only in the epilogue.
    res = x_ref[0].reshape(H * W, cin).astype(jnp.float32)
    y = jnp.maximum(h3 + res, 0.0)
    out_ref[0] = y.reshape(H, W, cout).astype(out_ref.dtype)


# ----------------------------------------------------------------------------
# Parameter handling (PyTorch-style raw params -> folded bf16 kernel weights)
# ----------------------------------------------------------------------------
def _fold_bn(w_oihw, gamma, beta, mean, var, eps):
    s = gamma / jnp.sqrt(var + eps)
    return w_oihw * s[:, None, None, None], beta - mean * s


def _folded_kernel_weights(params, eps):
    w1f, b1 = _fold_bn(params["w1"], params["bn1_g"], params["bn1_b"],
                       params["bn1_m"], params["bn1_v"], eps)
    w2f, b2 = _fold_bn(params["w2"], params["bn2_g"], params["bn2_b"],
                       params["bn2_m"], params["bn2_v"], eps)
    w3f, b3 = _fold_bn(params["w3"], params["bn3_g"], params["bn3_b"],
                       params["bn3_m"], params["bn3_v"], eps)
    planes = params["w1"].shape[0]
    cout = params["w3"].shape[0]
    # Weights go to bf16 (MXU inputs); biases stay f32.
    w1_k = jnp.transpose(w1f[:, :, 0, 0], (1, 0)).astype(jnp.bfloat16)   # (Cin, planes)
    w2_k = jnp.transpose(w2f, (2, 3, 1, 0)).astype(jnp.bfloat16)         # HWIO (3,3,in,out)
    w3_k = jnp.transpose(w3f[:, :, 0, 0], (1, 0)).astype(jnp.bfloat16)   # (planes, 4*planes)
    return (w1_k, b1.reshape(1, planes).astype(jnp.float32),
            w2_k, b2.reshape(1, planes).astype(jnp.float32),
            w3_k, b3.reshape(1, cout).astype(jnp.float32))


def init_bottleneck_params(key, inplanes, planes, dtype=jnp.float32):
    k1, k2, k3, kb1, kb2, kb3 = jax.random.split(key, 6)

    def conv_w(k, out_c, in_c, kh, kw):
        fan_in = in_c * kh * kw
        return jax.random.normal(k, (out_c, in_c, kh, kw), dtype) * float(
            np.sqrt(2.0 / fan_in))

    p = {
        "w1": conv_w(k1, planes, inplanes, 1, 1),
        "w2": conv_w(k2, planes, planes, 3, 3),
        "w3": conv_w(k3, planes * 4, planes, 1, 1),
    }
    for name, kk, c in (("bn1", kb1, planes), ("bn2", kb2, planes),
                        ("bn3", kb3, planes * 4)):
        ka, kb_, kc, kd = jax.random.split(kk, 4)
        p[f"{name}_g"] = 1.0 + 0.1 * jax.random.normal(ka, (c,), dtype)
        p[f"{name}_b"] = 0.1 * jax.random.normal(kb_, (c,), dtype)
        p[f"{name}_m"] = 0.1 * jax.random.normal(kc, (c,), dtype)
        p[f"{name}_v"] = jnp.abs(jax.random.normal(kd, (c,), dtype)) + 0.5
    return p


# ----------------------------------------------------------------------------
# Wrapper
# ----------------------------------------------------------------------------
def bottleneck_forward(x_nchw, params, *, dilation=1, eps=1e-5):
    """x_nchw: (B, Cin, H, W) float32. Returns (B, 4*planes, H, W)."""
    B, cin, H, W = x_nchw.shape
    planes = params["w1"].shape[0]
    cout = params["w3"].shape[0]
    assert cin == cout, "Identity residual requires inplanes == planes * 4"
    assert H % 8 == 0 and W % 8 == 0, "spatial dims must be sublane-aligned"

    w1_k, b1_k, w2_hwio, b2_k, w3_k, b3_k = _folded_kernel_weights(params, eps)
    # im2col weight matrix: row index = (ky*3 + kx)*planes + cin
    w2_k = w2_hwio.reshape(9 * planes, planes)

    x_nhwc = jnp.transpose(x_nchw, (0, 2, 3, 1))   # channels -> lanes

    # PyTorch: padding = 2 - stride (stride == 1 here) unless dilation > 1.
    pad = dilation if dilation > 1 else 1
    pad_l = max(16, _round_up(pad, 16))            # aligned interior column start
    w_scr = pad_l + W + pad

    kernel = functools.partial(_bottleneck_kernel, H, W, planes, dilation,
                               pad, pad_l)

    out = pl.pallas_call(
        kernel,
        out_shape=jax.ShapeDtypeStruct((B, H, W, cout), x_nchw.dtype),
        grid_spec=pltpu.PrefetchScalarGridSpec(
            num_scalar_prefetch=0,
            grid=(B,),
            in_specs=[
                pl.BlockSpec((1, H, W, cin), lambda b: (b, 0, 0, 0)),
                pl.BlockSpec((cin, planes), lambda b: (0, 0)),
                pl.BlockSpec((1, planes), lambda b: (0, 0)),
                pl.BlockSpec((9 * planes, planes), lambda b: (0, 0)),
                pl.BlockSpec((1, planes), lambda b: (0, 0)),
                pl.BlockSpec((planes, cout), lambda b: (0, 0)),
                pl.BlockSpec((1, cout), lambda b: (0, 0)),
            ],
            out_specs=pl.BlockSpec((1, H, W, cout), lambda b: (b, 0, 0, 0)),
            scratch_shapes=[
                pltpu.VMEM((H + 2 * pad, w_scr, planes), jnp.bfloat16)
            ],
        ),
        compiler_params=pltpu.CompilerParams(
            dimension_semantics=("parallel",),
            vmem_limit_bytes=32 * 1024 * 1024,
        ),
    )(x_nhwc, w1_k, b1_k, w2_k, b2_k, w3_k, b3_k)

    return jnp.transpose(out, (0, 3, 1, 2))


class Bottleneck:
    """JAX/Pallas mirror of the PyTorch Bottleneck module (eval-mode BN)."""
    expansion = 4

    def __init__(self, inplanes, planes, stride=1, downsample=None, dilation=1,
                 *, key=None, eps=1e-5):
        if stride != 1 or downsample is not None:
            # TODO(synk): stride>1 / projection downsample not implemented.
            raise NotImplementedError("only stride=1 with Identity downsample")
        assert inplanes == planes * self.expansion
        self.dilation, self.eps = dilation, eps
        key = jax.random.PRNGKey(0) if key is None else key
        self.params = init_bottleneck_params(key, inplanes, planes)

    def __call__(self, x):
        return bottleneck_forward(x, self.params, dilation=self.dilation,
                                  eps=self.eps)


# ----------------------------------------------------------------------------
# Pure-JAX reference (same BN fold + bf16 matmul inputs, f32 accumulate) + demo
# ----------------------------------------------------------------------------
def bottleneck_reference(x_nchw, params, *, dilation=1, eps=1e-5):
    w1_k, b1, w2_hwio, b2, w3_k, b3 = _folded_kernel_weights(params, eps)
    pad = dilation if dilation > 1 else 1
    x = jnp.transpose(x_nchw, (0, 2, 3, 1)).astype(jnp.float32)
    h = jnp.einsum("bhwc,cp->bhwp", x.astype(jnp.bfloat16), w1_k,
                   preferred_element_type=jnp.float32) + b1[0]
    h = jnp.maximum(h, 0.0).astype(jnp.bfloat16)
    h = jax.lax.conv_general_dilated(
        h, w2_hwio, window_strides=(1, 1), padding=[(pad, pad), (pad, pad)],
        rhs_dilation=(dilation, dilation),
        dimension_numbers=("NHWC", "HWIO", "NHWC"),
        preferred_element_type=jnp.float32)
    h = jnp.maximum(h + b2[0], 0.0)
    h = jnp.einsum("bhwp,pq->bhwq", h.astype(jnp.bfloat16), w3_k,
                   preferred_element_type=jnp.float32) + b3[0]
    y = jnp.maximum(h + x, 0.0)
    return jnp.transpose(y, (0, 3, 1, 2))


if __name__ == "__main__":
    B, planes = 2, 128
    inplanes = planes * 4          # 512 -> identity residual matches
    H = W = 16

    key = jax.random.PRNGKey(0)
    kx, kp = jax.random.split(key)
    x = jax.random.normal(kx, (B, inplanes, H, W), jnp.float32)

    block = Bottleneck(inplanes, planes, stride=1, downsample=None, dilation=1,
                       key=kp)
    out = jax.block_until_ready(block(x))
    assert out.shape == (B, inplanes, H, W)

    ref = bottleneck_reference(x, block.params, dilation=1)
    np.testing.assert_allclose(np.asarray(out), np.asarray(ref),
                               rtol=2e-2, atol=2e-2)
    print("KERNEL_OK")
</pallas_src>

<mosaic_0001>
module attributes {stable_mosaic.version = 11 : i64} {
  func.func @_bottleneck_kernel(%arg0: i32, %arg1: memref<1x16x16x512xf32, #tpu.memory_space<vmem>>, %arg2: memref<512x128xbf16, #tpu.memory_space<vmem>>, %arg3: memref<1x128xf32, #tpu.memory_space<vmem>>, %arg4: memref<1152x128xbf16, #tpu.memory_space<vmem>>, %arg5: memref<1x128xf32, #tpu.memory_space<vmem>>, %arg6: memref<128x512xbf16, #tpu.memory_space<vmem>>, %arg7: memref<1x512xf32, #tpu.memory_space<vmem>>, %arg8: memref<1x16x16x512xf32, #tpu.memory_space<vmem>>, %arg9: memref<18x33x128xbf16, #tpu.memory_space<vmem>>) attributes {dimension_semantics = [#tpu.dimension_semantics<parallel>], iteration_bounds = array<i64: 2>, scalar_prefetch = 0 : i64, scratch_operands = 1 : i64, tpu.core_type = #tpu.core_type<tc>, window_params = [{transform_indices = @transform_0, window_bounds = array<i64: 1, 16, 16, 512>}, {pipeline_mode = #tpu.pipeline_mode<synchronous>, transform_indices = @transform_1, window_bounds = array<i64: 512, 128>}, {pipeline_mode = #tpu.pipeline_mode<synchronous>, transform_indices = @transform_2, window_bounds = array<i64: 1, 128>}, {pipeline_mode = #tpu.pipeline_mode<synchronous>, transform_indices = @transform_3, window_bounds = array<i64: 1152, 128>}, {pipeline_mode = #tpu.pipeline_mode<synchronous>, transform_indices = @transform_4, window_bounds = array<i64: 1, 128>}, {pipeline_mode = #tpu.pipeline_mode<synchronous>, transform_indices = @transform_5, window_bounds = array<i64: 128, 512>}, {pipeline_mode = #tpu.pipeline_mode<synchronous>, transform_indices = @transform_6, window_bounds = array<i64: 1, 512>}, {transform_indices = @transform_7, window_bounds = array<i64: 1, 16, 16, 512>}]} {
    %c0 = arith.constant 0 : index
    %c0_0 = arith.constant 0 : index
    %c0_1 = arith.constant 0 : index
    %c0_2 = arith.constant 0 : index
    %0 = vector.load %arg1[%c0, %c0_0, %c0_1, %c0_2] : memref<1x16x16x512xf32, #tpu.memory_space<vmem>>, vector<1x16x16x512xf32>
    %1 = vector.shape_cast %0 : vector<1x16x16x512xf32> to vector<16x16x512xf32>
    %2 = vector.shape_cast %1 : vector<16x16x512xf32> to vector<256x512xf32>
    %3 = arith.truncf %2 : vector<256x512xf32> to vector<256x512xbf16>
    %c0_3 = arith.constant 0 : index
    %c0_4 = arith.constant 0 : index
    %4 = vector.load %arg2[%c0_3, %c0_4] : memref<512x128xbf16, #tpu.memory_space<vmem>>, vector<512x128xbf16>
    %cst = arith.constant dense<0.000000e+00> : vector<256x128xf32>
    %5 = tpu.matmul %3, %4, %cst {dimension_numbers = #tpu.dot_dimension_numbers<[1], [0], [0], [1], [0, 0, 1, 1], [], []>} : vector<256x512xbf16>, vector<512x128xbf16>, vector<256x128xf32> -> vector<256x128xf32>
    %c0_5 = arith.constant 0 : index
    %c0_6 = arith.constant 0 : index
    %6 = vector.load %arg3[%c0_5, %c0_6] : memref<1x128xf32, #tpu.memory_space<vmem>>, vector<1x128xf32>
    %7 = vector.broadcast %6 : vector<1x128xf32> to vector<256x128xf32>
    %8 = arith.addf %5, %7 : vector<256x128xf32>
    %cst_7 = arith.constant 0.000000e+00 : f32
    %9 = vector.broadcast %cst_7 : f32 to vector<256x128xf32>
    %10 = arith.maximumf %8, %9 : vector<256x128xf32>
    %11 = arith.truncf %10 : vector<256x128xf32> to vector<256x128xbf16>
    %cst_8 = arith.constant 0.000000e+00 : bf16
    %12 = vector.broadcast %cst_8 : bf16 to vector<1x33x128xbf16>
    %c0_9 = arith.constant 0 : index
    %c0_10 = arith.constant 0 : index
    %c0_11 = arith.constant 0 : index
    %13 = vector.load %arg9[%c0_9, %c0_10, %c0_11] : memref<18x33x128xbf16, #tpu.memory_space<vmem>>, vector<1x33x128xbf16>
    tpu.vector_store %arg9[%c0_9, %c0_10, %c0_11], %12 {strides = array<i32>} : memref<18x33x128xbf16, #tpu.memory_space<vmem>>, vector<1x33x128xbf16>,
    %cst_12 = arith.constant 0.000000e+00 : bf16
    %14 = vector.broadcast %cst_12 : bf16 to vector<1x33x128xbf16>
    %c17 = arith.constant 17 : index
    %c0_13 = arith.constant 0 : index
    %c0_14 = arith.constant 0 : index
    %15 = vector.load %arg9[%c17, %c0_13, %c0_14] : memref<18x33x128xbf16, #tpu.memory_space<vmem>>, vector<1x33x128xbf16>
    tpu.vector_store %arg9[%c17, %c0_13, %c0_14], %14 {strides = array<i32>} : memref<18x33x128xbf16, #tpu.memory_space<vmem>>, vector<1x33x128xbf16>,
    %cst_15 = arith.constant 0.000000e+00 : bf16
    %16 = vector.broadcast %cst_15 : bf16 to vector<18x1x128xbf16>
    %c0_16 = arith.constant 0 : index
    %c15 = arith.constant 15 : index
    %c0_17 = arith.constant 0 : index
    %17 = vector.load %arg9[%c0_16, %c15, %c0_17] : memref<18x33x128xbf16, #tpu.memory_space<vmem>>, vector<18x1x128xbf16>
    tpu.vector_store %arg9[%c0_16, %c15, %c0_17], %16 {strides = array<i32>} : memref<18x33x128xbf16, #tpu.memory_space<vmem>>, vector<18x1x128xbf16>,
    %cst_18 = arith.constant 0.000000e+00 : bf16
    %18 = vector.broadcast %cst_18 : bf16 to vector<18x1x128xbf16>
    %c0_19 = arith.constant 0 : index
    %c32 = arith.constant 32 : index
    %c0_20 = arith.constant 0 : index
    %19 = vector.load %arg9[%c0_19, %c32, %c0_20] : memref<18x33x128xbf16, #tpu.memory_space<vmem>>, vector<18x1x128xbf16>
    tpu.vector_store %arg9[%c0_19, %c32, %c0_20], %18 {strides = array<i32>} : memref<18x33x128xbf16, #tpu.memory_space<vmem>>, vector<18x1x128xbf16>,
    %20 = vector.shape_cast %11 : vector<256x128xbf16> to vector<16x16x128xbf16>
    %c1 = arith.constant 1 : index
    %c16 = arith.constant 16 : index
    %c0_21 = arith.constant 0 : index
    %21 = vector.load %arg9[%c1, %c16, %c0_21] : memref<18x33x128xbf16, #tpu.memory_space<vmem>>, vector<16x16x128xbf16>
    tpu.vector_store %arg9[%c1, %c16, %c0_21], %20 {strides = array<i32>} : memref<18x33x128xbf16, #tpu.memory_space<vmem>>, vector<16x16x128xbf16>,
    %c0_22 = arith.constant 0 : index
    %c15_23 = arith.constant 15 : index
    %c0_24 = arith.constant 0 : index
    %22 = vector.load %arg9[%c0_22, %c15_23, %c0_24] : memref<18x33x128xbf16, #tpu.memory_space<vmem>>, vector<18x16x128xbf16>
    %c0_25 = arith.constant 0 : index
    %c16_26 = arith.constant 16 : index
    %c0_27 = arith.constant 0 : index
    %23 = vector.load %arg9[%c0_25, %c16_26, %c0_27] : memref<18x33x128xbf16, #tpu.memory_space<vmem>>, vector<18x16x128xbf16>
    %c0_28 = arith.constant 0 : index
    %c17_29 = arith.constant 17 : index
    %c0_30 = arith.constant 0 : index
    %24 = vector.load %arg9[%c0_28, %c17_29, %c0_30] : memref<18x33x128xbf16, #tpu.memory_space<vmem>>, vector<18x16x128xbf16>
    %25 = vector.extract_strided_slice %22 {offsets = [0, 0, 0], sizes = [16, 16, 128], strides = [1, 1, 1]} : vector<18x16x128xbf16> to vector<16x16x128xbf16>
    %26 = vector.extract_strided_slice %23 {offsets = [0, 0, 0], sizes = [16, 16, 128], strides = [1, 1, 1]} : vector<18x16x128xbf16> to vector<16x16x128xbf16>
    %27 = vector.extract_strided_slice %24 {offsets = [0, 0, 0], sizes = [16, 16, 128], strides = [1, 1, 1]} : vector<18x16x128xbf16> to vector<16x16x128xbf16>
    %28 = vector.extract_strided_slice %22 {offsets = [1, 0, 0], sizes = [16, 16, 128], strides = [1, 1, 1]} : vector<18x16x128xbf16> to vector<16x16x128xbf16>
    %29 = vector.extract_strided_slice %23 {offsets = [1, 0, 0], sizes = [16, 16, 128], strides = [1, 1, 1]} : vector<18x16x128xbf16> to vector<16x16x128xbf16>
    %30 = vector.extract_strided_slice %24 {offsets = [1, 0, 0], sizes = [16, 16, 128], strides = [1, 1, 1]} : vector<18x16x128xbf16> to vector<16x16x128xbf16>
    %31 = vector.extract_strided_slice %22 {offsets = [2, 0, 0], sizes = [16, 16, 128], strides = [1, 1, 1]} : vector<18x16x128xbf16> to vector<16x16x128xbf16>
    %32 = vector.extract_strided_slice %23 {offsets = [2, 0, 0], sizes = [16, 16, 128], strides = [1, 1, 1]} : vector<18x16x128xbf16> to vector<16x16x128xbf16>
    %33 = vector.extract_strided_slice %24 {offsets = [2, 0, 0], sizes = [16, 16, 128], strides = [1, 1, 1]} : vector<18x16x128xbf16> to vector<16x16x128xbf16>
    %34 = tpu.concatenate %25, %26, %27, %28, %29, %30, %31, %32, %33 in 2 : vector<16x16x128xbf16>, vector<16x16x128xbf16>, vector<16x16x128xbf16>, vector<16x16x128xbf16>, vector<16x16x128xbf16>, vector<16x16x128xbf16>, vector<16x16x128xbf16>, vector<16x16x128xbf16>, vector<16x16x128xbf16> -> vector<16x16x1152xbf16>
    %35 = vector.shape_cast %34 : vector<16x16x1152xbf16> to vector<256x1152xbf16>
    %c0_31 = arith.constant 0 : index
    %c0_32 = arith.constant 0 : index
    %36 = vector.load %arg4[%c0_31, %c0_32] : memref<1152x128xbf16, #tpu.memory_space<vmem>>, vector<1152x128xbf16>
    %cst_33 = arith.constant dense<0.000000e+00> : vector<256x128xf32>
    %37 = tpu.matmul %35, %36, %cst_33 {dimension_numbers = #tpu.dot_dimension_numbers<[1], [0], [0], [1], [0, 0, 1, 1], [], []>} : vector<256x1152xbf16>, vector<1152x128xbf16>, vector<256x128xf32> -> vector<256x128xf32>
    %c0_34 = arith.constant 0 : index
    %c0_35 = arith.constant 0 : index
    %38 = vector.load %arg5[%c0_34, %c0_35] : memref<1x128xf32, #tpu.memory_space<vmem>>, vector<1x128xf32>
    %39 = vector.broadcast %38 : vector<1x128xf32> to vector<256x128xf32>
    %40 = arith.addf %37, %39 : vector<256x128xf32>
    %cst_36 = arith.constant 0.000000e+00 : f32
    %41 = vector.broadcast %cst_36 : f32 to vector<256x128xf32>
    %42 = arith.maximumf %40, %41 : vector<256x128xf32>
    %43 = arith.truncf %42 : vector<256x128xf32> to vector<256x128xbf16>
    %c0_37 = arith.constant 0 : index
    %c0_38 = arith.constant 0 : index
    %44 = vector.load %arg6[%c0_37, %c0_38] : memref<128x512xbf16, #tpu.memory_space<vmem>>, vector<128x512xbf16>
    %cst_39 = arith.constant dense<0.000000e+00> : vector<256x512xf32>
    %45 = tpu.matmul %43, %44, %cst_39 {dimension_numbers = #tpu.dot_dimension_numbers<[1], [0], [0], [1], [0, 0, 1, 1], [], []>} : vector<256x128xbf16>, vector<128x512xbf16>, vector<256x512xf32> -> vector<256x512xf32>
    %c0_40 = arith.constant 0 : index
    %c0_41 = arith.constant 0 : index
    %46 = vector.load %arg7[%c0_40, %c0_41] : memref<1x512xf32, #tpu.memory_space<vmem>>, vector<1x512xf32>
    %47 = vector.broadcast %46 : vector<1x512xf32> to vector<256x512xf32>
    %48 = arith.addf %45, %47 : vector<256x512xf32>
    %c0_42 = arith.constant 0 : index
    %c0_43 = arith.constant 0 : index
    %c0_44 = arith.constant 0 : index
    %c0_45 = arith.constant 0 : index
    %49 = vector.load %arg1[%c0_42, %c0_43, %c0_44, %c0_45] : memref<1x16x16x512xf32, #tpu.memory_space<vmem>>, vector<1x16x16x512xf32>
    %50 = vector.shape_cast %49 : vector<1x16x16x512xf32> to vector<16x16x512xf32>
    %51 = vector.shape_cast %50 : vector<16x16x512xf32> to vector<256x512xf32>
    %52 = arith.addf %48, %51 : vector<256x512xf32>
    %cst_46 = arith.constant 0.000000e+00 : f32
    %53 = vector.broadcast %cst_46 : f32 to vector<256x512xf32>
    %54 = arith.maximumf %52, %53 : vector<256x512xf32>
    %55 = vector.shape_cast %54 : vector<256x512xf32> to vector<16x16x512xf32>
    %c0_47 = arith.constant 0 : index
    %c0_48 = arith.constant 0 : index
    %c0_49 = arith.constant 0 : index
    %c0_50 = arith.constant 0 : index
    %56 = vector.load %arg8[%c0_47, %c0_48, %c0_49, %c0_50] : memref<1x16x16x512xf32, #tpu.memory_space<vmem>>, vector<1x16x16x512xf32>
    %57 = vector.shape_cast %56 : vector<1x16x16x512xf32> to vector<16x16x512xf32>
    %58 = vector.shape_cast %55 : vector<16x16x512xf32> to vector<1x16x16x512xf32>
    tpu.vector_store %arg8[%c0_47, %c0_48, %c0_49, %c0_50], %58 {strides = array<i32>} : memref<1x16x16x512xf32, #tpu.memory_space<vmem>>, vector<1x16x16x512xf32>,
    return
  }
  func.func @transform_0(%arg0: i32) -> (i32, i32, i32, i32) {
    %c0_i32 = arith.constant 0 : i32
    %c0_i32_0 = arith.constant 0 : i32
    %c0_i32_1 = arith.constant 0 : i32
    %c0_i32_2 = arith.constant 0 : i32
    return %arg0, %c0_i32, %c0_i32_0, %c0_i32_1 : i32, i32, i32, i32
  }
  func.func @transform_1(%arg0: i32) -> (i32, i32) {
    %c0_i32 = arith.constant 0 : i32
    %c0_i32_0 = arith.constant 0 : i32
    %c0_i32_1 = arith.constant 0 : i32
    return %c0_i32, %c0_i32_0 : i32, i32
  }
  func.func @transform_2(%arg0: i32) -> (i32, i32) {
    %c0_i32 = arith.constant 0 : i32
    %c0_i32_0 = arith.constant 0 : i32
    %c0_i32_1 = arith.constant 0 : i32
    return %c0_i32, %c0_i32_0 : i32, i32
  }
  func.func @transform_3(%arg0: i32) -> (i32, i32) {
    %c0_i32 = arith.constant 0 : i32
    %c0_i32_0 = arith.constant 0 : i32
    %c0_i32_1 = arith.constant 0 : i32
    return %c0_i32, %c0_i32_0 : i32, i32
  }
  func.func @transform_4(%arg0: i32) -> (i32, i32) {
    %c0_i32 = arith.constant 0 : i32
    %c0_i32_0 = arith.constant 0 : i32
    %c0_i32_1 = arith.constant 0 : i32
    return %c0_i32, %c0_i32_0 : i32, i32
  }
  func.func @transform_5(%arg0: i32) -> (i32, i32) {
    %c0_i32 = arith.constant 0 : i32
    %c0_i32_0 = arith.constant 0 : i32
    %c0_i32_1 = arith.constant 0 : i32
    return %c0_i32, %c0_i32_0 : i32, i32
  }
  func.func @transform_6(%arg0: i32) -> (i32, i32) {
    %c0_i32 = arith.constant 0 : i32
    %c0_i32_0 = arith.constant 0 : i32
    %c0_i32_1 = arith.constant 0 : i32
    return %c0_i32, %c0_i32_0 : i32, i32
  }
  func.func @transform_7(%arg0: i32) -> (i32, i32, i32, i32) {
    %c0_i32 = arith.constant 0 : i32
    %c0_i32_0 = arith.constant 0 : i32
    %c0_i32_1 = arith.constant 0 : i32
    %c0_i32_2 = arith.constant 0 : i32
    return %arg0, %c0_i32, %c0_i32_0, %c0_i32_1 : i32, i32, i32, i32
  }
}

</mosaic_0001>

<llo_original>
// kernel: tpu_custom_call.1
$region0: #{tpu_custom_call.1}
  #allocation0 [shape = 'u32[]', space=smem, size = 0x4, offset = 0x4, fixed_abs, tag = 'smem constant byte address 0x4 - core index']
  #allocation1 [shape = 'u32[144,128]{1,0:T(1,128)}', space=vmem, size = 0x12000, scoped, tag = 'internal scratch']
  #allocation2 [shape = 'bf16[18,33,128]{2,1,0:T(8,128)(2,1)}', space=vmem, size = 0x2d000, scoped, tag = 'scratch operand']
  %s0 = inlined_call_operand.hbm [shape: f32[2,16,16,512], index: 0, kind: input, shape index: {}]
  %s1 = inlined_call_operand.hbm [shape: bf16[512,128], index: 1, kind: input, shape index: {}]
  %s2 = inlined_call_operand.vmem [shape: f32[1,128], index: 2, kind: input, shape index: {}]
  %s3 = inlined_call_operand.hbm [shape: bf16[1152,128], index: 3, kind: input, shape index: {}]
  %s4 = inlined_call_operand.vmem [shape: f32[1,128], index: 4, kind: input, shape index: {}]
  %s5 = inlined_call_operand.hbm [shape: bf16[128,512], index: 5, kind: input, shape index: {}]
  %s6 = inlined_call_operand.vmem [shape: f32[1,512], index: 6, kind: input, shape index: {}]
  %s7 = inlined_call_operand.hbm [shape: f32[2,16,16,512], index: 7, kind: output, shape index: {}]
  %s8 = sld [smem:[#allocation0]]
  $region77: #{tpu_custom_call.1} parent=0
    _
  %s10 = ssub.s32 1, %s8
  %s11 = scalar_select 0, %s10, %s8
  $region1: #{tpu_custom_call.1} parent=0
    #allocation3 [shape = 'u8[1048576]{0}', space=vmem, size = 0x100000, scoped, tag = 'input window, operand 0']
    #allocation4 [shape = 's32[2]{0}', space=sflag, size = 0x8, scoped, tag = 'scoped memory for tpu_custom_call.1']
    #allocation5 [shape = 's32[2]{0}', space=sflag, size = 0x8, scoped, tag = 'scoped memory for tpu_custom_call.1']
    #allocation6 [shape = 'u8[131072]{0}', space=vmem, size = 0x20000, scoped, tag = 'input window, operand 1, single buffered']
    #allocation7 [shape = 's32[1]{0}', space=sflag, size = 0x4, scoped, tag = 'scoped memory for tpu_custom_call.1']
    #allocation8 [shape = 'u8[294912]{0}', space=vmem, size = 0x48000, scoped, tag = 'input window, operand 3, single buffered']
    #allocation9 [shape = 'u8[131072]{0}', space=vmem, size = 0x20000, scoped, tag = 'input window, operand 5, single buffered']
    #allocation10 [shape = 's32[1]{0}', space=sflag, size = 0x4, scoped, tag = 'scoped memory for tpu_custom_call.1']
    #allocation11 [shape = 'u8[1048576]{0}', space=vmem, size = 0x100000, scoped, tag = 'output window, operand 0']
    %12 = vsyncpa [#allocation4], 0
    %s13 = scalar_lea.sflag [#allocation4], 1
    %14 = vsyncpa %s13, 0
    %15 = vsyncpa [#allocation7], 0
    %16 = vsyncpa [#allocation10], 0
    %17 = vsyncpa [#allocation5], 0
    %s18 = scalar_lea.sflag [#allocation5], 1
    %19 = vsyncpa %s18, 0
    loop: start=0, step=1, limit=4
    $region2: #{tpu_custom_call.1} parent=1 // loop_pre_header
      _
    $region3: #{tpu_custom_call.1} parent=1 // loop_header
      %s21 = sphi 0, %s25
      %p22 = scmp.ge.s32.totalorder %s21, 4
      %s31 = sphi 0, %s33
      %s34 = sphi 0, %s31
      %s35 = sphi 0, %s34
      %s51 = sphi 0, %s35
      %s55 = sphi 0, %s55
      %s57 = sphi 0, %s55
      %s58 = sphi 0, %s57
      %s72 = sphi 0, %s58
      %s76 = sphi 0, %s76
      %s78 = sphi 0, %s76
      %s79 = sphi 0, %s78
      %s93 = sphi 0, %s79
      %s97 = sphi 0, %s97
      %s99 = sphi 0, %s97
      %s100 = sphi 0, %s99
      %s114 = sphi 0, %s100
      %s118 = sphi 0, %s118
      %s120 = sphi 0, %s118
      %s121 = sphi 0, %s120
      %s135 = sphi 0, %s121
      %s139 = sphi 0, %s139
      %s141 = sphi 0, %s139
      %s142 = sphi 0, %s141
      %s156 = sphi 0, %s142
      %s160 = sphi 0, %s160
      %s162 = sphi 0, %s160
      %s163 = sphi 0, %s162
      %s177 = sphi 0, %s163
      %s183 = sphi 0, %s185
      %s186 = sphi 0, %s183
      %s187 = sphi 0, %s186
      %s203 = sphi 0, %s187
    $region4: #{tpu_custom_call.1} parent=1 // loop_header_branch
      %24 = sbr.rel (%p22) target = $region8
    $region5: #{tpu_custom_call.1} parent=1 // loop_body
      %s26 = ssub.s32 %s21, 1
      %s27 = ssub.s32 %s21, 2
      %s28 = sadd.s32 %s21, 1
      %s29 = ssub.s32 %s21, %s28
      %p30 = scmp.eq.s32.totalorder %s29, 0
      %s32 = sadd.s32 %s31, 1
      %s33 = scalar_select %p30, %s31, %s32
      %p36 = pneg %p30
      %p37 = scmp.eq.s32.totalorder %s21, 1
      %p38 = por %p36, %p37
      %p39 = scmp.ne.s32.totalorder %s31, %s34
      %p40 = scmp.eq.s32.totalorder %s21, 0
      %p41 = por %p39, %p40
      %p42 = scmp.ne.s32.totalorder %s31, %s34
      %p43 = scmp.eq.s32.totalorder %s26, 1
      %p44 = por %p42, %p43
      %p45 = scmp.ne.s32.totalorder %s34, %s35
      %p46 = scmp.eq.s32.totalorder %s26, 0
      %p47 = por %p45, %p46
      %p48 = scmp.ne.s32.totalorder %s34, %s35
      %p49 = scmp.eq.s32.totalorder %s27, 1
      %p50 = por %p48, %p49
      %p52 = scmp.ne.s32.totalorder %s35, %s51
      %p53 = scmp.eq.s32.totalorder %s27, 0
      %p54 = por %p52, %p53
      %s56 = sadd.s32 %s55, 1
      %p59 = scmp.eq.s32.totalorder %s21, 1
      %p60 = scmp.ne.s32.totalorder %s55, %s57
      %p61 = scmp.eq.s32.totalorder %s21, 0
      %p62 = por %p60, %p61
      %p63 = scmp.ne.s32.totalorder %s55, %s57
      %p64 = scmp.eq.s32.totalorder %s26, 1
      %p65 = por %p63, %p64
      %p66 = scmp.ne.s32.totalorder %s57, %s58
      %p67 = scmp.eq.s32.totalorder %s26, 0
      %p68 = por %p66, %p67
      %p69 = scmp.ne.s32.totalorder %s57, %s58
      %p70 = scmp.eq.s32.totalorder %s27, 1
      %p71 = por %p69, %p70
      %p73 = scmp.ne.s32.totalorder %s58, %s72
      %p74 = scmp.eq.s32.totalorder %s27, 0
      %p75 = por %p73, %p74
      %s77 = sadd.s32 %s76, 1
      %p80 = scmp.eq.s32.totalorder %s21, 1
      %p81 = scmp.ne.s32.totalorder %s76, %s78
      %p82 = scmp.eq.s32.totalorder %s21, 0
      %p83 = por %p81, %p82
      %p84 = scmp.ne.s32.totalorder %s76, %s78
      %p85 = scmp.eq.s32.totalorder %s26, 1
      %p86 = por %p84, %p85
      %p87 = scmp.ne.s32.totalorder %s78, %s79
      %p88 = scmp.eq.s32.totalorder %s26, 0
      %p89 = por %p87, %p88
      %p90 = scmp.ne.s32.totalorder %s78, %s79
      %p91 = scmp.eq.s32.totalorder %s27, 1
      %p92 = por %p90, %p91
      %p94 = scmp.ne.s32.totalorder %s79, %s93
      %p95 = scmp.eq.s32.totalorder %s27, 0
      %p96 = por %p94, %p95
      %s98 = sadd.s32 %s97, 1
      %p101 = scmp.eq.s32.totalorder %s21, 1
      %p102 = scmp.ne.s32.totalorder %s97, %s99
      %p103 = scmp.eq.s32.totalorder %s21, 0
      %p104 = por %p102, %p103
      %p105 = scmp.ne.s32.totalorder %s97, %s99
      %p106 = scmp.eq.s32.totalorder %s26, 1
      %p107 = por %p105, %p106
      %p108 = scmp.ne.s32.totalorder %s99, %s100
      %p109 = scmp.eq.s32.totalorder %s26, 0
      %p110 = por %p108, %p109
      %p111 = scmp.ne.s32.totalorder %s99, %s100
      %p112 = scmp.eq.s32.totalorder %s27, 1
      %p113 = por %p111, %p112
      %p115 = scmp.ne.s32.totalorder %s100, %s114
      %p116 = scmp.eq.s32.totalorder %s27, 0
      %p117 = por %p115, %p116
      %s119 = sadd.s32 %s118, 1
      %p122 = scmp.eq.s32.totalorder %s21, 1
      %p123 = scmp.ne.s32.totalorder %s118, %s120
      %p124 = scmp.eq.s32.totalorder %s21, 0
      %p125 = por %p123, %p124
      %p126 = scmp.ne.s32.totalorder %s118, %s120
      %p127 = scmp.eq.s32.totalorder %s26, 1
      %p128 = por %p126, %p127
      %p129 = scmp.ne.s32.totalorder %s120, %s121
      %p130 = scmp.eq.s32.totalorder %s26, 0
      %p131 = por %p129, %p130
      %p132 = scmp.ne.s32.totalorder %s120, %s121
      %p133 = scmp.eq.s32.totalorder %s27, 1
      %p134 = por %p132, %p133
      %p136 = scmp.ne.s32.totalorder %s121, %s135
      %p137 = scmp.eq.s32.totalorder %s27, 0
      %p138 = por %p136, %p137
      %s140 = sadd.s32 %s139, 1
      %p143 = scmp.eq.s32.totalorder %s21, 1
      %p144 = scmp.ne.s32.totalorder %s139, %s141
      %p145 = scmp.eq.s32.totalorder %s21, 0
      %p146 = por %p144, %p145
      %p147 = scmp.ne.s32.totalorder %s139, %s141
      %p148 = scmp.eq.s32.totalorder %s26, 1
      %p149 = por %p147, %p148
      %p150 = scmp.ne.s32.totalorder %s141, %s142
      %p151 = scmp.eq.s32.totalorder %s26, 0
      %p152 = por %p150, %p151
      %p153 = scmp.ne.s32.totalorder %s141, %s142
      %p154 = scmp.eq.s32.totalorder %s27, 1
      %p155 = por %p153, %p154
      %p157 = scmp.ne.s32.totalorder %s142, %s156
      %p158 = scmp.eq.s32.totalorder %s27, 0
      %p159 = por %p157, %p158
      %s161 = sadd.s32 %s160, 1
      %p164 = scmp.eq.s32.totalorder %s21, 1
      %p165 = scmp.ne.s32.totalorder %s160, %s162
      %p166 = scmp.eq.s32.totalorder %s21, 0
      %p167 = por %p165, %p166
      %p168 = scmp.ne.s32.totalorder %s160, %s162
      %p169 = scmp.eq.s32.totalorder %s26, 1
      %p170 = por %p168, %p169
      %p171 = scmp.ne.s32.totalorder %s162, %s163
      %p172 = scmp.eq.s32.totalorder %s26, 0
      %p173 = por %p171, %p172
      %p174 = scmp.ne.s32.totalorder %s162, %s163
      %p175 = scmp.eq.s32.totalorder %s27, 1
      %p176 = por %p174, %p175
      %p178 = scmp.ne.s32.totalorder %s163, %s177
      %p179 = scmp.eq.s32.totalorder %s27, 0
      %p180 = por %p178, %p179
      %s181 = ssub.s32 %s21, %s28
      %p182 = scmp.eq.s32.totalorder %s181, 0
      %s184 = sadd.s32 %s183, 1
      %s185 = scalar_select %p182, %s183, %s184
      %p188 = pneg %p182
      %p189 = scmp.eq.s32.totalorder %s21, 1
      %p190 = por %p188, %p189
      %p191 = scmp.ne.s32.totalorder %s183, %s186
      %p192 = scmp.eq.s32.totalorder %s21, 0
      %p193 = por %p191, %p192
      %p194 = scmp.ne.s32.totalorder %s183, %s186
      %p195 = scmp.eq.s32.totalorder %s26, 1
      %p196 = por %p194, %p195
      %p197 = scmp.ne.s32.totalorder %s186, %s187
      %p198 = scmp.eq.s32.totalorder %s26, 0
      %p199 = por %p197, %p198
      %p200 = scmp.ne.s32.totalorder %s186, %s187
      %p201 = scmp.eq.s32.totalorder %s27, 1
      %p202 = por %p200, %p201
      %p204 = scmp.ne.s32.totalorder %s187, %s203
      %p205 = scmp.eq.s32.totalorder %s27, 0
      %p206 = por %p204, %p205
      %p207 = scmp.le.s32.totalorder 1, %s21
      %p208 = scmp.lt.s32.totalorder %s21, 3
      %p209 = pnand %p207, %p208
      %p210 = pneg %p209
      // Predicated region
      $region9: #{tpu_custom_call.1} parent=5 // pred_check
        _
      $region10: #{tpu_custom_call.1} parent=5 // pred_check_branch
        %212 = sbr.rel (%p209) target = $region12
      $region11: #{tpu_custom_call.1} parent=5 // pred_region
        %s213 = ssub.s32 %s21, 1
        // Predicated region
        $region13: #{tpu_custom_call.1} parent=11 // pred_check
          %p214 = pneg %p68
        $region14: #{tpu_custom_call.1} parent=11 // pred_check_branch
          %216 = sbr.rel (%p214) target = $region16
        $region15: #{tpu_custom_call.1} parent=11 // pred_region
          %s218 = ssub.s32 4096, 4096
          %219 = vsyncadd [#allocation7], %s218
          %s220 = sshll.u32 [#allocation6], 4
          %s221 = int_to_ptr.vmem [resolvable:$true] %s220
          %226 = dma.hbm_to_vmem [thread:$0]  %s1, 4096, %s221, [#allocation7], 64, 64, 4
        $region16: #{tpu_custom_call.1} parent=11 // pred_fallthru
          _
        // Predicated region
        $region17: #{tpu_custom_call.1} parent=11 // pred_check
          %p227 = pneg %p89
        $region18: #{tpu_custom_call.1} parent=11 // pred_check_branch
          %229 = sbr.rel (%p227) target = $region20
        $region19: #{tpu_custom_call.1} parent=11 // pred_region
          _
        $region20: #{tpu_custom_call.1} parent=11 // pred_fallthru
          _
        // Predicated region
        $region21: #{tpu_custom_call.1} parent=11 // pred_check
          %p230 = pneg %p110
        $region22: #{tpu_custom_call.1} parent=11 // pred_check_branch
          %232 = sbr.rel (%p230) target = $region24
        $region23: #{tpu_custom_call.1} parent=11 // pred_region
          %s234 = ssub.s32 9216, 9216
          %235 = vsyncadd [#allocation7], %s234
          %s236 = sshll.u32 [#allocation8], 4
          %s237 = int_to_ptr.vmem [resolvable:$true] %s236
          %242 = dma.hbm_to_vmem [thread:$0]  %s3, 9216, %s237, [#allocation7], 64, 64, 4
        $region24: #{tpu_custom_call.1} parent=11 // pred_fallthru
          _
        // Predicated region
        $region25: #{tpu_custom_call.1} parent=11 // pred_check
          %p243 = pneg %p131
        $region26: #{tpu_custom_call.1} parent=11 // pred_check_branch
          %245 = sbr.rel (%p243) target = $region28
        $region27: #{tpu_custom_call.1} parent=11 // pred_region
          _
        $region28: #{tpu_custom_call.1} parent=11 // pred_fallthru
          _
        // Predicated region
        $region29: #{tpu_custom_call.1} parent=11 // pred_check
          %p246 = pneg %p152
        $region30: #{tpu_custom_call.1} parent=11 // pred_check_branch
          %248 = sbr.rel (%p246) target = $region32
        $region31: #{tpu_custom_call.1} parent=11 // pred_region
          %s250 = ssub.s32 4096, 4096
          %251 = vsyncadd [#allocation10], %s250
          %s252 = sshll.u32 [#allocation9], 4
          %s253 = int_to_ptr.vmem [resolvable:$true] %s252
          %258 = dma.hbm_to_vmem [thread:$0]  %s5, 4096, %s253, [#allocation10], 256, 256, 16
        $region32: #{tpu_custom_call.1} parent=11 // pred_fallthru
          _
        // Predicated region
        $region33: #{tpu_custom_call.1} parent=11 // pred_check
          %p259 = pneg %p173
        $region34: #{tpu_custom_call.1} parent=11 // pred_check_branch
          %261 = sbr.rel (%p259) target = $region36
        $region35: #{tpu_custom_call.1} parent=11 // pred_region
          _
        $region36: #{tpu_custom_call.1} parent=11 // pred_fallthru
          _
      $region12: #{tpu_custom_call.1} parent=5 // pred_fallthru
        _
      %p262 = scmp.lt.s32.totalorder %s21, 2
      // Predicated region
      $region37: #{tpu_custom_call.1} parent=5 // pred_check
        %p263 = pneg %p262
      $region38: #{tpu_custom_call.1} parent=5 // pred_check_branch
        %265 = sbr.rel (%p263) target = $region40
      $region39: #{tpu_custom_call.1} parent=5 // pred_region
        // Predicated region
        $region41: #{tpu_custom_call.1} parent=39 // pred_check
          %p266 = pneg %p41
        $region42: #{tpu_custom_call.1} parent=39 // pred_check_branch
          %268 = sbr.rel (%p266) target = $region44
        $region43: #{tpu_custom_call.1} parent=39 // pred_region
          %s269 = sand.u32 %s31, 1
          %s270 = scalar_lea.sflag [#allocation4], %s269
          %s271 = sand.u32 %s31, 1
          %s272 = smul.addr %s271, 1024
          %s273 = scalar_lea.vmem [#allocation3], %s272
          %s275 = ssub.s32 16384, 16384
          %276 = vsyncadd %s270, %s275
          %s277 = smul.addr %s21, 128
          %s278 = smul.addr %s277, 128
          %s279 = scalar_lea.hbm %s0, %s278
          %s280 = sshll.u32 %s273, 4
          %s281 = int_to_ptr.vmem [resolvable:$true] %s280
          %286 = dma.hbm_to_vmem [thread:$0]  %s279, 16384, %s281, %s270, 512, 512, 32
        $region44: #{tpu_custom_call.1} parent=39 // pred_fallthru
          _
      $region40: #{tpu_custom_call.1} parent=5 // pred_fallthru
        _
      %p287 = scmp.le.s32.totalorder 1, %s21
      %p288 = scmp.lt.s32.totalorder %s21, 3
      %p289 = pnand %p287, %p288
      %p290 = pneg %p289
      // Predicated region
      $region45: #{tpu_custom_call.1} parent=5 // pred_check
        _
      $region46: #{tpu_custom_call.1} parent=5 // pred_check_branch
        %292 = sbr.rel (%p289) target = $region48
      $region47: #{tpu_custom_call.1} parent=5 // pred_region
        %s293 = ssub.s32 %s21, 1
        %s294 = sand.u32 %s34, 1
        %s295 = scalar_lea.sflag [#allocation4], %s294
        %s296 = sand.u32 %s34, 1
        %s297 = smul.addr %s296, 1024
        %s298 = scalar_lea.vmem [#allocation3], %s297
        // Predicated region
        $region49: #{tpu_custom_call.1} parent=47 // pred_check
          %p299 = pneg %p47
        $region50: #{tpu_custom_call.1} parent=47 // pred_check_branch
          %301 = sbr.rel (%p299) target = $region52
        $region51: #{tpu_custom_call.1} parent=47 // pred_region
          %302 = dma.done %s295, 16384
        $region52: #{tpu_custom_call.1} parent=47 // pred_fallthru
          _
        // Predicated region
        $region53: #{tpu_custom_call.1} parent=47 // pred_check
          %p303 = pneg %p68
        $region54: #{tpu_custom_call.1} parent=47 // pred_check_branch
          %305 = sbr.rel (%p303) target = $region56
        $region55: #{tpu_custom_call.1} parent=47 // pred_region
          %306 = dma.done [#allocation7], 4096
        $region56: #{tpu_custom_call.1} parent=47 // pred_fallthru
          _
        // Predicated region
        $region57: #{tpu_custom_call.1} parent=47 // pred_check
          %p307 = pneg %p110
        $region58: #{tpu_custom_call.1} parent=47 // pred_check_branch
          %309 = sbr.rel (%p307) target = $region60
        $region59: #{tpu_custom_call.1} parent=47 // pred_region
          %310 = dma.done [#allocation7], 9216
        $region60: #{tpu_custom_call.1} parent=47 // pred_fallthru
          _
        // Predicated region
        $region61: #{tpu_custom_call.1} parent=47 // pred_check
          %p311 = pneg %p152
        $region62: #{tpu_custom_call.1} parent=47 // pred_check_branch
          %313 = sbr.rel (%p311) target = $region64
        $region63: #{tpu_custom_call.1} parent=47 // pred_region
          %314 = dma.done [#allocation10], 4096
        $region64: #{tpu_custom_call.1} parent=47 // pred_fallthru
          _
        %s315 = sand.u32 %s34, 1
        %s316 = scalar_lea.sflag [#allocation4], %s315
        %s317 = sand.u32 %s34, 1
        %s318 = smul.addr %s317, 1024
        %s319 = scalar_lea.vmem [#allocation3], %s318
        %p320 = pneg %p47
        %p321 = pneg %p44
        %p322 = pneg %p68
        %p323 = pneg %p65
        %p324 = pneg %p89
        %p325 = pneg %p86
        %p326 = pneg %p110
        %p327 = pneg %p107
        %p328 = pneg %p131
        %p329 = pneg %p128
        %p330 = pneg %p152
        %p331 = pneg %p149
        %p332 = pneg %p173
        %p333 = pneg %p170
        %p334 = pneg %p199
        %p335 = pneg %p196
        %s336 = sand.u32 %s186, 1
        %s337 = scalar_lea.sflag [#allocation5], %s336
        %s338 = sand.u32 %s186, 1
        %s339 = smul.addr %s338, 1024
        %s340 = scalar_lea.vmem [#allocation11], %s339
        %v342 = vld [vmem:[%s298] sm:$0xff]
        %v343 = vld [vmem:[%s298 + $0x8] sm:$0xff]
        %v344 = vld [vmem:[%s298 + $0x10] sm:$0xff]
        %v345 = vld [vmem:[%s298 + $0x18] sm:$0xff]
        %v346 = vld [vmem:[%s298 + $0x20] sm:$0xff]
        %v347 = vld [vmem:[%s298 + $0x28] sm:$0xff]
        %v348 = vld [vmem:[%s298 + $0x30] sm:$0xff]
        %v349 = vld [vmem:[%s298 + $0x38] sm:$0xff]
        %v350 = vld [vmem:[%s298 + $0x40] sm:$0xff]
        %v351 = vld [vmem:[%s298 + $0x48] sm:$0xff]
        %v352 = vld [vmem:[%s298 + $0x50] sm:$0xff]
        %v353 = vld [vmem:[%s298 + $0x58] sm:$0xff]
        %v354 = vld [vmem:[%s298 + $0x60] sm:$0xff]
        %v355 = vld [vmem:[%s298 + $0x68] sm:$0xff]
        %v356 = vld [vmem:[%s298 + $0x70] sm:$0xff]
        %v357 = vld [vmem:[%s298 + $0x78] sm:$0xff]
        %v358 = vld [vmem:[%s298 + $0x80] sm:$0xff]
        %v359 = vld [vmem:[%s298 + $0x88] sm:$0xff]
        %v360 = vld [vmem:[%s298 + $0x90] sm:$0xff]
        %v361 = vld [vmem:[%s298 + $0x98] sm:$0xff]
        %v362 = vld [vmem:[%s298 + $0xa0] sm:$0xff]
        %v363 = vld [vmem:[%s298 + $0xa8] sm:$0xff]
        %v364 = vld [vmem:[%s298 + $0xb0] sm:$0xff]
        %v365 = vld [vmem:[%s298 + $0xb8] sm:$0xff]
        %v366 = vld [vmem:[%s298 + $0xc0] sm:$0xff]
        %v367 = vld [vmem:[%s298 + $0xc8] sm:$0xff]
        %v368 = vld [vmem:[%s298 + $0xd0] sm:$0xff]
        %v369 = vld [vmem:[%s298 + $0xd8] sm:$0xff]
        %v370 = vld [vmem:[%s298 + $0xe0] sm:$0xff]
        %v371 = vld [vmem:[%s298 + $0xe8] sm:$0xff]
        %v372 = vld [vmem:[%s298 + $0xf0] sm:$0xff]
        %v373 = vld [vmem:[%s298 + $0xf8] sm:$0xff]
        %v374 = vld [vmem:[%s298 + $0x100] sm:$0xff]
        %v375 = vld [vmem:[%s298 + $0x108] sm:$0xff]
        %v376 = vld [vmem:[%s298 + $0x110] sm:$0xff]
        %v377 = vld [vmem:[%s298 + $0x118] sm:$0xff]
        %v378 = vld [vmem:[%s298 + $0x120] sm:$0xff]
        %v379 = vld [vmem:[%s298 + $0x128] sm:$0xff]
        %v380 = vld [vmem:[%s298 + $0x130] sm:$0xff]
        %v381 = vld [vmem:[%s298 + $0x138] sm:$0xff]
        %v382 = vld [vmem:[%s298 + $0x140] sm:$0xff]
        %v383 = vld [vmem:[%s298 + $0x148] sm:$0xff]
        %v384 = vld [vmem:[%s298 + $0x150] sm:$0xff]
        %v385 = vld [vmem:[%s298 + $0x158] sm:$0xff]
        %v386 = vld [vmem:[%s298 + $0x160] sm:$0xff]
        %v387 = vld [vmem:[%s298 + $0x168] sm:$0xff]
        %v388 = vld [vmem:[%s298 + $0x170] sm:$0xff]
        %v389 = vld [vmem:[%s298 + $0x178] sm:$0xff]
        %v390 = vld [vmem:[%s298 + $0x180] sm:$0xff]
        %v391 = vld [vmem:[%s298 + $0x188] sm:$0xff]
        %v392 = vld [vmem:[%s298 + $0x190] sm:$0xff]
        %v393 = vld [vmem:[%s298 + $0x198] sm:$0xff]
        %v394 = vld [vmem:[%s298 + $0x1a0] sm:$0xff]
        %v395 = vld [vmem:[%s298 + $0x1a8] sm:$0xff]
        %v396 = vld [vmem:[%s298 + $0x1b0] sm:$0xff]
        %v397 = vld [vmem:[%s298 + $0x1b8] sm:$0xff]
        %v398 = vld [vmem:[%s298 + $0x1c0] sm:$0xff]
        %v399 = vld [vmem:[%s298 + $0x1c8] sm:$0xff]
        %v400 = vld [vmem:[%s298 + $0x1d0] sm:$0xff]
        %v401 = vld [vmem:[%s298 + $0x1d8] sm:$0xff]
        %v402 = vld [vmem:[%s298 + $0x1e0] sm:$0xff]
        %v403 = vld [vmem:[%s298 + $0x1e8] sm:$0xff]
        %v404 = vld [vmem:[%s298 + $0x1f0] sm:$0xff]
        %v405 = vld [vmem:[%s298 + $0x1f8] sm:$0xff]
        %v406 = vld [vmem:[%s298 + $0x200] sm:$0xff]
        %v407 = vld [vmem:[%s298 + $0x208] sm:$0xff]
        %v408 = vld [vmem:[%s298 + $0x210] sm:$0xff]
        %v409 = vld [vmem:[%s298 + $0x218] sm:$0xff]
        %v410 = vld [vmem:[%s298 + $0x220] sm:$0xff]
        %v411 = vld [vmem:[%s298 + $0x228] sm:$0xff]
        %v412 = vld [vmem:[%s298 + $0x230] sm:$0xff]
        %v413 = vld [vmem:[%s298 + $0x238] sm:$0xff]
        %v414 = vld [vmem:[%s298 + $0x240] sm:$0xff]
        %v415 = vld [vmem:[%s298 + $0x248] sm:$0xff]
        %v416 = vld [vmem:[%s298 + $0x250] sm:$0xff]
        %v417 = vld [vmem:[%s298 + $0x258] sm:$0xff]
        %v418 = vld [vmem:[%s298 + $0x260] sm:$0xff]
        %v419 = vld [vmem:[%s298 + $0x268] sm:$0xff]
        %v420 = vld [vmem:[%s298 + $0x270] sm:$0xff]
        %v421 = vld [vmem:[%s298 + $0x278] sm:$0xff]
        %v422 = vld [vmem:[%s298 + $0x280] sm:$0xff]
        %v423 = vld [vmem:[%s298 + $0x288] sm:$0xff]
        %v424 = vld [vmem:[%s298 + $0x290] sm:$0xff]
        %v425 = vld [vmem:[%s298 + $0x298] sm:$0xff]
        %v426 = vld [vmem:[%s298 + $0x2a0] sm:$0xff]
        %v427 = vld [vmem:[%s298 + $0x2a8] sm:$0xff]
        %v428 = vld [vmem:[%s298 + $0x2b0] sm:$0xff]
        %v429 = vld [vmem:[%s298 + $0x2b8] sm:$0xff]
        %v430 = vld [vmem:[%s298 + $0x2c0] sm:$0xff]
        %v431 = vld [vmem:[%s298 + $0x2c8] sm:$0xff]
        %v432 = vld [vmem:[%s298 + $0x2d0] sm:$0xff]
        %v433 = vld [vmem:[%s298 + $0x2d8] sm:$0xff]
        %v434 = vld [vmem:[%s298 + $0x2e0] sm:$0xff]
        %v435 = vld [vmem:[%s298 + $0x2e8] sm:$0xff]
        %v436 = vld [vmem:[%s298 + $0x2f0] sm:$0xff]
        %v437 = vld [vmem:[%s298 + $0x2f8] sm:$0xff]
        %v438 = vld [vmem:[%s298 + $0x300] sm:$0xff]
        %v439 = vld [vmem:[%s298 + $0x308] sm:$0xff]
        %v440 = vld [vmem:[%s298 + $0x310] sm:$0xff]
        %v441 = vld [vmem:[%s298 + $0x318] sm:$0xff]
        %v442 = vld [vmem:[%s298 + $0x320] sm:$0xff]
        %v443 = vld [vmem:[%s298 + $0x328] sm:$0xff]
        %v444 = vld [vmem:[%s298 + $0x330] sm:$0xff]
        %v445 = vld [vmem:[%s298 + $0x338] sm:$0xff]
        %v446 = vld [vmem:[%s298 + $0x340] sm:$0xff]
        %v447 = vld [vmem:[%s298 + $0x348] sm:$0xff]
        %v448 = vld [vmem:[%s298 + $0x350] sm:$0xff]
        %v449 = vld [vmem:[%s298 + $0x358] sm:$0xff]
        %v450 = vld [vmem:[%s298 + $0x360] sm:$0xff]
        %v451 = vld [vmem:[%s298 + $0x368] sm:$0xff]
        %v452 = vld [vmem:[%s298 + $0x370] sm:$0xff]
        %v453 = vld [vmem:[%s298 + $0x378] sm:$0xff]
        %v454 = vld [vmem:[%s298 + $0x380] sm:$0xff]
        %v455 = vld [vmem:[%s298 + $0x388] sm:$0xff]
        %v456 = vld [vmem:[%s298 + $0x390] sm:$0xff]
        %v457 = vld [vmem:[%s298 + $0x398] sm:$0xff]
        %v458 = vld [vmem:[%s298 + $0x3a0] sm:$0xff]
        %v459 = vld [vmem:[%s298 + $0x3a8] sm:$0xff]
        %v460 = vld [vmem:[%s298 + $0x3b0] sm:$0xff]
        %v461 = vld [vmem:[%s298 + $0x3b8] sm:$0xff]
        %v462 = vld [vmem:[%s298 + $0x3c0] sm:$0xff]
        %v463 = vld [vmem:[%s298 + $0x3c8] sm:$0xff]
        %v464 = vld [vmem:[%s298 + $0x3d0] sm:$0xff]
        %v465 = vld [vmem:[%s298 + $0x3d8] sm:$0xff]
        %v466 = vld [vmem:[%s298 + $0x3e0] sm:$0xff]
        %v467 = vld [vmem:[%s298 + $0x3e8] sm:$0xff]
        %v468 = vld [vmem:[%s298 + $0x3f0] sm:$0xff]
        %v469 = vld [vmem:[%s298 + $0x3f8] sm:$0xff]
        %v470 = vpack.c.bf16 %v346, %v342
        %v471 = vpack.c.bf16 %v347, %v343
        %v472 = vpack.c.bf16 %v348, %v344
        %v473 = vpack.c.bf16 %v349, %v345
        %v474 = vpack.c.bf16 %v354, %v350
        %v475 = vpack.c.bf16 %v355, %v351
        %v476 = vpack.c.bf16 %v356, %v352
        %v477 = vpack.c.bf16 %v357, %v353
        %v478 = vpack.c.bf16 %v362, %v358
        %v479 = vpack.c.bf16 %v363, %v359
        %v480 = vpack.c.bf16 %v364, %v360
        %v481 = vpack.c.bf16 %v365, %v361
        %v482 = vpack.c.bf16 %v370, %v366
        %v483 = vpack.c.bf16 %v371, %v367
        %v484 = vpack.c.bf16 %v372, %v368
        %v485 = vpack.c.bf16 %v373, %v369
        %v486 = vpack.c.bf16 %v378, %v374
        %v487 = vpack.c.bf16 %v379, %v375
        %v488 = vpack.c.bf16 %v380, %v376
        %v489 = vpack.c.bf16 %v381, %v377
        %v490 = vpack.c.bf16 %v386, %v382
        %v491 = vpack.c.bf16 %v387, %v383
        %v492 = vpack.c.bf16 %v388, %v384
        %v493 = vpack.c.bf16 %v389, %v385
        %v494 = vpack.c.bf16 %v394, %v390
        %v495 = vpack.c.bf16 %v395, %v391
        %v496 = vpack.c.bf16 %v396, %v392
        %v497 = vpack.c.bf16 %v397, %v393
        %v498 = vpack.c.bf16 %v402, %v398
        %v499 = vpack.c.bf16 %v403, %v399
        %v500 = vpack.c.bf16 %v404, %v400
        %v501 = vpack.c.bf16 %v405, %v401
        %v502 = vpack.c.bf16 %v410, %v406
        %v503 = vpack.c.bf16 %v411, %v407
        %v504 = vpack.c.bf16 %v412, %v408
        %v505 = vpack.c.bf16 %v413, %v409
        %v506 = vpack.c.bf16 %v418, %v414
        %v507 = vpack.c.bf16 %v419, %v415
        %v508 = vpack.c.bf16 %v420, %v416
        %v509 = vpack.c.bf16 %v421, %v417
        %v510 = vpack.c.bf16 %v426, %v422
        %v511 = vpack.c.bf16 %v427, %v423
        %v512 = vpack.c.bf16 %v428, %v424
        %v513 = vpack.c.bf16 %v429, %v425
        %v514 = vpack.c.bf16 %v434, %v430
        %v515 = vpack.c.bf16 %v435, %v431
        %v516 = vpack.c.bf16 %v436, %v432
        %v517 = vpack.c.bf16 %v437, %v433
        %v518 = vpack.c.bf16 %v442, %v438
        %v519 = vpack.c.bf16 %v443, %v439
        %v520 = vpack.c.bf16 %v444, %v440
        %v521 = vpack.c.bf16 %v445, %v441
        %v522 = vpack.c.bf16 %v450, %v446
        %v523 = vpack.c.bf16 %v451, %v447
        %v524 = vpack.c.bf16 %v452, %v448
        %v525 = vpack.c.bf16 %v453, %v449
        %v526 = vpack.c.bf16 %v458, %v454
        %v527 = vpack.c.bf16 %v459, %v455
        %v528 = vpack.c.bf16 %v460, %v456
        %v529 = vpack.c.bf16 %v461, %v457
        %v530 = vpack.c.bf16 %v466, %v462
        %v531 = vpack.c.bf16 %v467, %v463
        %v532 = vpack.c.bf16 %v468, %v464
        %v533 = vpack.c.bf16 %v469, %v465
        %v534 = vld [vmem:[#allocation6] sm:$0xf]
        %v535 = vld [vmem:[#allocation6 + $0x4] sm:$0xf]
        %v536 = vld [vmem:[#allocation6 + $0x8] sm:$0xf]
        %v537 = vld [vmem:[#allocation6 + $0xc] sm:$0xf]
        %v538 = vld [vmem:[#allocation6 + $0x10] sm:$0xf]
        %v539 = vld [vmem:[#allocation6 + $0x14] sm:$0xf]
        %v540 = vld [vmem:[#allocation6 + $0x18] sm:$0xf]
        %v541 = vld [vmem:[#allocation6 + $0x1c] sm:$0xf]
        %v542 = vld [vmem:[#allocation6 + $0x20] sm:$0xf]
        %v543 = vld [vmem:[#allocation6 + $0x24] sm:$0xf]
        %v544 = vld [vmem:[#allocation6 + $0x28] sm:$0xf]
        %v545 = vld [vmem:[#allocation6 + $0x2c] sm:$0xf]
        %v546 = vld [vmem:[#allocation6 + $0x30] sm:$0xf]
        %v547 = vld [vmem:[#allocation6 + $0x34] sm:$0xf]
        %v548 = vld [vmem:[#allocation6 + $0x38] sm:$0xf]
        %v549 = vld [vmem:[#allocation6 + $0x3c] sm:$0xf]
        %v550 = vld [vmem:[#allocation6 + $0x40] sm:$0xf]
        %v551 = vld [vmem:[#allocation6 + $0x44] sm:$0xf]
        %v552 = vld [vmem:[#allocation6 + $0x48] sm:$0xf]
        %v553 = vld [vmem:[#allocation6 + $0x4c] sm:$0xf]
        %v554 = vld [vmem:[#allocation6 + $0x50] sm:$0xf]
        %v555 = vld [vmem:[#allocation6 + $0x54] sm:$0xf]
        %v556 = vld [vmem:[#allocation6 + $0x58] sm:$0xf]
        %v557 = vld [vmem:[#allocation6 + $0x5c] sm:$0xf]
        %v558 = vld [vmem:[#allocation6 + $0x60] sm:$0xf]
        %v559 = vld [vmem:[#allocation6 + $0x64] sm:$0xf]
        %v560 = vld [vmem:[#allocation6 + $0x68] sm:$0xf]
        %v561 = vld [vmem:[#allocation6 + $0x6c] sm:$0xf]
        %v562 = vld [vmem:[#allocation6 + $0x70] sm:$0xf]
        %v563 = vld [vmem:[#allocation6 + $0x74] sm:$0xf]
        %v564 = vld [vmem:[#allocation6 + $0x78] sm:$0xf]
        %v565 = vld [vmem:[#allocation6 + $0x7c] sm:$0xf]
        %v566 = vld [vmem:[#allocation6 + $0x80] sm:$0xf]
        %v567 = vld [vmem:[#allocation6 + $0x84] sm:$0xf]
        %v568 = vld [vmem:[#allocation6 + $0x88] sm:$0xf]
        %v569 = vld [vmem:[#allocation6 + $0x8c] sm:$0xf]
        %v570 = vld [vmem:[#allocation6 + $0x90] sm:$0xf]
        %v571 = vld [vmem:[#allocation6 + $0x94] sm:$0xf]
        %v572 = vld [vmem:[#allocation6 + $0x98] sm:$0xf]
        %v573 = vld [vmem:[#allocation6 + $0x9c] sm:$0xf]
        %v574 = vld [vmem:[#allocation6 + $0xa0] sm:$0xf]
        %v575 = vld [vmem:[#allocation6 + $0xa4] sm:$0xf]
        %v576 = vld [vmem:[#allocation6 + $0xa8] sm:$0xf]
        %v577 = vld [vmem:[#allocation6 + $0xac] sm:$0xf]
        %v578 = vld [vmem:[#allocation6 + $0xb0] sm:$0xf]
        %v579 = vld [vmem:[#allocation6 + $0xb4] sm:$0xf]
        %v580 = vld [vmem:[#allocation6 + $0xb8] sm:$0xf]
        %v581 = vld [vmem:[#allocation6 + $0xbc] sm:$0xf]
        %v582 = vld [vmem:[#allocation6 + $0xc0] sm:$0xf]
        %v583 = vld [vmem:[#allocation6 + $0xc4] sm:$0xf]
        %v584 = vld [vmem:[#allocation6 + $0xc8] sm:$0xf]
        %v585 = vld [vmem:[#allocation6 + $0xcc] sm:$0xf]
        %v586 = vld [vmem:[#allocation6 + $0xd0] sm:$0xf]
        %v587 = vld [vmem:[#allocation6 + $0xd4] sm:$0xf]
        %v588 = vld [vmem:[#allocation6 + $0xd8] sm:$0xf]
        %v589 = vld [vmem:[#allocation6 + $0xdc] sm:$0xf]
        %v590 = vld [vmem:[#allocation6 + $0xe0] sm:$0xf]
        %v591 = vld [vmem:[#allocation6 + $0xe4] sm:$0xf]
        %v592 = vld [vmem:[#allocation6 + $0xe8] sm:$0xf]
        %v593 = vld [vmem:[#allocation6 + $0xec] sm:$0xf]
        %v594 = vld [vmem:[#allocation6 + $0xf0] sm:$0xf]
        %v595 = vld [vmem:[#allocation6 + $0xf4] sm:$0xf]
        %v596 = vld [vmem:[#allocation6 + $0xf8] sm:$0xf]
        %v597 = vld [vmem:[#allocation6 + $0xfc] sm:$0xf]
        %v598 = vld [vmem:[%s2] sm:$0x1]
        %v600 = vlaneseq
        %v601 = vshrl.u32 %v600, 7
        %v602 = vsub.s32 0, %v601
        %v603 = vrot.slane %v598, %v602
        %v669 = vunpack.c.l.b16 %v534
        %v670 = vunpack.c.l.b16 %v535
        %v671 = vunpack.c.l.b16 %v536
        %v672 = vunpack.c.l.b16 %v537
        %v673 = vunpack.c.l.b16 %v538
        %v674 = vunpack.c.l.b16 %v539
        %v675 = vunpack.c.l.b16 %v540
        %v676 = vunpack.c.l.b16 %v541
        %v677 = vunpack.c.l.b16 %v542
        %v678 = vunpack.c.l.b16 %v543
        %v679 = vunpack.c.l.b16 %v544
        %v680 = vunpack.c.l.b16 %v545
        %v681 = vunpack.c.l.b16 %v546
        %v682 = vunpack.c.l.b16 %v547
        %v683 = vunpack.c.l.b16 %v548
        %v684 = vunpack.c.l.b16 %v549
        %v685 = vunpack.c.l.b16 %v550
        %v686 = vunpack.c.l.b16 %v551
        %v687 = vunpack.c.l.b16 %v552
        %v688 = vunpack.c.l.b16 %v553
        %v689 = vunpack.c.l.b16 %v554
        %v690 = vunpack.c.l.b16 %v555
        %v691 = vunpack.c.l.b16 %v556
        %v692 = vunpack.c.l.b16 %v557
        %v693 = vunpack.c.l.b16 %v558
        %v694 = vunpack.c.l.b16 %v559
        %v695 = vunpack.c.l.b16 %v560
        %v696 = vunpack.c.l.b16 %v561
        %v697 = vunpack.c.l.b16 %v562
        %v698 = vunpack.c.l.b16 %v563
        %v699 = vunpack.c.l.b16 %v564
        %v700 = vunpack.c.l.b16 %v565
        %v701 = vunpack.c.l.b16 %v566
        %v702 = vunpack.c.l.b16 %v567
        %v703 = vunpack.c.l.b16 %v568
        %v704 = vunpack.c.l.b16 %v569
        %v705 = vunpack.c.l.b16 %v570
        %v706 = vunpack.c.l.b16 %v571
        %v707 = vunpack.c.l.b16 %v572
        %v708 = vunpack.c.l.b16 %v573
        %v709 = vunpack.c.l.b16 %v574
        %v710 = vunpack.c.l.b16 %v575
        %v711 = vunpack.c.l.b16 %v576
        %v712 = vunpack.c.l.b16 %v577
        %v713 = vunpack.c.l.b16 %v578
        %v714 = vunpack.c.l.b16 %v579
        %v715 = vunpack.c.l.b16 %v580
        %v716 = vunpack.c.l.b16 %v581
        %v717 = vunpack.c.l.b16 %v582
        %v718 = vunpack.c.l.b16 %v583
        %v719 = vunpack.c.l.b16 %v584
        %v720 = vunpack.c.l.b16 %v585
        %v721 = vunpack.c.l.b16 %v586
        %v722 = vunpack.c.l.b16 %v587
        %v723 = vunpack.c.l.b16 %v588
        %v724 = vunpack.c.l.b16 %v589
        %v725 = vunpack.c.l.b16 %v590
        %v726 = vunpack.c.l.b16 %v591
        %v727 = vunpack.c.l.b16 %v592
        %v728 = vunpack.c.l.b16 %v593
        %v729 = vunpack.c.l.b16 %v594
        %v730 = vunpack.c.l.b16 %v595
        %v731 = vunpack.c.l.b16 %v596
        %v732 = vunpack.c.l.b16 %v597
        %v733 = vpack.c.b16 %v670, %v669
        %v734 = vpack.c.b16 %v672, %v671
        %v735 = vpack.c.b16 %v674, %v673
        %v736 = vpack.c.b16 %v676, %v675
        %v737 = vpack.c.b16 %v678, %v677
        %v738 = vpack.c.b16 %v680, %v679
        %v739 = vpack.c.b16 %v682, %v681
        %v740 = vpack.c.b16 %v684, %v683
        %v741 = vpack.c.b16 %v686, %v685
        %v742 = vpack.c.b16 %v688, %v687
        %v743 = vpack.c.b16 %v690, %v689
        %v744 = vpack.c.b16 %v692, %v691
        %v745 = vpack.c.b16 %v694, %v693
        %v746 = vpack.c.b16 %v696, %v695
        %v747 = vpack.c.b16 %v698, %v697
        %v748 = vpack.c.b16 %v700, %v699
        %v749 = vpack.c.b16 %v702, %v701
        %v750 = vpack.c.b16 %v704, %v703
        %v751 = vpack.c.b16 %v706, %v705
        %v752 = vpack.c.b16 %v708, %v707
        %v753 = vpack.c.b16 %v710, %v709
        %v754 = vpack.c.b16 %v712, %v711
        %v755 = vpack.c.b16 %v714, %v713
        %v756 = vpack.c.b16 %v716, %v715
        %v757 = vpack.c.b16 %v718, %v717
        %v758 = vpack.c.b16 %v720, %v719
        %v759 = vpack.c.b16 %v722, %v721
        %v760 = vpack.c.b16 %v724, %v723
        %v761 = vpack.c.b16 %v726, %v725
        %v762 = vpack.c.b16 %v728, %v727
        %v763 = vpack.c.b16 %v730, %v729
        %v764 = vpack.c.b16 %v732, %v731
        %797 = vmatprep.subr.bf16.mxu0 0
        %798 = vmatpush1.bf16.msra.mxu0 %v733
        %799 = vmatprep.subr.bf16.mxu0 0
        %800 = vmatpush1.bf16.msra.mxu0 %v734
        %801 = vmatprep.subr.bf16.mxu0 0
        %802 = vmatpush1.bf16.msra.mxu0 %v735
        %803 = vmatprep.subr.bf16.mxu0 0
        %804 = vmatpush1.bf16.msra.mxu0 %v736
        %805 = vmatprep.subr.bf16.mxu0 0
        %806 = vmatpush1.bf16.msra.mxu0 %v737
        %807 = vmatprep.subr.bf16.mxu0 0
        %808 = vmatpush1.bf16.msra.mxu0 %v738
        %809 = vmatprep.subr.bf16.mxu0 0
        %810 = vmatpush1.bf16.msra.mxu0 %v739
        %811 = vmatprep.subr.bf16.mxu0 0
        %812 = vmatpush1.bf16.msra.mxu0 %v740
        %813 = vmatprep.subr.bf16.mxu0 0
        %814 = vmatpush1.bf16.msra.mxu0 %v741
        %815 = vmatprep.subr.bf16.mxu0 0
        %816 = vmatpush1.bf16.msra.mxu0 %v742
        %817 = vmatprep.subr.bf16.mxu0 0
        %818 = vmatpush1.bf16.msra.mxu0 %v743
        %819 = vmatprep.subr.bf16.mxu0 0
        %820 = vmatpush1.bf16.msra.mxu0 %v744
        %821 = vmatprep.subr.bf16.mxu0 0
        %822 = vmatpush1.bf16.msra.mxu0 %v745
        %823 = vmatprep.subr.bf16.mxu0 0
        %824 = vmatpush1.bf16.msra.mxu0 %v746
        %825 = vmatprep.subr.bf16.mxu0 0
        %826 = vmatpush1.bf16.msra.mxu0 %v747
        %827 = vmatprep.subr.bf16.mxu0 0
        %828 = vmatpush1.bf16.msra.mxu0 %v748
        %829 = vmatprep.mubr.bf16.mxu0 %v471
        %830 = vmatmul.mubr.bf16.gmra.mrb[0].mxu0 %v470
        %v831 = vpop.f32.mrb[0].mxu0
        %v832 = vadd.f32 %v603, %v831
        %v833 = vpop.f32.mrb[0].mxu0
        %v834 = vpop.f32.mrb[0].mxu0
        %v835 = vadd.f32 %v603, %v834
        %v836 = vpop.f32.mrb[0].mxu0
        %837 = vmatprep.mubr.bf16.mxu0 %v475
        %838 = vmatmul.mubr.bf16.gmra.mrb[0].mxu0 %v474
        %v839 = vpop.f32.mrb[0].mxu0
        %v840 = vadd.f32 %v603, %v839
        %v841 = vpop.f32.mrb[0].mxu0
        %v842 = vpop.f32.mrb[0].mxu0
        %v843 = vadd.f32 %v603, %v842
        %v844 = vpop.f32.mrb[0].mxu0
        %845 = vmatprep.mubr.bf16.mxu0 %v479
        %846 = vmatmul.mubr.bf16.gmra.mrb[0].mxu0 %v478
        %v847 = vpop.f32.mrb[0].mxu0
        %v848 = vadd.f32 %v603, %v847
        %v849 = vpop.f32.mrb[0].mxu0
        %v850 = vpop.f32.mrb[0].mxu0
        %v851 = vadd.f32 %v603, %v850
        %v852 = vpop.f32.mrb[0].mxu0
        %853 = vmatprep.mubr.bf16.mxu0 %v483
        %854 = vmatmul.mubr.bf16.gmra.mrb[0].mxu0 %v482
        %v855 = vpop.f32.mrb[0].mxu0
        %v856 = vadd.f32 %v603, %v855
        %v857 = vpop.f32.mrb[0].mxu0
        %v858 = vpop.f32.mrb[0].mxu0
        %v859 = vadd.f32 %v603, %v858
        %v860 = vpop.f32.mrb[0].mxu0
        %861 = vmatprep.mubr.bf16.mxu0 %v487
        %862 = vmatmul.mubr.bf16.gmra.mrb[0].mxu0 %v486
        %v863 = vpop.f32.mrb[0].mxu0
        %v864 = vadd.f32 %v603, %v863
        %v865 = vpop.f32.mrb[0].mxu0
        %v866 = vpop.f32.mrb[0].mxu0
        %v867 = vadd.f32 %v603, %v866
        %v868 = vpop.f32.mrb[0].mxu0
        %869 = vmatprep.mubr.bf16.mxu0 %v491
        %870 = vmatmul.mubr.bf16.gmra.mrb[0].mxu0 %v490
        %v871 = vpop.f32.mrb[0].mxu0
        %v872 = vadd.f32 %v603, %v871
        %v873 = vpop.f32.mrb[0].mxu0
        %v874 = vpop.f32.mrb[0].mxu0
        %v875 = vadd.f32 %v603, %v874
        %v876 = vpop.f32.mrb[0].mxu0
        %877 = vmatprep.mubr.bf16.mxu0 %v495
        %878 = vmatmul.mubr.bf16.gmra.mrb[0].mxu0 %v494
        %v879 = vpop.f32.mrb[0].mxu0
        %v880 = vadd.f32 %v603, %v879
        %v881 = vpop.f32.mrb[0].mxu0
        %v882 = vpop.f32.mrb[0].mxu0
        %v883 = vadd.f32 %v603, %v882
        %v884 = vpop.f32.mrb[0].mxu0
        %885 = vmatprep.mubr.bf16.mxu0 %v499
        %886 = vmatmul.mubr.bf16.gmra.mrb[0].mxu0 %v498
        %v887 = vpop.f32.mrb[0].mxu0
        %v888 = vadd.f32 %v603, %v887
        %v889 = vpop.f32.mrb[0].mxu0
        %v890 = vpop.f32.mrb[0].mxu0
        %v891 = vadd.f32 %v603, %v890
        %v892 = vpop.f32.mrb[0].mxu0
        %893 = vmatprep.mubr.bf16.mxu0 %v503
        %894 = vmatmul.mubr.bf16.gmra.mrb[0].mxu0 %v502
        %v895 = vpop.f32.mrb[0].mxu0
        %v896 = vadd.f32 %v603, %v895
        %v897 = vpop.f32.mrb[0].mxu0
        %v898 = vpop.f32.mrb[0].mxu0
        %v899 = vadd.f32 %v603, %v898
        %v900 = vpop.f32.mrb[0].mxu0
        %901 = vmatprep.mubr.bf16.mxu0 %v507
        %902 = vmatmul.mubr.bf16.gmra.mrb[0].mxu0 %v506
        %v903 = vpop.f32.mrb[0].mxu0
        %v904 = vadd.f32 %v603, %v903
        %v905 = vpop.f32.mrb[0].mxu0
        %v906 = vpop.f32.mrb[0].mxu0
        %v907 = vadd.f32 %v603, %v906
        %v908 = vpop.f32.mrb[0].mxu0
        %909 = vmatprep.mubr.bf16.mxu0 %v511
        %910 = vmatmul.mubr.bf16.gmra.mrb[0].mxu0 %v510
        %v911 = vpop.f32.mrb[0].mxu0
        %v912 = vadd.f32 %v603, %v911
        %v913 = vpop.f32.mrb[0].mxu0
        %v914 = vpop.f32.mrb[0].mxu0
        %v915 = vadd.f32 %v603, %v914
        %v916 = vpop.f32.mrb[0].mxu0
        %917 = vmatprep.mubr.bf16.mxu0 %v515
        %918 = vmatmul.mubr.bf16.gmra.mrb[0].mxu0 %v514
        %v919 = vpop.f32.mrb[0].mxu0
        %v920 = vadd.f32 %v603, %v919
        %v921 = vpop.f32.mrb[0].mxu0
        %v922 = vpop.f32.mrb[0].mxu0
        %v923 = vadd.f32 %v603, %v922
        %v924 = vpop.f32.mrb[0].mxu0
        %925 = vmatprep.mubr.bf16.mxu0 %v519
        %926 = vmatmul.mubr.bf16.gmra.mrb[0].mxu0 %v518
        %v927 = vpop.f32.mrb[0].mxu0
        %v928 = vadd.f32 %v603, %v927
        %v929 = vpop.f32.mrb[0].mxu0
        %v930 = vpop.f32.mrb[0].mxu0
        %v931 = vadd.f32 %v603, %v930
        %v932 = vpop.f32.mrb[0].mxu0
        %933 = vmatprep.mubr.bf16.mxu0 %v523
        %934 = vmatmul.mubr.bf16.gmra.mrb[0].mxu0 %v522
        %v935 = vpop.f32.mrb[0].mxu0
        %v936 = vadd.f32 %v603, %v935
        %v937 = vpop.f32.mrb[0].mxu0
        %v938 = vpop.f32.mrb[0].mxu0
        %v939 = vadd.f32 %v603, %v938
        %v940 = vpop.f32.mrb[0].mxu0
        %941 = vmatprep.mubr.bf16.mxu0 %v527
        %942 = vmatmul.mubr.bf16.gmra.mrb[0].mxu0 %v526
        %v943 = vpop.f32.mrb[0].mxu0
        %v944 = vadd.f32 %v603, %v943
        %v945 = vpop.f32.mrb[0].mxu0
        %v946 = vpop.f32.mrb[0].mxu0
        %v947 = vadd.f32 %v603, %v946
        %v948 = vpop.f32.mrb[0].mxu0
        %949 = vmatprep.mubr.bf16.mxu0 %v531
        %950 = vmatmul.mubr.bf16.gmra.mrb[0].mxu0 %v530
        %v951 = vpop.f32.mrb[0].mxu0
        %v952 = vadd.f32 %v603, %v951
        %v953 = vpop.f32.mrb[0].mxu0
        %v954 = vpop.f32.mrb[0].mxu0
        %v955 = vadd.f32 %v603, %v954
        %v956 = vpop.f32.mrb[0].mxu0
        %957 = vdwg.mxu0
        %958 = vmatprep.subr.bf16.mxu0 0
        %959 = vmatpush1.bf16.msra.mxu0 %v749
        %960 = vmatprep.subr.bf16.mxu0 0
        %961 = vmatpush1.bf16.msra.mxu0 %v750
        %962 = vmatprep.subr.bf16.mxu0 0
        %963 = vmatpush1.bf16.msra.mxu0 %v751
        %964 = vmatprep.subr.bf16.mxu0 0
        %965 = vmatpush1.bf16.msra.mxu0 %v752
        %966 = vmatprep.subr.bf16.mxu0 0
        %967 = vmatpush1.bf16.msra.mxu0 %v753
        %968 = vmatprep.subr.bf16.mxu0 0
        %969 = vmatpush1.bf16.msra.mxu0 %v754
        %970 = vmatprep.subr.bf16.mxu0 0
        %971 = vmatpush1.bf16.msra.mxu0 %v755
        %972 = vmatprep.subr.bf16.mxu0 0
        %973 = vmatpush1.bf16.msra.mxu0 %v756
        %974 = vmatprep.subr.bf16.mxu0 0
        %975 = vmatpush1.bf16.msra.mxu0 %v757
        %976 = vmatprep.subr.bf16.mxu0 0
        %977 = vmatpush1.bf16.msra.mxu0 %v758
        %978 = vmatprep.subr.bf16.mxu0 0
        %979 = vmatpush1.bf16.msra.mxu0 %v759
        %980 = vmatprep.subr.bf16.mxu0 0
        %981 = vmatpush1.bf16.msra.mxu0 %v760
        %982 = vmatprep.subr.bf16.mxu0 0
        %983 = vmatpush1.bf16.msra.mxu0 %v761
        %984 = vmatprep.subr.bf16.mxu0 0
        %985 = vmatpush1.bf16.msra.mxu0 %v762
        %986 = vmatprep.subr.bf16.mxu0 0
        %987 = vmatpush1.bf16.msra.mxu0 %v763
        %988 = vmatprep.subr.bf16.mxu0 0
        %989 = vmatpush1.bf16.msra.mxu0 %v764
        %990 = vmatprep.mubr.bf16.mxu0 %v473
        %991 = vmatmul.mubr.bf16.gmra.mrb[0].mxu0 %v472
        %v992 = vpop.f32.mrb[0].mxu0
        %v993 = vadd.f32 %v832, %v992
        %v994 = vpop.f32.mrb[0].mxu0
        %v995 = vpop.f32.mrb[0].mxu0
        %v996 = vadd.f32 %v835, %v995
        %v997 = vpop.f32.mrb[0].mxu0
        %998 = vmatprep.mubr.bf16.mxu0 %v477
        %999 = vmatmul.mubr.bf16.gmra.mrb[0].mxu0 %v476
        %v1000 = vpop.f32.mrb[0].mxu0
        %v1001 = vadd.f32 %v840, %v1000
        %v1002 = vpop.f32.mrb[0].mxu0
        %v1003 = vpop.f32.mrb[0].mxu0
        %v1004 = vadd.f32 %v843, %v1003
        %v1005 = vpop.f32.mrb[0].mxu0
        %1006 = vmatprep.mubr.bf16.mxu0 %v481
        %1007 = vmatmul.mubr.bf16.gmra.mrb[0].mxu0 %v480
        %v1008 = vpop.f32.mrb[0].mxu0
        %v1009 = vadd.f32 %v848, %v1008
        %v1010 = vpop.f32.mrb[0].mxu0
        %v1011 = vpop.f32.mrb[0].mxu0
        %v1012 = vadd.f32 %v851, %v1011
        %v1013 = vpop.f32.mrb[0].mxu0
        %1014 = vmatprep.mubr.bf16.mxu0 %v485
        %1015 = vmatmul.mubr.bf16.gmra.mrb[0].mxu0 %v484
        %v1016 = vpop.f32.mrb[0].mxu0
        %v1017 = vadd.f32 %v856, %v1016
        %v1018 = vpop.f32.mrb[0].mxu0
        %v1019 = vpop.f32.mrb[0].mxu0
        %v1020 = vadd.f32 %v859, %v1019
        %v1021 = vpop.f32.mrb[0].mxu0
        %1022 = vmatprep.mubr.bf16.mxu0 %v489
        %1023 = vmatmul.mubr.bf16.gmra.mrb[0].mxu0 %v488
        %v1024 = vpop.f32.mrb[0].mxu0
        %v1025 = vadd.f32 %v864, %v1024
        %v1026 = vpop.f32.mrb[0].mxu0
        %v1027 = vpop.f32.mrb[0].mxu0
        %v1028 = vadd.f32 %v867, %v1027
        %v1029 = vpop.f32.mrb[0].mxu0
        %1030 = vmatprep.mubr.bf16.mxu0 %v493
        %1031 = vmatmul.mubr.bf16.gmra.mrb[0].mxu0 %v492
        %v1032 = vpop.f32.mrb[0].mxu0
        %v1033 = vadd.f32 %v872, %v1032
        %v1034 = vpop.f32.mrb[0].mxu0
        %v1035 = vpop.f32.mrb[0].mxu0
        %v1036 = vadd.f32 %v875, %v1035
        %v1037 = vpop.f32.mrb[0].mxu0
        %1038 = vmatprep.mubr.bf16.mxu0 %v497
        %1039 = vmatmul.mubr.bf16.gmra.mrb[0].mxu0 %v496
        %v1040 = vpop.f32.mrb[0].mxu0
        %v1041 = vadd.f32 %v880, %v1040
        %v1042 = vpop.f32.mrb[0].mxu0
        %v1043 = vpop.f32.mrb[0].mxu0
        %v1044 = vadd.f32 %v883, %v1043
        %v1045 = vpop.f32.mrb[0].mxu0
        %1046 = vmatprep.mubr.bf16.mxu0 %v501
        %1047 = vmatmul.mubr.bf16.gmra.mrb[0].mxu0 %v500
        %v1048 = vpop.f32.mrb[0].mxu0
        %v1049 = vadd.f32 %v888, %v1048
        %v1050 = vpop.f32.mrb[0].mxu0
        %v1051 = vpop.f32.mrb[0].mxu0
        %v1052 = vadd.f32 %v891, %v1051
        %v1053 = vpop.f32.mrb[0].mxu0
        %1054 = vmatprep.mubr.bf16.mxu0 %v505
        %1055 = vmatmul.mubr.bf16.gmra.mrb[0].mxu0 %v504
        %v1056 = vpop.f32.mrb[0].mxu0
        %v1057 = vadd.f32 %v896, %v1056
        %v1058 = vpop.f32.mrb[0].mxu0
        %v1059 = vpop.f32.mrb[0].mxu0
        %v1060 = vadd.f32 %v899, %v1059
        %v1061 = vpop.f32.mrb[0].mxu0
        %1062 = vmatprep.mubr.bf16.mxu0 %v509
        %1063 = vmatmul.mubr.bf16.gmra.mrb[0].mxu0 %v508
        %v1064 = vpop.f32.mrb[0].mxu0
        %v1065 = vadd.f32 %v904, %v1064
        %v1066 = vpop.f32.mrb[0].mxu0
        %v1067 = vpop.f32.mrb[0].mxu0
        %v1068 = vadd.f32 %v907, %v1067
        %v1069 = vpop.f32.mrb[0].mxu0
        %1070 = vmatprep.mubr.bf16.mxu0 %v513
        %1071 = vmatmul.mubr.bf16.gmra.mrb[0].mxu0 %v512
        %v1072 = vpop.f32.mrb[0].mxu0
        %v1073 = vadd.f32 %v912, %v1072
        %v1074 = vpop.f32.mrb[0].mxu0
        %v1075 = vpop.f32.mrb[0].mxu0
        %v1076 = vadd.f32 %v915, %v1075
        %v1077 = vpop.f32.mrb[0].mxu0
        %1078 = vmatprep.mubr.bf16.mxu0 %v517
        %1079 = vmatmul.mubr.bf16.gmra.mrb[0].mxu0 %v516
        %v1080 = vpop.f32.mrb[0].mxu0
        %v1081 = vadd.f32 %v920, %v1080
        %v1082 = vpop.f32.mrb[0].mxu0
        %v1083 = vpop.f32.mrb[0].mxu0
        %v1084 = vadd.f32 %v923, %v1083
        %v1085 = vpop.f32.mrb[0].mxu0
        %1086 = vmatprep.mubr.bf16.mxu0 %v521
        %1087 = vmatmul.mubr.bf16.gmra.mrb[0].mxu0 %v520
        %v1088 = vpop.f32.mrb[0].mxu0
        %v1089 = vadd.f32 %v928, %v1088
        %v1090 = vpop.f32.mrb[0].mxu0
        %v1091 = vpop.f32.mrb[0].mxu0
        %v1092 = vadd.f32 %v931, %v1091
        %v1093 = vpop.f32.mrb[0].mxu0
        %1094 = vmatprep.mubr.bf16.mxu0 %v525
        %1095 = vmatmul.mubr.bf16.gmra.mrb[0].mxu0 %v524
        %v1096 = vpop.f32.mrb[0].mxu0
        %v1097 = vadd.f32 %v936, %v1096
        %v1098 = vpop.f32.mrb[0].mxu0
        %v1099 = vpop.f32.mrb[0].mxu0
        %v1100 = vadd.f32 %v939, %v1099
        %v1101 = vpop.f32.mrb[0].mxu0
        %1102 = vmatprep.mubr.bf16.mxu0 %v529
        %1103 = vmatmul.mubr.bf16.gmra.mrb[0].mxu0 %v528
        %v1104 = vpop.f32.mrb[0].mxu0
        %v1105 = vadd.f32 %v944, %v1104
        %v1106 = vpop.f32.mrb[0].mxu0
        %v1107 = vpop.f32.mrb[0].mxu0
        %v1108 = vadd.f32 %v947, %v1107
        %v1109 = vpop.f32.mrb[0].mxu0
        %1110 = vmatprep.mubr.bf16.mxu0 %v533
        %1111 = vmatmul.mubr.bf16.gmra.mrb[0].mxu0 %v532
        %v1112 = vpop.f32.mrb[0].mxu0
        %v1113 = vadd.f32 %v952, %v1112
        %v1114 = vpop.f32.mrb[0].mxu0
        %v1115 = vpop.f32.mrb[0].mxu0
        %v1116 = vadd.f32 %v955, %v1115
        %v1117 = vpop.f32.mrb[0].mxu0
        %1118 = vdwg.mxu0
        %v1119 = vmax.f32 %v993, 0.0
        %v1120 = vmax.f32 %v996, 0.0
        %v1121 = vmax.f32 %v1001, 0.0
        %v1122 = vmax.f32 %v1004, 0.0
        %v1123 = vmax.f32 %v1009, 0.0
        %v1124 = vmax.f32 %v1012, 0.0
        %v1125 = vmax.f32 %v1017, 0.0
        %v1126 = vmax.f32 %v1020, 0.0
        %v1127 = vmax.f32 %v1025, 0.0
        %v1128 = vmax.f32 %v1028, 0.0
        %v1129 = vmax.f32 %v1033, 0.0
        %v1130 = vmax.f32 %v1036, 0.0
        %v1131 = vmax.f32 %v1041, 0.0
        %v1132 = vmax.f32 %v1044, 0.0
        %v1133 = vmax.f32 %v1049, 0.0
        %v1134 = vmax.f32 %v1052, 0.0
        %v1135 = vmax.f32 %v1057, 0.0
        %v1136 = vmax.f32 %v1060, 0.0
        %v1137 = vmax.f32 %v1065, 0.0
        %v1138 = vmax.f32 %v1068, 0.0
        %v1139 = vmax.f32 %v1073, 0.0
        %v1140 = vmax.f32 %v1076, 0.0
        %v1141 = vmax.f32 %v1081, 0.0
        %v1142 = vmax.f32 %v1084, 0.0
        %v1143 = vmax.f32 %v1089, 0.0
        %v1144 = vmax.f32 %v1092, 0.0
        %v1145 = vmax.f32 %v1097, 0.0
        %v1146 = vmax.f32 %v1100, 0.0
        %v1147 = vmax.f32 %v1105, 0.0
        %v1148 = vmax.f32 %v1108, 0.0
        %v1149 = vmax.f32 %v1113, 0.0
        %v1150 = vmax.f32 %v1116, 0.0
        %v1151 = vpack.c.bf16 %v1120, %v1119
        %v1152 = vpack.c.bf16 %v1122, %v1121
        %v1153 = vpack.c.bf16 %v1124, %v1123
        %v1154 = vpack.c.bf16 %v1126, %v1125
        %v1155 = vpack.c.bf16 %v1128, %v1127
        %v1156 = vpack.c.bf16 %v1130, %v1129
        %v1157 = vpack.c.bf16 %v1132, %v1131
        %v1158 = vpack.c.bf16 %v1134, %v1133
        %v1159 = vpack.c.bf16 %v1136, %v1135
        %v1160 = vpack.c.bf16 %v1138, %v1137
        %v1161 = vpack.c.bf16 %v1140, %v1139
        %v1162 = vpack.c.bf16 %v1142, %v1141
        %v1163 = vpack.c.bf16 %v1144, %v1143
        %v1164 = vpack.c.bf16 %v1146, %v1145
        %v1165 = vpack.c.bf16 %v1148, %v1147
        %v1166 = vpack.c.bf16 %v1150, %v1149
        %1167 = vst [vmem:[#allocation2] sm:$0xf] 0
        %1168 = vst [vmem:[#allocation2 + $0x4] sm:$0xf] 0
        %1169 = vst [vmem:[#allocation2 + $0x8] sm:$0xf] 0
        %1170 = vst [vmem:[#allocation2 + $0xc] sm:$0xf] 0
        %vm1171 = vcmask 1040384
        %vm1172 = vsmask.f32 256
        %vm1173 = vmand %vm1171, %vm1172
        %v1174 = vld [vmem:[#allocation2 + $0x10] sm:$0x1]
        %v1175 = vsel %vm1173, 0, %v1174
        %1176 = vst [vmem:[#allocation2 + $0x10] sm:$0x1] %v1175
        %s1177 = scalar_lea.vmem [#allocation2], 340
        %1178 = vst [vmem:[%s1177] sm:$0xf] 0
        %1179 = vst [vmem:[%s1177 + $0x4] sm:$0xf] 0
        %1180 = vst [vmem:[%s1177 + $0x8] sm:$0xf] 0
        %1181 = vst [vmem:[%s1177 + $0xc] sm:$0xf] 0
        %v1182 = vld [vmem:[%s1177 + $0x10] sm:$0x1]
        %v1183 = vsel %vm1173, 0, %v1182
        %1184 = vst [vmem:[%s1177 + $0x10] sm:$0x1] %v1183
        %vm1185 = vcmask 1043459
        %vm1186 = vsmask.f32 7950
        %vm1187 = vmand %vm1185, %vm1186
        %v1188 = vld [vmem:[#allocation2 + $0x4] sm:$0x8]
        %v1189 = vsel %vm1187, 0, %v1188
        %1190 = vst [vmem:[#allocation2 + $0x4] sm:$0x8] %v1189
        %v1191 = vld [vmem:[#allocation2 + $0x18] sm:$0x8]
        %v1192 = vsel %vm1187, 0, %v1191
        %1193 = vst [vmem:[#allocation2 + $0x18] sm:$0x8] %v1192
        %v1194 = vld [vmem:[#allocation2 + $0x2c] sm:$0x8]
        %v1195 = vsel %vm1187, 0, %v1194
        %1196 = vst [vmem:[#allocation2 + $0x2c] sm:$0x8] %v1195
        %v1197 = vld [vmem:[#allocation2 + $0x40] sm:$0x8]
        %v1198 = vsel %vm1187, 0, %v1197
        %1199 = vst [vmem:[#allocation2 + $0x40] sm:$0x8] %v1198
        %v1200 = vld [vmem:[#allocation2 + $0x54] sm:$0x8]
        %v1201 = vsel %vm1187, 0, %v1200
        %1202 = vst [vmem:[#allocation2 + $0x54] sm:$0x8] %v1201
        %v1203 = vld [vmem:[#allocation2 + $0x68] sm:$0x8]
        %v1204 = vsel %vm1187, 0, %v1203
        %1205 = vst [vmem:[#allocation2 + $0x68] sm:$0x8] %v1204
        %v1206 = vld [vmem:[#allocation2 + $0x7c] sm:$0x8]
        %v1207 = vsel %vm1187, 0, %v1206
        %1208 = vst [vmem:[#allocation2 + $0x7c] sm:$0x8] %v1207
        %v1209 = vld [vmem:[#allocation2 + $0x90] sm:$0x8]
        %v1210 = vsel %vm1187, 0, %v1209
        %1211 = vst [vmem:[#allocation2 + $0x90] sm:$0x8] %v1210
        %v1212 = vld [vmem:[#allocation2 + $0xa4] sm:$0x8]
        %v1213 = vsel %vm1187, 0, %v1212
        %1214 = vst [vmem:[#allocation2 + $0xa4] sm:$0x8] %v1213
        %v1215 = vld [vmem:[#allocation2 + $0xb8] sm:$0x8]
        %v1216 = vsel %vm1187, 0, %v1215
        %1217 = vst [vmem:[#allocation2 + $0xb8] sm:$0x8] %v1216
        %v1218 = vld [vmem:[#allocation2 + $0xcc] sm:$0x8]
        %v1219 = vsel %vm1187, 0, %v1218
        %1220 = vst [vmem:[#allocation2 + $0xcc] sm:$0x8] %v1219
        %v1221 = vld [vmem:[#allocation2 + $0xe0] sm:$0x8]
        %v1222 = vsel %vm1187, 0, %v1221
        %1223 = vst [vmem:[#allocation2 + $0xe0] sm:$0x8] %v1222
        %v1224 = vld [vmem:[#allocation2 + $0xf4] sm:$0x8]
        %v1225 = vsel %vm1187, 0, %v1224
        %1226 = vst [vmem:[#allocation2 + $0xf4] sm:$0x8] %v1225
        %v1227 = vld [vmem:[#allocation2 + $0x108] sm:$0x8]
        %v1228 = vsel %vm1187, 0, %v1227
        %1229 = vst [vmem:[#allocation2 + $0x108] sm:$0x8] %v1228
        %v1230 = vld [vmem:[#allocation2 + $0x11c] sm:$0x8]
        %v1231 = vsel %vm1187, 0, %v1230
        %1232 = vst [vmem:[#allocation2 + $0x11c] sm:$0x8] %v1231
        %v1233 = vld [vmem:[#allocation2 + $0x130] sm:$0x8]
        %v1234 = vsel %vm1187, 0, %v1233
        %1235 = vst [vmem:[#allocation2 + $0x130] sm:$0x8] %v1234
        %v1236 = vld [vmem:[#allocation2 + $0x144] sm:$0x8]
        %v1237 = vsel %vm1187, 0, %v1236
        %1238 = vst [vmem:[#allocation2 + $0x144] sm:$0x8] %v1237
        %v1239 = vld [vmem:[#allocation2 + $0x158] sm:$0x8]
        %v1240 = vsel %vm1187, 0, %v1239
        %1241 = vst [vmem:[#allocation2 + $0x158] sm:$0x8] %v1240
        %v1242 = vld [vmem:[#allocation2 + $0x10] sm:$0x1]
        %v1243 = vsel %vm1173, 0, %v1242
        %1244 = vst [vmem:[#allocation2 + $0x10] sm:$0x1] %v1243
        %v1245 = vld [vmem:[#allocation2 + $0x24] sm:$0x1]
        %v1246 = vsel %vm1173, 0, %v1245
        %1247 = vst [vmem:[#allocation2 + $0x24] sm:$0x1] %v1246
        %v1248 = vld [vmem:[#allocation2 + $0x38] sm:$0x1]
        %v1249 = vsel %vm1173, 0, %v1248
        %1250 = vst [vmem:[#allocation2 + $0x38] sm:$0x1] %v1249
        %v1251 = vld [vmem:[#allocation2 + $0x4c] sm:$0x1]
        %v1252 = vsel %vm1173, 0, %v1251
        %1253 = vst [vmem:[#allocation2 + $0x4c] sm:$0x1] %v1252
        %v1254 = vld [vmem:[#allocation2 + $0x60] sm:$0x1]
        %v1255 = vsel %vm1173, 0, %v1254
        %1256 = vst [vmem:[#allocation2 + $0x60] sm:$0x1] %v1255
        %v1257 = vld [vmem:[#allocation2 + $0x74] sm:$0x1]
        %v1258 = vsel %vm1173, 0, %v1257
        %1259 = vst [vmem:[#allocation2 + $0x74] sm:$0x1] %v1258
        %v1260 = vld [vmem:[#allocation2 + $0x88] sm:$0x1]
        %v1261 = vsel %vm1173, 0, %v1260
        %1262 = vst [vmem:[#allocation2 + $0x88] sm:$0x1] %v1261
        %v1263 = vld [vmem:[#allocation2 + $0x9c] sm:$0x1]
        %v1264 = vsel %vm1173, 0, %v1263
        %1265 = vst [vmem:[#allocation2 + $0x9c] sm:$0x1] %v1264
        %v1266 = vld [vmem:[#allocation2 + $0xb0] sm:$0x1]
        %v1267 = vsel %vm1173, 0, %v1266
        %1268 = vst [vmem:[#allocation2 + $0xb0] sm:$0x1] %v1267
        %v1269 = vld [vmem:[#allocation2 + $0xc4] sm:$0x1]
        %v1270 = vsel %vm1173, 0, %v1269
        %1271 = vst [vmem:[#allocation2 + $0xc4] sm:$0x1] %v1270
        %v1272 = vld [vmem:[#allocation2 + $0xd8] sm:$0x1]
        %v1273 = vsel %vm1173, 0, %v1272
        %1274 = vst [vmem:[#allocation2 + $0xd8] sm:$0x1] %v1273
        %v1275 = vld [vmem:[#allocation2 + $0xec] sm:$0x1]
        %v1276 = vsel %vm1173, 0, %v1275
        %1277 = vst [vmem:[#allocation2 + $0xec] sm:$0x1] %v1276
        %v1278 = vld [vmem:[#allocation2 + $0x100] sm:$0x1]
        %v1279 = vsel %vm1173, 0, %v1278
        %1280 = vst [vmem:[#allocation2 + $0x100] sm:$0x1] %v1279
        %v1281 = vld [vmem:[#allocation2 + $0x114] sm:$0x1]
        %v1282 = vsel %vm1173, 0, %v1281
        %1283 = vst [vmem:[#allocation2 + $0x114] sm:$0x1] %v1282
        %v1284 = vld [vmem:[#allocation2 + $0x128] sm:$0x1]
        %v1285 = vsel %vm1173, 0, %v1284
        %1286 = vst [vmem:[#allocation2 + $0x128] sm:$0x1] %v1285
        %v1287 = vld [vmem:[#allocation2 + $0x13c] sm:$0x1]
        %v1288 = vsel %vm1173, 0, %v1287
        %1289 = vst [vmem:[#allocation2 + $0x13c] sm:$0x1] %v1288
        %v1290 = vld [vmem:[#allocation2 + $0x150] sm:$0x1]
        %v1291 = vsel %vm1173, 0, %v1290
        %1292 = vst [vmem:[#allocation2 + $0x150] sm:$0x1] %v1291
        %v1293 = vld [vmem:[#allocation2 + $0x164] sm:$0x1]
        %v1294 = vsel %vm1173, 0, %v1293
        %1295 = vst [vmem:[#allocation2 + $0x164] sm:$0x1] %v1294
        %v1312 = vunpack.c.l.b16 %v1151
        %v1313 = vunpack.c.h.b16 %v1151
        %v1314 = vunpack.c.l.b16 %v1152
        %v1315 = vunpack.c.h.b16 %v1152
        %v1316 = vunpack.c.l.b16 %v1153
        %v1317 = vunpack.c.h.b16 %v1153
        %v1318 = vunpack.c.l.b16 %v1154
        %v1319 = vunpack.c.h.b16 %v1154
        %v1320 = vunpack.c.l.b16 %v1155
        %v1321 = vunpack.c.h.b16 %v1155
        %v1322 = vunpack.c.l.b16 %v1156
        %v1323 = vunpack.c.h.b16 %v1156
        %v1324 = vunpack.c.l.b16 %v1157
        %v1325 = vunpack.c.h.b16 %v1157
        %v1326 = vunpack.c.l.b16 %v1158
        %v1327 = vunpack.c.h.b16 %v1158
        %v1328 = vunpack.c.l.b16 %v1159
        %v1329 = vunpack.c.h.b16 %v1159
        %v1330 = vunpack.c.l.b16 %v1160
        %v1331 = vunpack.c.h.b16 %v1160
        %v1332 = vunpack.c.l.b16 %v1161
        %v1333 = vunpack.c.h.b16 %v1161
        %v1334 = vunpack.c.l.b16 %v1162
        %v1335 = vunpack.c.h.b16 %v1162
        %v1336 = vunpack.c.l.b16 %v1163
        %v1337 = vunpack.c.h.b16 %v1163
        %v1338 = vunpack.c.l.b16 %v1164
        %v1339 = vunpack.c.h.b16 %v1164
        %v1340 = vunpack.c.l.b16 %v1165
        %v1341 = vunpack.c.h.b16 %v1165
        %v1342 = vunpack.c.l.b16 %v1166
        %v1343 = vunpack.c.h.b16 %v1166
        %v1344 = vpack.c.b16 %v1312, %v1312
        %v1345 = vpack.c.b16 %v1313, %v1313
        %v1346 = vpack.c.b16 %v1314, %v1314
        %v1347 = vpack.c.b16 %v1315, %v1315
        %v1348 = vpack.c.b16 %v1316, %v1316
        %v1349 = vpack.c.b16 %v1317, %v1317
        %v1350 = vpack.c.b16 %v1318, %v1318
        %v1351 = vpack.c.b16 %v1319, %v1319
        %v1352 = vpack.c.b16 %v1320, %v1320
        %v1353 = vpack.c.b16 %v1321, %v1321
        %v1354 = vpack.c.b16 %v1322, %v1322
        %v1355 = vpack.c.b16 %v1323, %v1323
        %v1356 = vpack.c.b16 %v1324, %v1324
        %v1357 = vpack.c.b16 %v1325, %v1325
        %v1358 = vpack.c.b16 %v1326, %v1326
        %v1359 = vpack.c.b16 %v1327, %v1327
        %v1360 = vpack.c.b16 %v1328, %v1328
        %v1361 = vpack.c.b16 %v1329, %v1329
        %v1362 = vpack.c.b16 %v1330, %v1330
        %v1363 = vpack.c.b16 %v1331, %v1331
        %v1364 = vpack.c.b16 %v1332, %v1332
        %v1365 = vpack.c.b16 %v1333, %v1333
        %v1366 = vpack.c.b16 %v1334, %v1334
        %v1367 = vpack.c.b16 %v1335, %v1335
        %v1368 = vpack.c.b16 %v1336, %v1336
        %v1369 = vpack.c.b16 %v1337, %v1337
        %v1370 = vpack.c.b16 %v1338, %v1338
        %v1371 = vpack.c.b16 %v1339, %v1339
        %v1372 = vpack.c.b16 %v1340, %v1340
        %v1373 = vpack.c.b16 %v1341, %v1341
        %v1374 = vpack.c.b16 %v1342, %v1342
        %v1375 = vpack.c.b16 %v1343, %v1343
        %s1408 = scalar_lea.vmem [#allocation2], 20
        %1409 = vst [vmem:[%s1408 + $0x8] sm:$0xf] %v1344
        %1410 = vst [vmem:[%s1408 + $0xc] sm:$0xf] %v1345
        %1411 = vst [vmem:[%s1408 + $0x1c] sm:$0xf] %v1346
        %1412 = vst [vmem:[%s1408 + $0x20] sm:$0xf] %v1347
        %1413 = vst [vmem:[%s1408 + $0x30] sm:$0xf] %v1348
        %1414 = vst [vmem:[%s1408 + $0x34] sm:$0xf] %v1349
        %1415 = vst [vmem:[%s1408 + $0x44] sm:$0xf] %v1350
        %1416 = vst [vmem:[%s1408 + $0x48] sm:$0xf] %v1351
        %1417 = vst [vmem:[%s1408 + $0x58] sm:$0xf] %v1352
        %1418 = vst [vmem:[%s1408 + $0x5c] sm:$0xf] %v1353
        %1419 = vst [vmem:[%s1408 + $0x6c] sm:$0xf] %v1354
        %1420 = vst [vmem:[%s1408 + $0x70] sm:$0xf] %v1355
        %1421 = vst [vmem:[%s1408 + $0x80] sm:$0xf] %v1356
        %1422 = vst [vmem:[%s1408 + $0x84] sm:$0xf] %v1357
        %1423 = vst [vmem:[%s1408 + $0x94] sm:$0xf] %v1358
        %1424 = vst [vmem:[%s1408 + $0x98] sm:$0xf] %v1359
        %1425 = vst [vmem:[%s1408 + $0xa8] sm:$0xf] %v1360
        %1426 = vst [vmem:[%s1408 + $0xac] sm:$0xf] %v1361
        %1427 = vst [vmem:[%s1408 + $0xbc] sm:$0xf] %v1362
        %1428 = vst [vmem:[%s1408 + $0xc0] sm:$0xf] %v1363
        %1429 = vst [vmem:[%s1408 + $0xd0] sm:$0xf] %v1364
        %1430 = vst [vmem:[%s1408 + $0xd4] sm:$0xf] %v1365
        %1431 = vst [vmem:[%s1408 + $0xe4] sm:$0xf] %v1366
        %1432 = vst [vmem:[%s1408 + $0xe8] sm:$0xf] %v1367
        %1433 = vst [vmem:[%s1408 + $0xf8] sm:$0xf] %v1368
        %1434 = vst [vmem:[%s1408 + $0xfc] sm:$0xf] %v1369
        %1435 = vst [vmem:[%s1408 + $0x10c] sm:$0xf] %v1370
        %1436 = vst [vmem:[%s1408 + $0x110] sm:$0xf] %v1371
        %1437 = vst [vmem:[%s1408 + $0x120] sm:$0xf] %v1372
        %1438 = vst [vmem:[%s1408 + $0x124] sm:$0xf] %v1373
        %1439 = vst [vmem:[%s1408 + $0x134] sm:$0xf] %v1374
        %1440 = vst [vmem:[%s1408 + $0x138] sm:$0xf] %v1375
        %v1441 = vld [vmem:[#allocation2 + $0x4] sm:$0x8]
        %v1442 = vld [vmem:[#allocation2 + $0x8] sm:$0xf]
        %v1443 = vld [vmem:[#allocation2 + $0xc] sm:$0xf]
        %v1444 = vld [vmem:[#allocation2 + $0x18] sm:$0x8]
        %v1445 = vld [vmem:[#allocation2 + $0x1c] sm:$0xf]
        %v1446 = vld [vmem:[#allocation2 + $0x20] sm:$0xf]
        %v1447 = vld [vmem:[#allocation2 + $0x2c] sm:$0x8]
        %v1448 = vld [vmem:[#allocation2 + $0x30] sm:$0xf]
        %v1449 = vld [vmem:[#allocation2 + $0x34] sm:$0xf]
        %v1450 = vld [vmem:[#allocation2 + $0x40] sm:$0x8]
        %v1451 = vld [vmem:[#allocation2 + $0x44] sm:$0xf]
        %v1452 = vld [vmem:[#allocation2 + $0x48] sm:$0xf]
        %v1453 = vld [vmem:[#allocation2 + $0x54] sm:$0x8]
        %v1454 = vld [vmem:[#allocation2 + $0x58] sm:$0xf]
        %v1455 = vld [vmem:[#allocation2 + $0x5c] sm:$0xf]
        %v1456 = vld [vmem:[#allocation2 + $0x68] sm:$0x8]
        %v1457 = vld [vmem:[#allocation2 + $0x6c] sm:$0xf]
        %v1458 = vld [vmem:[#allocation2 + $0x70] sm:$0xf]
        %v1459 = vld [vmem:[#allocation2 + $0x7c] sm:$0x8]
        %v1460 = vld [vmem:[#allocation2 + $0x80] sm:$0xf]
        %v1461 = vld [vmem:[#allocation2 + $0x84] sm:$0xf]
        %v1462 = vld [vmem:[#allocation2 + $0x90] sm:$0x8]
        %v1463 = vld [vmem:[#allocation2 + $0x94] sm:$0xf]
        %v1464 = vld [vmem:[#allocation2 + $0x98] sm:$0xf]
        %v1465 = vld [vmem:[#allocation2 + $0xa4] sm:$0x8]
        %v1466 = vld [vmem:[#allocation2 + $0xa8] sm:$0xf]
        %v1467 = vld [vmem:[#allocation2 + $0xac] sm:$0xf]
        %v1468 = vld [vmem:[#allocation2 + $0xb8] sm:$0x8]
        %v1469 = vld [vmem:[#allocation2 + $0xbc] sm:$0xf]
        %v1470 = vld [vmem:[#allocation2 + $0xc0] sm:$0xf]
        %v1471 = vld [vmem:[#allocation2 + $0xcc] sm:$0x8]
        %v1472 = vld [vmem:[#allocation2 + $0xd0] sm:$0xf]
        %v1473 = vld [vmem:[#allocation2 + $0xd4] sm:$0xf]
        %v1474 = vld [vmem:[#allocation2 + $0xe0] sm:$0x8]
        %v1475 = vld [vmem:[#allocation2 + $0xe4] sm:$0xf]
        %v1476 = vld [vmem:[#allocation2 + $0xe8] sm:$0xf]
        %v1477 = vld [vmem:[#allocation2 + $0xf4] sm:$0x8]
        %v1478 = vld [vmem:[#allocation2 + $0xf8] sm:$0xf]
        %v1479 = vld [vmem:[#allocation2 + $0xfc] sm:$0xf]
        %v1480 = vld [vmem:[#allocation2 + $0x108] sm:$0x8]
        %v1481 = vld [vmem:[#allocation2 + $0x10c] sm:$0xf]
        %v1482 = vld [vmem:[#allocation2 + $0x110] sm:$0xf]
        %v1483 = vld [vmem:[#allocation2 + $0x11c] sm:$0x8]
        %v1484 = vld [vmem:[#allocation2 + $0x120] sm:$0xf]
        %v1485 = vld [vmem:[#allocation2 + $0x124] sm:$0xf]
        %v1486 = vld [vmem:[#allocation2 + $0x130] sm:$0x8]
        %v1487 = vld [vmem:[#allocation2 + $0x134] sm:$0xf]
        %v1488 = vld [vmem:[#allocation2 + $0x138] sm:$0xf]
        %v1489 = vld [vmem:[#allocation2 + $0x144] sm:$0x8]
        %v1490 = vld [vmem:[#allocation2 + $0x148] sm:$0xf]
        %v1491 = vld [vmem:[#allocation2 + $0x14c] sm:$0xf]
        %v1492 = vld [vmem:[#allocation2 + $0x158] sm:$0x8]
        %v1493 = vld [vmem:[#allocation2 + $0x15c] sm:$0xf]
        %v1494 = vld [vmem:[#allocation2 + $0x160] sm:$0xf]
        %v1495 = vld [vmem:[#allocation2 + $0x10] sm:$0x1]
        %v1496 = vld [vmem:[#allocation2 + $0x24] sm:$0x1]
        %v1497 = vld [vmem:[#allocation2 + $0x38] sm:$0x1]
        %v1498 = vld [vmem:[#allocation2 + $0x4c] sm:$0x1]
        %v1499 = vld [vmem:[#allocation2 + $0x60] sm:$0x1]
        %v1500 = vld [vmem:[#allocation2 + $0x74] sm:$0x1]
        %v1501 = vld [vmem:[#allocation2 + $0x88] sm:$0x1]
        %v1502 = vld [vmem:[#allocation2 + $0x9c] sm:$0x1]
        %v1503 = vld [vmem:[#allocation2 + $0xb0] sm:$0x1]
        %v1504 = vld [vmem:[#allocation2 + $0xc4] sm:$0x1]
        %v1505 = vld [vmem:[#allocation2 + $0xd8] sm:$0x1]
        %v1506 = vld [vmem:[#allocation2 + $0xec] sm:$0x1]
        %v1507 = vld [vmem:[#allocation2 + $0x100] sm:$0x1]
        %v1508 = vld [vmem:[#allocation2 + $0x114] sm:$0x1]
        %v1509 = vld [vmem:[#allocation2 + $0x128] sm:$0x1]
        %v1510 = vld [vmem:[#allocation2 + $0x13c] sm:$0x1]
        %v1511 = vld [vmem:[#allocation2 + $0x150] sm:$0x1]
        %v1512 = vld [vmem:[#allocation2 + $0x164] sm:$0x1]
        %v1561 = vunpack.c.l.b16 %v1441
        %v1562 = vunpack.c.l.b16 %v1442
        %v1563 = vunpack.c.l.b16 %v1443
        %v1564 = vunpack.c.l.b16 %v1444
        %v1565 = vunpack.c.l.b16 %v1445
        %v1566 = vunpack.c.l.b16 %v1446
        %v1567 = vunpack.c.l.b16 %v1447
        %v1568 = vunpack.c.l.b16 %v1448
        %v1569 = vunpack.c.l.b16 %v1449
        %v1570 = vunpack.c.l.b16 %v1450
        %v1571 = vunpack.c.l.b16 %v1451
        %v1572 = vunpack.c.l.b16 %v1452
        %v1573 = vunpack.c.l.b16 %v1453
        %v1574 = vunpack.c.l.b16 %v1454
        %v1575 = vunpack.c.l.b16 %v1455
        %v1576 = vunpack.c.l.b16 %v1456
        %v1577 = vunpack.c.l.b16 %v1457
        %v1578 = vunpack.c.l.b16 %v1458
        %v1579 = vunpack.c.l.b16 %v1459
        %v1580 = vunpack.c.l.b16 %v1460
        %v1581 = vunpack.c.l.b16 %v1461
        %v1582 = vunpack.c.l.b16 %v1462
        %v1583 = vunpack.c.l.b16 %v1463
        %v1584 = vunpack.c.l.b16 %v1464
        %v1585 = vunpack.c.l.b16 %v1465
        %v1586 = vunpack.c.l.b16 %v1466
        %v1587 = vunpack.c.l.b16 %v1467
        %v1588 = vunpack.c.l.b16 %v1468
        %v1589 = vunpack.c.l.b16 %v1469
        %v1590 = vunpack.c.l.b16 %v1470
        %v1591 = vunpack.c.l.b16 %v1471
        %v1592 = vunpack.c.l.b16 %v1472
        %v1593 = vunpack.c.l.b16 %v1473
        %v1594 = vunpack.c.l.b16 %v1474
        %v1595 = vunpack.c.l.b16 %v1475
        %v1596 = vunpack.c.l.b16 %v1476
        %v1597 = vunpack.c.l.b16 %v1477
        %v1598 = vunpack.c.l.b16 %v1478
        %v1599 = vunpack.c.l.b16 %v1479
        %v1600 = vunpack.c.l.b16 %v1480
        %v1601 = vunpack.c.l.b16 %v1481
        %v1602 = vunpack.c.l.b16 %v1482
        %v1603 = vunpack.c.l.b16 %v1483
        %v1604 = vunpack.c.l.b16 %v1484
        %v1605 = vunpack.c.l.b16 %v1485
        %v1606 = vunpack.c.l.b16 %v1486
        %v1607 = vunpack.c.l.b16 %v1487
        %v1608 = vunpack.c.l.b16 %v1488
        %v1609 = vpack.c.b16 %v1562, %v1561
        %v1610 = vpack.c.b16 %v1563, %v1563
        %v1611 = vpack.c.b16 %v1565, %v1564
        %v1612 = vpack.c.b16 %v1566, %v1566
        %v1613 = vpack.c.b16 %v1568, %v1567
        %v1614 = vpack.c.b16 %v1569, %v1569
        %v1615 = vpack.c.b16 %v1571, %v1570
        %v1616 = vpack.c.b16 %v1572, %v1572
        %v1617 = vpack.c.b16 %v1574, %v1573
        %v1618 = vpack.c.b16 %v1575, %v1575
        %v1619 = vpack.c.b16 %v1577, %v1576
        %v1620 = vpack.c.b16 %v1578, %v1578
        %v1621 = vpack.c.b16 %v1580, %v1579
        %v1622 = vpack.c.b16 %v1581, %v1581
        %v1623 = vpack.c.b16 %v1583, %v1582
        %v1624 = vpack.c.b16 %v1584, %v1584
        %v1625 = vpack.c.b16 %v1586, %v1585
        %v1626 = vpack.c.b16 %v1587, %v1587
        %v1627 = vpack.c.b16 %v1589, %v1588
        %v1628 = vpack.c.b16 %v1590, %v1590
        %v1629 = vpack.c.b16 %v1592, %v1591
        %v1630 = vpack.c.b16 %v1593, %v1593
        %v1631 = vpack.c.b16 %v1595, %v1594
        %v1632 = vpack.c.b16 %v1596, %v1596
        %v1633 = vpack.c.b16 %v1598, %v1597
        %v1634 = vpack.c.b16 %v1599, %v1599
        %v1635 = vpack.c.b16 %v1601, %v1600
        %v1636 = vpack.c.b16 %v1602, %v1602
        %v1637 = vpack.c.b16 %v1604, %v1603
        %v1638 = vpack.c.b16 %v1605, %v1605
        %v1639 = vpack.c.b16 %v1607, %v1606
        %v1640 = vpack.c.b16 %v1608, %v1608
        %v1641 = vpack.c.b16 %v1563, %v1562
        %v1642 = vpack.c.b16 %v1566, %v1565
        %v1643 = vpack.c.b16 %v1569, %v1568
        %v1644 = vpack.c.b16 %v1572, %v1571
        %v1645 = vpack.c.b16 %v1575, %v1574
        %v1646 = vpack.c.b16 %v1578, %v1577
        %v1647 = vpack.c.b16 %v1581, %v1580
        %v1648 = vpack.c.b16 %v1584, %v1583
        %v1649 = vpack.c.b16 %v1587, %v1586
        %v1650 = vpack.c.b16 %v1590, %v1589
        %v1651 = vpack.c.b16 %v1593, %v1592
        %v1652 = vpack.c.b16 %v1596, %v1595
        %v1653 = vpack.c.b16 %v1599, %v1598
        %v1654 = vpack.c.b16 %v1602, %v1601
        %v1655 = vpack.c.b16 %v1605, %v1604
        %v1656 = vpack.c.b16 %v1608, %v1607
        %v1658 = vshrl.u32 %v1641, 16
        %v1660 = vrot.slane %v1658, 4
        %v1661 = vshll.u32 %v1641, 16
        %v1663 = vrot.slane %v1661, 5
        %v1664 = vor.u32 %v1660, %v1663
        %v1666 = vshrl.u32 %v1642, 16
        %v1668 = vrot.slane %v1666, 4
        %v1669 = vshll.u32 %v1642, 16
        %v1671 = vrot.slane %v1669, 5
        %v1672 = vor.u32 %v1668, %v1671
        %v1674 = vshrl.u32 %v1643, 16
        %v1676 = vrot.slane %v1674, 4
        %v1677 = vshll.u32 %v1643, 16
        %v1679 = vrot.slane %v1677, 5
        %v1680 = vor.u32 %v1676, %v1679
        %v1682 = vshrl.u32 %v1644, 16
        %v1684 = vrot.slane %v1682, 4
        %v1685 = vshll.u32 %v1644, 16
        %v1687 = vrot.slane %v1685, 5
        %v1688 = vor.u32 %v1684, %v1687
        %v1690 = vshrl.u32 %v1645, 16
        %v1692 = vrot.slane %v1690, 4
        %v1693 = vshll.u32 %v1645, 16
        %v1695 = vrot.slane %v1693, 5
        %v1696 = vor.u32 %v1692, %v1695
        %v1698 = vshrl.u32 %v1646, 16
        %v1700 = vrot.slane %v1698, 4
        %v1701 = vshll.u32 %v1646, 16
        %v1703 = vrot.slane %v1701, 5
        %v1704 = vor.u32 %v1700, %v1703
        %v1706 = vshrl.u32 %v1647, 16
        %v1708 = vrot.slane %v1706, 4
        %v1709 = vshll.u32 %v1647, 16
        %v1711 = vrot.slane %v1709, 5
        %v1712 = vor.u32 %v1708, %v1711
        %v1714 = vshrl.u32 %v1648, 16
        %v1716 = vrot.slane %v1714, 4
        %v1717 = vshll.u32 %v1648, 16
        %v1719 = vrot.slane %v1717, 5
        %v1720 = vor.u32 %v1716, %v1719
        %v1722 = vshrl.u32 %v1649, 16
        %v1724 = vrot.slane %v1722, 4
        %v1725 = vshll.u32 %v1649, 16
        %v1727 = vrot.slane %v1725, 5
        %v1728 = vor.u32 %v1724, %v1727
        %v1730 = vshrl.u32 %v1650, 16
        %v1732 = vrot.slane %v1730, 4
        %v1733 = vshll.u32 %v1650, 16
        %v1735 = vrot.slane %v1733, 5
        %v1736 = vor.u32 %v1732, %v1735
        %v1738 = vshrl.u32 %v1651, 16
        %v1740 = vrot.slane %v1738, 4
        %v1741 = vshll.u32 %v1651, 16
        %v1743 = vrot.slane %v1741, 5
        %v1744 = vor.u32 %v1740, %v1743
        %v1746 = vshrl.u32 %v1652, 16
        %v1748 = vrot.slane %v1746, 4
        %v1749 = vshll.u32 %v1652, 16
        %v1751 = vrot.slane %v1749, 5
        %v1752 = vor.u32 %v1748, %v1751
        %v1754 = vshrl.u32 %v1653, 16
        %v1756 = vrot.slane %v1754, 4
        %v1757 = vshll.u32 %v1653, 16
        %v1759 = vrot.slane %v1757, 5
        %v1760 = vor.u32 %v1756, %v1759
        %v1762 = vshrl.u32 %v1654, 16
        %v1764 = vrot.slane %v1762, 4
        %v1765 = vshll.u32 %v1654, 16
        %v1767 = vrot.slane %v1765, 5
        %v1768 = vor.u32 %v1764, %v1767
        %v1770 = vshrl.u32 %v1655, 16
        %v1772 = vrot.slane %v1770, 4
        %v1773 = vshll.u32 %v1655, 16
        %v1775 = vrot.slane %v1773, 5
        %v1776 = vor.u32 %v1772, %v1775
        %v1778 = vshrl.u32 %v1656, 16
        %v1780 = vrot.slane %v1778, 4
        %v1781 = vshll.u32 %v1656, 16
        %v1783 = vrot.slane %v1781, 5
        %v1784 = vor.u32 %v1780, %v1783
        %v1801 = vunpack.c.l.b16 %v1495
        %v1802 = vunpack.c.l.b16 %v1496
        %v1803 = vunpack.c.l.b16 %v1497
        %v1804 = vunpack.c.l.b16 %v1498
        %v1805 = vunpack.c.l.b16 %v1499
        %v1806 = vunpack.c.l.b16 %v1500
        %v1807 = vunpack.c.l.b16 %v1501
        %v1808 = vunpack.c.l.b16 %v1502
        %v1809 = vunpack.c.l.b16 %v1503
        %v1810 = vunpack.c.l.b16 %v1504
        %v1811 = vunpack.c.l.b16 %v1505
        %v1812 = vunpack.c.l.b16 %v1506
        %v1813 = vunpack.c.l.b16 %v1507
        %v1814 = vunpack.c.l.b16 %v1508
        %v1815 = vunpack.c.l.b16 %v1509
        %v1816 = vunpack.c.l.b16 %v1510
        %v1817 = vpack.c.b16 %v1801, %v1801
        %v1818 = vpack.c.b16 %v1802, %v1802
        %v1819 = vpack.c.b16 %v1803, %v1803
        %v1820 = vpack.c.b16 %v1804, %v1804
        %v1821 = vpack.c.b16 %v1805, %v1805
        %v1822 = vpack.c.b16 %v1806, %v1806
        %v1823 = vpack.c.b16 %v1807, %v1807
        %v1824 = vpack.c.b16 %v1808, %v1808
        %v1825 = vpack.c.b16 %v1809, %v1809
        %v1826 = vpack.c.b16 %v1810, %v1810
        %v1827 = vpack.c.b16 %v1811, %v1811
        %v1828 = vpack.c.b16 %v1812, %v1812
        %v1829 = vpack.c.b16 %v1813, %v1813
        %v1830 = vpack.c.b16 %v1814, %v1814
        %v1831 = vpack.c.b16 %v1815, %v1815
        %v1832 = vpack.c.b16 %v1816, %v1816
        %vm1833 = vcmask 1042432
        %v1834 = vrot.slane %v1641, 5
        %v1835 = vrot.slane %v1817, 5
        %v1836 = vsel %vm1833, %v1834, %v1835
        %v1837 = vrot.slane %v1642, 5
        %v1838 = vrot.slane %v1818, 5
        %v1839 = vsel %vm1833, %v1837, %v1838
        %v1840 = vrot.slane %v1643, 5
        %v1841 = vrot.slane %v1819, 5
        %v1842 = vsel %vm1833, %v1840, %v1841
        %v1843 = vrot.slane %v1644, 5
        %v1844 = vrot.slane %v1820, 5
        %v1845 = vsel %vm1833, %v1843, %v1844
        %v1846 = vrot.slane %v1645, 5
        %v1847 = vrot.slane %v1821, 5
        %v1848 = vsel %vm1833, %v1846, %v1847
        %v1849 = vrot.slane %v1646, 5
        %v1850 = vrot.slane %v1822, 5
        %v1851 = vsel %vm1833, %v1849, %v1850
        %v1852 = vrot.slane %v1647, 5
        %v1853 = vrot.slane %v1823, 5
        %v1854 = vsel %vm1833, %v1852, %v1853
        %v1855 = vrot.slane %v1648, 5
        %v1856 = vrot.slane %v1824, 5
        %v1857 = vsel %vm1833, %v1855, %v1856
        %v1858 = vrot.slane %v1649, 5
        %v1859 = vrot.slane %v1825, 5
        %v1860 = vsel %vm1833, %v1858, %v1859
        %v1861 = vrot.slane %v1650, 5
        %v1862 = vrot.slane %v1826, 5
        %v1863 = vsel %vm1833, %v1861, %v1862
        %v1864 = vrot.slane %v1651, 5
        %v1865 = vrot.slane %v1827, 5
        %v1866 = vsel %vm1833, %v1864, %v1865
        %v1867 = vrot.slane %v1652, 5
        %v1868 = vrot.slane %v1828, 5
        %v1869 = vsel %vm1833, %v1867, %v1868
        %v1870 = vrot.slane %v1653, 5
        %v1871 = vrot.slane %v1829, 5
        %v1872 = vsel %vm1833, %v1870, %v1871
        %v1873 = vrot.slane %v1654, 5
        %v1874 = vrot.slane %v1830, 5
        %v1875 = vsel %vm1833, %v1873, %v1874
        %v1876 = vrot.slane %v1655, 5
        %v1877 = vrot.slane %v1831, 5
        %v1878 = vsel %vm1833, %v1876, %v1877
        %v1879 = vrot.slane %v1656, 5
        %v1880 = vrot.slane %v1832, 5
        %v1881 = vsel %vm1833, %v1879, %v1880
        %v1885 = vunpack.c.l.b16 %v1489
        %v1886 = vunpack.c.l.b16 %v1490
        %v1887 = vunpack.c.l.b16 %v1491
        %v1888 = vpack.c.b16 %v1886, %v1885
        %v1889 = vpack.c.b16 %v1887, %v1887
        %v1890 = vpack.c.b16 %v1887, %v1886
        %v1892 = vshrl.u32 %v1890, 16
        %v1894 = vrot.slane %v1892, 4
        %v1895 = vshll.u32 %v1890, 16
        %v1897 = vrot.slane %v1895, 5
        %v1898 = vor.u32 %v1894, %v1897
        %v1900 = vunpack.c.l.b16 %v1511
        %v1901 = vpack.c.b16 %v1900, %v1900
        %v1902 = vrot.slane %v1890, 5
        %v1903 = vrot.slane %v1901, 5
        %v1904 = vsel %vm1833, %v1902, %v1903
        %v1908 = vunpack.c.l.b16 %v1492
        %v1909 = vunpack.c.l.b16 %v1493
        %v1910 = vunpack.c.l.b16 %v1494
        %v1911 = vpack.c.b16 %v1909, %v1908
        %v1912 = vpack.c.b16 %v1910, %v1910
        %v1913 = vpack.c.b16 %v1910, %v1909
        %v1915 = vshrl.u32 %v1913, 16
        %v1917 = vrot.slane %v1915, 4
        %v1918 = vshll.u32 %v1913, 16
        %v1920 = vrot.slane %v1918, 5
        %v1921 = vor.u32 %v1917, %v1920
        %v1923 = vunpack.c.l.b16 %v1512
        %v1924 = vpack.c.b16 %v1923, %v1923
        %v1925 = vrot.slane %v1913, 5
        %v1926 = vrot.slane %v1924, 5
        %v1927 = vsel %vm1833, %v1925, %v1926
        %vm1928 = vsmask.f32 4352
        %v1930 = vshrl.u32 %v1609, 16
        %v1932 = vrot.slane %v1930, 3
        %v1933 = vshll.u32 %v1609, 16
        %v1935 = vrot.slane %v1933, 4
        %v1936 = vor.u32 %v1932, %v1935
        %v1938 = vshrl.u32 %v1610, 16
        %v1940 = vrot.slane %v1938, 3
        %v1941 = vshll.u32 %v1610, 16
        %v1943 = vrot.slane %v1941, 4
        %v1944 = vor.u32 %v1940, %v1943
        %v1945 = vsel %vm1928, %v1936, %v1944
        %v1947 = vshrl.u32 %v1664, 16
        %v1949 = vrot.slane %v1947, 3
        %v1950 = vshll.u32 %v1664, 16
        %v1952 = vrot.slane %v1950, 4
        %v1953 = vor.u32 %v1949, %v1952
        %v1954 = vsel %vm1928, %v1953, %v1953
        %v1956 = vshrl.u32 %v1834, 16
        %v1958 = vrot.slane %v1956, 3
        %v1959 = vshll.u32 %v1834, 16
        %v1961 = vrot.slane %v1959, 4
        %v1962 = vor.u32 %v1958, %v1961
        %v1964 = vshrl.u32 %v1836, 16
        %v1966 = vrot.slane %v1964, 3
        %v1967 = vshll.u32 %v1836, 16
        %v1969 = vrot.slane %v1967, 4
        %v1970 = vor.u32 %v1966, %v1969
        %v1971 = vsel %vm1928, %v1962, %v1970
        %v1973 = vshrl.u32 %v1611, 16
        %v1975 = vrot.slane %v1973, 3
        %v1976 = vshll.u32 %v1611, 16
        %v1978 = vrot.slane %v1976, 4
        %v1979 = vor.u32 %v1975, %v1978
        %v1981 = vshrl.u32 %v1612, 16
        %v1983 = vrot.slane %v1981, 3
        %v1984 = vshll.u32 %v1612, 16
        %v1986 = vrot.slane %v1984, 4
        %v1987 = vor.u32 %v1983, %v1986
        %v1988 = vsel %vm1928, %v1979, %v1987
        %v1990 = vshrl.u32 %v1672, 16
        %v1992 = vrot.slane %v1990, 3
        %v1993 = vshll.u32 %v1672, 16
        %v1995 = vrot.slane %v1993, 4
        %v1996 = vor.u32 %v1992, %v1995
        %v1997 = vsel %vm1928, %v1996, %v1996
        %v1999 = vshrl.u32 %v1837, 16
        %v2001 = vrot.slane %v1999, 3
        %v2002 = vshll.u32 %v1837, 16
        %v2004 = vrot.slane %v2002, 4
        %v2005 = vor.u32 %v2001, %v2004
        %v2007 = vshrl.u32 %v1839, 16
        %v2009 = vrot.slane %v2007, 3
        %v2010 = vshll.u32 %v1839, 16
        %v2012 = vrot.slane %v2010, 4
        %v2013 = vor.u32 %v2009, %v2012
        %v2014 = vsel %vm1928, %v2005, %v2013
        %v2016 = vshrl.u32 %v1613, 16
        %v2018 = vrot.slane %v2016, 3
        %v2019 = vshll.u32 %v1613, 16
        %v2021 = vrot.slane %v2019, 4
        %v2022 = vor.u32 %v2018, %v2021
        %v2024 = vshrl.u32 %v1614, 16
        %v2026 = vrot.slane %v2024, 3
        %v2027 = vshll.u32 %v1614, 16
        %v2029 = vrot.slane %v2027, 4
        %v2030 = vor.u32 %v2026, %v2029
        %v2031 = vsel %vm1928, %v2022, %v2030
        %v2033 = vshrl.u32 %v1680, 16
        %v2035 = vrot.slane %v2033, 3
        %v2036 = vshll.u32 %v1680, 16
        %v2038 = vrot.slane %v2036, 4
        %v2039 = vor.u32 %v2035, %v2038
        %v2040 = vsel %vm1928, %v2039, %v2039
        %v2042 = vshrl.u32 %v1840, 16
        %v2044 = vrot.slane %v2042, 3
        %v2045 = vshll.u32 %v1840, 16
        %v2047 = vrot.slane %v2045, 4
        %v2048 = vor.u32 %v2044, %v2047
        %v2050 = vshrl.u32 %v1842, 16
        %v2052 = vrot.slane %v2050, 3
        %v2053 = vshll.u32 %v1842, 16
        %v2055 = vrot.slane %v2053, 4
        %v2056 = vor.u32 %v2052, %v2055
        %v2057 = vsel %vm1928, %v2048, %v2056
        %v2059 = vshrl.u32 %v1615, 16
        %v2061 = vrot.slane %v2059, 3
        %v2062 = vshll.u32 %v1615, 16
        %v2064 = vrot.slane %v2062, 4
        %v2065 = vor.u32 %v2061, %v2064
        %v2067 = vshrl.u32 %v1616, 16
        %v2069 = vrot.slane %v2067, 3
        %v2070 = vshll.u32 %v1616, 16
        %v2072 = vrot.slane %v2070, 4
        %v2073 = vor.u32 %v2069, %v2072
        %v2074 = vsel %vm1928, %v2065, %v2073
        %v2076 = vshrl.u32 %v1688, 16
        %v2078 = vrot.slane %v2076, 3
        %v2079 = vshll.u32 %v1688, 16
        %v2081 = vrot.slane %v2079, 4
        %v2082 = vor.u32 %v2078, %v2081
        %v2083 = vsel %vm1928, %v2082, %v2082
        %v2085 = vshrl.u32 %v1843, 16
        %v2087 = vrot.slane %v2085, 3
        %v2088 = vshll.u32 %v1843, 16
        %v2090 = vrot.slane %v2088, 4
        %v2091 = vor.u32 %v2087, %v2090
        %v2093 = vshrl.u32 %v1845, 16
        %v2095 = vrot.slane %v2093, 3
        %v2096 = vshll.u32 %v1845, 16
        %v2098 = vrot.slane %v2096, 4
        %v2099 = vor.u32 %v2095, %v2098
        %v2100 = vsel %vm1928, %v2091, %v2099
        %v2102 = vshrl.u32 %v1617, 16
        %v2104 = vrot.slane %v2102, 3
        %v2105 = vshll.u32 %v1617, 16
        %v2107 = vrot.slane %v2105, 4
        %v2108 = vor.u32 %v2104, %v2107
        %v2110 = vshrl.u32 %v1618, 16
        %v2112 = vrot.slane %v2110, 3
        %v2113 = vshll.u32 %v1618, 16
        %v2115 = vrot.slane %v2113, 4
        %v2116 = vor.u32 %v2112, %v2115
        %v2117 = vsel %vm1928, %v2108, %v2116
        %v2119 = vshrl.u32 %v1696, 16
        %v2121 = vrot.slane %v2119, 3
        %v2122 = vshll.u32 %v1696, 16
        %v2124 = vrot.slane %v2122, 4
        %v2125 = vor.u32 %v2121, %v2124
        %v2126 = vsel %vm1928, %v2125, %v2125
        %v2128 = vshrl.u32 %v1846, 16
        %v2130 = vrot.slane %v2128, 3
        %v2131 = vshll.u32 %v1846, 16
        %v2133 = vrot.slane %v2131, 4
        %v2134 = vor.u32 %v2130, %v2133
        %v2136 = vshrl.u32 %v1848, 16
        %v2138 = vrot.slane %v2136, 3
        %v2139 = vshll.u32 %v1848, 16
        %v2141 = vrot.slane %v2139, 4
        %v2142 = vor.u32 %v2138, %v2141
        %v2143 = vsel %vm1928, %v2134, %v2142
        %v2145 = vshrl.u32 %v1619, 16
        %v2147 = vrot.slane %v2145, 3
        %v2148 = vshll.u32 %v1619, 16
        %v2150 = vrot.slane %v2148, 4
        %v2151 = vor.u32 %v2147, %v2150
        %v2153 = vshrl.u32 %v1620, 16
        %v2155 = vrot.slane %v2153, 3
        %v2156 = vshll.u32 %v1620, 16
        %v2158 = vrot.slane %v2156, 4
        %v2159 = vor.u32 %v2155, %v2158
        %v2160 = vsel %vm1928, %v2151, %v2159
        %v2162 = vshrl.u32 %v1704, 16
        %v2164 = vrot.slane %v2162, 3
        %v2165 = vshll.u32 %v1704, 16
        %v2167 = vrot.slane %v2165, 4
        %v2168 = vor.u32 %v2164, %v2167
        %v2169 = vsel %vm1928, %v2168, %v2168
        %v2171 = vshrl.u32 %v1849, 16
        %v2173 = vrot.slane %v2171, 3
        %v2174 = vshll.u32 %v1849, 16
        %v2176 = vrot.slane %v2174, 4
        %v2177 = vor.u32 %v2173, %v2176
        %v2179 = vshrl.u32 %v1851, 16
        %v2181 = vrot.slane %v2179, 3
        %v2182 = vshll.u32 %v1851, 16
        %v2184 = vrot.slane %v2182, 4
        %v2185 = vor.u32 %v2181, %v2184
        %v2186 = vsel %vm1928, %v2177, %v2185
        %v2188 = vshrl.u32 %v1621, 16
        %v2190 = vrot.slane %v2188, 3
        %v2191 = vshll.u32 %v1621, 16
        %v2193 = vrot.slane %v2191, 4
        %v2194 = vor.u32 %v2190, %v2193
        %v2196 = vshrl.u32 %v1622, 16
        %v2198 = vrot.slane %v2196, 3
        %v2199 = vshll.u32 %v1622, 16
        %v2201 = vrot.slane %v2199, 4
        %v2202 = vor.u32 %v2198, %v2201
        %v2203 = vsel %vm1928, %v2194, %v2202
        %v2205 = vshrl.u32 %v1712, 16
        %v2207 = vrot.slane %v2205, 3
        %v2208 = vshll.u32 %v1712, 16
        %v2210 = vrot.slane %v2208, 4
        %v2211 = vor.u32 %v2207, %v2210
        %v2212 = vsel %vm1928, %v2211, %v2211
        %v2214 = vshrl.u32 %v1852, 16
        %v2216 = vrot.slane %v2214, 3
        %v2217 = vshll.u32 %v1852, 16
        %v2219 = vrot.slane %v2217, 4
        %v2220 = vor.u32 %v2216, %v2219
        %v2222 = vshrl.u32 %v1854, 16
        %v2224 = vrot.slane %v2222, 3
        %v2225 = vshll.u32 %v1854, 16
        %v2227 = vrot.slane %v2225, 4
        %v2228 = vor.u32 %v2224, %v2227
        %v2229 = vsel %vm1928, %v2220, %v2228
        %v2231 = vshrl.u32 %v1623, 16
        %v2233 = vrot.slane %v2231, 3
        %v2234 = vshll.u32 %v1623, 16
        %v2236 = vrot.slane %v2234, 4
        %v2237 = vor.u32 %v2233, %v2236
        %v2239 = vshrl.u32 %v1624, 16
        %v2241 = vrot.slane %v2239, 3
        %v2242 = vshll.u32 %v1624, 16
        %v2244 = vrot.slane %v2242, 4
        %v2245 = vor.u32 %v2241, %v2244
        %v2246 = vsel %vm1928, %v2237, %v2245
        %v2248 = vshrl.u32 %v1720, 16
        %v2250 = vrot.slane %v2248, 3
        %v2251 = vshll.u32 %v1720, 16
        %v2253 = vrot.slane %v2251, 4
        %v2254 = vor.u32 %v2250, %v2253
        %v2255 = vsel %vm1928, %v2254, %v2254
        %v2257 = vshrl.u32 %v1855, 16
        %v2259 = vrot.slane %v2257, 3
        %v2260 = vshll.u32 %v1855, 16
        %v2262 = vrot.slane %v2260, 4
        %v2263 = vor.u32 %v2259, %v2262
        %v2265 = vshrl.u32 %v1857, 16
        %v2267 = vrot.slane %v2265, 3
        %v2268 = vshll.u32 %v1857, 16
        %v2270 = vrot.slane %v2268, 4
        %v2271 = vor.u32 %v2267, %v2270
        %v2272 = vsel %vm1928, %v2263, %v2271
        %v2274 = vshrl.u32 %v1625, 16
        %v2276 = vrot.slane %v2274, 3
        %v2277 = vshll.u32 %v1625, 16
        %v2279 = vrot.slane %v2277, 4
        %v2280 = vor.u32 %v2276, %v2279
        %v2282 = vshrl.u32 %v1626, 16
        %v2284 = vrot.slane %v2282, 3
        %v2285 = vshll.u32 %v1626, 16
        %v2287 = vrot.slane %v2285, 4
        %v2288 = vor.u32 %v2284, %v2287
        %v2289 = vsel %vm1928, %v2280, %v2288
        %v2291 = vshrl.u32 %v1728, 16
        %v2293 = vrot.slane %v2291, 3
        %v2294 = vshll.u32 %v1728, 16
        %v2296 = vrot.slane %v2294, 4
        %v2297 = vor.u32 %v2293, %v2296
        %v2298 = vsel %vm1928, %v2297, %v2297
        %v2300 = vshrl.u32 %v1858, 16
        %v2302 = vrot.slane %v2300, 3
        %v2303 = vshll.u32 %v1858, 16
        %v2305 = vrot.slane %v2303, 4
        %v2306 = vor.u32 %v2302, %v2305
        %v2308 = vshrl.u32 %v1860, 16
        %v2310 = vrot.slane %v2308, 3
        %v2311 = vshll.u32 %v1860, 16
        %v2313 = vrot.slane %v2311, 4
        %v2314 = vor.u32 %v2310, %v2313
        %v2315 = vsel %vm1928, %v2306, %v2314
        %v2317 = vshrl.u32 %v1627, 16
        %v2319 = vrot.slane %v2317, 3
        %v2320 = vshll.u32 %v1627, 16
        %v2322 = vrot.slane %v2320, 4
        %v2323 = vor.u32 %v2319, %v2322
        %v2325 = vshrl.u32 %v1628, 16
        %v2327 = vrot.slane %v2325, 3
        %v2328 = vshll.u32 %v1628, 16
        %v2330 = vrot.slane %v2328, 4
        %v2331 = vor.u32 %v2327, %v2330
        %v2332 = vsel %vm1928, %v2323, %v2331
        %v2334 = vshrl.u32 %v1736, 16
        %v2336 = vrot.slane %v2334, 3
        %v2337 = vshll.u32 %v1736, 16
        %v2339 = vrot.slane %v2337, 4
        %v2340 = vor.u32 %v2336, %v2339
        %v2341 = vsel %vm1928, %v2340, %v2340
        %v2343 = vshrl.u32 %v1861, 16
        %v2345 = vrot.slane %v2343, 3
        %v2346 = vshll.u32 %v1861, 16
        %v2348 = vrot.slane %v2346, 4
        %v2349 = vor.u32 %v2345, %v2348
        %v2351 = vshrl.u32 %v1863, 16
        %v2353 = vrot.slane %v2351, 3
        %v2354 = vshll.u32 %v1863, 16
        %v2356 = vrot.slane %v2354, 4
        %v2357 = vor.u32 %v2353, %v2356
        %v2358 = vsel %vm1928, %v2349, %v2357
        %v2360 = vshrl.u32 %v1629, 16
        %v2362 = vrot.slane %v2360, 3
        %v2363 = vshll.u32 %v1629, 16
        %v2365 = vrot.slane %v2363, 4
        %v2366 = vor.u32 %v2362, %v2365
        %v2368 = vshrl.u32 %v1630, 16
        %v2370 = vrot.slane %v2368, 3
        %v2371 = vshll.u32 %v1630, 16
        %v2373 = vrot.slane %v2371, 4
        %v2374 = vor.u32 %v2370, %v2373
        %v2375 = vsel %vm1928, %v2366, %v2374
        %v2377 = vshrl.u32 %v1744, 16
        %v2379 = vrot.slane %v2377, 3
        %v2380 = vshll.u32 %v1744, 16
        %v2382 = vrot.slane %v2380, 4
        %v2383 = vor.u32 %v2379, %v2382
        %v2384 = vsel %vm1928, %v2383, %v2383
        %v2386 = vshrl.u32 %v1864, 16
        %v2388 = vrot.slane %v2386, 3
        %v2389 = vshll.u32 %v1864, 16
        %v2391 = vrot.slane %v2389, 4
        %v2392 = vor.u32 %v2388, %v2391
        %v2394 = vshrl.u32 %v1866, 16
        %v2396 = vrot.slane %v2394, 3
        %v2397 = vshll.u32 %v1866, 16
        %v2399 = vrot.slane %v2397, 4
        %v2400 = vor.u32 %v2396, %v2399
        %v2401 = vsel %vm1928, %v2392, %v2400
        %v2403 = vshrl.u32 %v1631, 16
        %v2405 = vrot.slane %v2403, 3
        %v2406 = vshll.u32 %v1631, 16
        %v2408 = vrot.slane %v2406, 4
        %v2409 = vor.u32 %v2405, %v2408
        %v2411 = vshrl.u32 %v1632, 16
        %v2413 = vrot.slane %v2411, 3
        %v2414 = vshll.u32 %v1632, 16
        %v2416 = vrot.slane %v2414, 4
        %v2417 = vor.u32 %v2413, %v2416
        %v2418 = vsel %vm1928, %v2409, %v2417
        %v2420 = vshrl.u32 %v1752, 16
        %v2422 = vrot.slane %v2420, 3
        %v2423 = vshll.u32 %v1752, 16
        %v2425 = vrot.slane %v2423, 4
        %v2426 = vor.u32 %v2422, %v2425
        %v2427 = vsel %vm1928, %v2426, %v2426
        %v2429 = vshrl.u32 %v1867, 16
        %v2431 = vrot.slane %v2429, 3
        %v2432 = vshll.u32 %v1867, 16
        %v2434 = vrot.slane %v2432, 4
        %v2435 = vor.u32 %v2431, %v2434
        %v2437 = vshrl.u32 %v1869, 16
        %v2439 = vrot.slane %v2437, 3
        %v2440 = vshll.u32 %v1869, 16
        %v2442 = vrot.slane %v2440, 4
        %v2443 = vor.u32 %v2439, %v2442
        %v2444 = vsel %vm1928, %v2435, %v2443
        %v2446 = vshrl.u32 %v1633, 16
        %v2448 = vrot.slane %v2446, 3
        %v2449 = vshll.u32 %v1633, 16
        %v2451 = vrot.slane %v2449, 4
        %v2452 = vor.u32 %v2448, %v2451
        %v2454 = vshrl.u32 %v1634, 16
        %v2456 = vrot.slane %v2454, 3
        %v2457 = vshll.u32 %v1634, 16
        %v2459 = vrot.slane %v2457, 4
        %v2460 = vor.u32 %v2456, %v2459
        %v2461 = vsel %vm1928, %v2452, %v2460
        %v2463 = vshrl.u32 %v1760, 16
        %v2465 = vrot.slane %v2463, 3
        %v2466 = vshll.u32 %v1760, 16
        %v2468 = vrot.slane %v2466, 4
        %v2469 = vor.u32 %v2465, %v2468
        %v2470 = vsel %vm1928, %v2469, %v2469
        %v2472 = vshrl.u32 %v1870, 16
        %v2474 = vrot.slane %v2472, 3
        %v2475 = vshll.u32 %v1870, 16
        %v2477 = vrot.slane %v2475, 4
        %v2478 = vor.u32 %v2474, %v2477
        %v2480 = vshrl.u32 %v1872, 16
        %v2482 = vrot.slane %v2480, 3
        %v2483 = vshll.u32 %v1872, 16
        %v2485 = vrot.slane %v2483, 4
        %v2486 = vor.u32 %v2482, %v2485
        %v2487 = vsel %vm1928, %v2478, %v2486
        %v2489 = vshrl.u32 %v1635, 16
        %v2491 = vrot.slane %v2489, 3
        %v2492 = vshll.u32 %v1635, 16
        %v2494 = vrot.slane %v2492, 4
        %v2495 = vor.u32 %v2491, %v2494
        %v2497 = vshrl.u32 %v1636, 16
        %v2499 = vrot.slane %v2497, 3
        %v2500 = vshll.u32 %v1636, 16
        %v2502 = vrot.slane %v2500, 4
        %v2503 = vor.u32 %v2499, %v2502
        %v2504 = vsel %vm1928, %v2495, %v2503
        %v2506 = vshrl.u32 %v1768, 16
        %v2508 = vrot.slane %v2506, 3
        %v2509 = vshll.u32 %v1768, 16
        %v2511 = vrot.slane %v2509, 4
        %v2512 = vor.u32 %v2508, %v2511
        %v2513 = vsel %vm1928, %v2512, %v2512
        %v2515 = vshrl.u32 %v1873, 16
        %v2517 = vrot.slane %v2515, 3
        %v2518 = vshll.u32 %v1873, 16
        %v2520 = vrot.slane %v2518, 4
        %v2521 = vor.u32 %v2517, %v2520
        %v2523 = vshrl.u32 %v1875, 16
        %v2525 = vrot.slane %v2523, 3
        %v2526 = vshll.u32 %v1875, 16
        %v2528 = vrot.slane %v2526, 4
        %v2529 = vor.u32 %v2525, %v2528
        %v2530 = vsel %vm1928, %v2521, %v2529
        %v2532 = vshrl.u32 %v1637, 16
        %v2534 = vrot.slane %v2532, 3
        %v2535 = vshll.u32 %v1637, 16
        %v2537 = vrot.slane %v2535, 4
        %v2538 = vor.u32 %v2534, %v2537
        %v2540 = vshrl.u32 %v1638, 16
        %v2542 = vrot.slane %v2540, 3
        %v2543 = vshll.u32 %v1638, 16
        %v2545 = vrot.slane %v2543, 4
        %v2546 = vor.u32 %v2542, %v2545
        %v2547 = vsel %vm1928, %v2538, %v2546
        %v2549 = vshrl.u32 %v1776, 16
        %v2551 = vrot.slane %v2549, 3
        %v2552 = vshll.u32 %v1776, 16
        %v2554 = vrot.slane %v2552, 4
        %v2555 = vor.u32 %v2551, %v2554
        %v2556 = vsel %vm1928, %v2555, %v2555
        %v2558 = vshrl.u32 %v1876, 16
        %v2560 = vrot.slane %v2558, 3
        %v2561 = vshll.u32 %v1876, 16
        %v2563 = vrot.slane %v2561, 4
        %v2564 = vor.u32 %v2560, %v2563
        %v2566 = vshrl.u32 %v1878, 16
        %v2568 = vrot.slane %v2566, 3
        %v2569 = vshll.u32 %v1878, 16
        %v2571 = vrot.slane %v2569, 4
        %v2572 = vor.u32 %v2568, %v2571
        %v2573 = vsel %vm1928, %v2564, %v2572
        %v2575 = vshrl.u32 %v1639, 16
        %v2577 = vrot.slane %v2575, 3
        %v2578 = vshll.u32 %v1639, 16
        %v2580 = vrot.slane %v2578, 4
        %v2581 = vor.u32 %v2577, %v2580
        %v2583 = vshrl.u32 %v1640, 16
        %v2585 = vrot.slane %v2583, 3
        %v2586 = vshll.u32 %v1640, 16
        %v2588 = vrot.slane %v2586, 4
        %v2589 = vor.u32 %v2585, %v2588
        %v2590 = vsel %vm1928, %v2581, %v2589
        %v2592 = vshrl.u32 %v1784, 16
        %v2594 = vrot.slane %v2592, 3
        %v2595 = vshll.u32 %v1784, 16
        %v2597 = vrot.slane %v2595, 4
        %v2598 = vor.u32 %v2594, %v2597
        %v2599 = vsel %vm1928, %v2598, %v2598
        %v2601 = vshrl.u32 %v1879, 16
        %v2603 = vrot.slane %v2601, 3
        %v2604 = vshll.u32 %v1879, 16
        %v2606 = vrot.slane %v2604, 4
        %v2607 = vor.u32 %v2603, %v2606
        %v2609 = vshrl.u32 %v1881, 16
        %v2611 = vrot.slane %v2609, 3
        %v2612 = vshll.u32 %v1881, 16
        %v2614 = vrot.slane %v2612, 4
        %v2615 = vor.u32 %v2611, %v2614
        %v2616 = vsel %vm1928, %v2607, %v2615
        %v2618 = vshrl.u32 %v1888, 16
        %v2620 = vrot.slane %v2618, 3
        %v2621 = vshll.u32 %v1888, 16
        %v2623 = vrot.slane %v2621, 4
        %v2624 = vor.u32 %v2620, %v2623
        %v2626 = vshrl.u32 %v1889, 16
        %v2628 = vrot.slane %v2626, 3
        %v2629 = vshll.u32 %v1889, 16
        %v2631 = vrot.slane %v2629, 4
        %v2632 = vor.u32 %v2628, %v2631
        %v2633 = vsel %vm1928, %v2624, %v2632
        %v2635 = vshrl.u32 %v1898, 16
        %v2637 = vrot.slane %v2635, 3
        %v2638 = vshll.u32 %v1898, 16
        %v2640 = vrot.slane %v2638, 4
        %v2641 = vor.u32 %v2637, %v2640
        %v2642 = vsel %vm1928, %v2641, %v2641
        %v2644 = vshrl.u32 %v1902, 16
        %v2646 = vrot.slane %v2644, 3
        %v2647 = vshll.u32 %v1902, 16
        %v2649 = vrot.slane %v2647, 4
        %v2650 = vor.u32 %v2646, %v2649
        %v2652 = vshrl.u32 %v1904, 16
        %v2654 = vrot.slane %v2652, 3
        %v2655 = vshll.u32 %v1904, 16
        %v2657 = vrot.slane %v2655, 4
        %v2658 = vor.u32 %v2654, %v2657
        %v2659 = vsel %vm1928, %v2650, %v2658
        %v2661 = vshrl.u32 %v1911, 16
        %v2663 = vrot.slane %v2661, 3
        %v2664 = vshll.u32 %v1911, 16
        %v2666 = vrot.slane %v2664, 4
        %v2667 = vor.u32 %v2663, %v2666
        %v2669 = vshrl.u32 %v1912, 16
        %v2671 = vrot.slane %v2669, 3
        %v2672 = vshll.u32 %v1912, 16
        %v2674 = vrot.slane %v2672, 4
        %v2675 = vor.u32 %v2671, %v2674
        %v2676 = vsel %vm1928, %v2667, %v2675
        %v2678 = vshrl.u32 %v1921, 16
        %v2680 = vrot.slane %v2678, 3
        %v2681 = vshll.u32 %v1921, 16
        %v2683 = vrot.slane %v2681, 4
        %v2684 = vor.u32 %v2680, %v2683
        %v2685 = vsel %vm1928, %v2684, %v2684
        %v2687 = vshrl.u32 %v1925, 16
        %v2689 = vrot.slane %v2687, 3
        %v2690 = vshll.u32 %v1925, 16
        %v2692 = vrot.slane %v2690, 4
        %v2693 = vor.u32 %v2689, %v2692
        %v2695 = vshrl.u32 %v1927, 16
        %v2697 = vrot.slane %v2695, 3
        %v2698 = vshll.u32 %v1927, 16
        %v2700 = vrot.slane %v2698, 4
        %v2701 = vor.u32 %v2697, %v2700
        %v2702 = vsel %vm1928, %v2693, %v2701
        %v2757 = vld [vmem:[#allocation8] sm:$0xf]
        %v2758 = vld [vmem:[#allocation8 + $0x4] sm:$0xf]
        %v2759 = vld [vmem:[#allocation8 + $0x8] sm:$0xf]
        %v2760 = vld [vmem:[#allocation8 + $0xc] sm:$0xf]
        %v2761 = vld [vmem:[#allocation8 + $0x10] sm:$0xf]
        %v2762 = vld [vmem:[#allocation8 + $0x14] sm:$0xf]
        %v2763 = vld [vmem:[#allocation8 + $0x18] sm:$0xf]
        %v2764 = vld [vmem:[#allocation8 + $0x1c] sm:$0xf]
        %v2765 = vld [vmem:[#allocation8 + $0x20] sm:$0xf]
        %v2766 = vld [vmem:[#allocation8 + $0x24] sm:$0xf]
        %v2767 = vld [vmem:[#allocation8 + $0x28] sm:$0xf]
        %v2768 = vld [vmem:[#allocation8 + $0x2c] sm:$0xf]
        %v2769 = vld [vmem:[#allocation8 + $0x30] sm:$0xf]
        %v2770 = vld [vmem:[#allocation8 + $0x34] sm:$0xf]
        %v2771 = vld [vmem:[#allocation8 + $0x38] sm:$0xf]
        %v2772 = vld [vmem:[#allocation8 + $0x3c] sm:$0xf]
        %v2773 = vld [vmem:[#allocation8 + $0x40] sm:$0xf]
        %v2774 = vld [vmem:[#allocation8 + $0x44] sm:$0xf]
        %v2775 = vld [vmem:[#allocation8 + $0x48] sm:$0xf]
        %v2776 = vld [vmem:[#allocation8 + $0x4c] sm:$0xf]
        %v2777 = vld [vmem:[#allocation8 + $0x50] sm:$0xf]
        %v2778 = vld [vmem:[#allocation8 + $0x54] sm:$0xf]
        %v2779 = vld [vmem:[#allocation8 + $0x58] sm:$0xf]
        %v2780 = vld [vmem:[#allocation8 + $0x5c] sm:$0xf]
        %v2781 = vld [vmem:[#allocation8 + $0x60] sm:$0xf]
        %v2782 = vld [vmem:[#allocation8 + $0x64] sm:$0xf]
        %v2783 = vld [vmem:[#allocation8 + $0x68] sm:$0xf]
        %v2784 = vld [vmem:[#allocation8 + $0x6c] sm:$0xf]
        %v2785 = vld [vmem:[#allocation8 + $0x70] sm:$0xf]
        %v2786 = vld [vmem:[#allocation8 + $0x74] sm:$0xf]
        %v2787 = vld [vmem:[#allocation8 + $0x78] sm:$0xf]
        %v2788 = vld [vmem:[#allocation8 + $0x7c] sm:$0xf]
        %v2789 = vld [vmem:[#allocation8 + $0x80] sm:$0xf]
        %v2790 = vld [vmem:[#allocation8 + $0x84] sm:$0xf]
        %v2791 = vld [vmem:[#allocation8 + $0x88] sm:$0xf]
        %v2792 = vld [vmem:[#allocation8 + $0x8c] sm:$0xf]
        %v2793 = vld [vmem:[#allocation8 + $0x90] sm:$0xf]
        %v2794 = vld [vmem:[#allocation8 + $0x94] sm:$0xf]
        %v2795 = vld [vmem:[#allocation8 + $0x98] sm:$0xf]
        %v2796 = vld [vmem:[#allocation8 + $0x9c] sm:$0xf]
        %v2797 = vld [vmem:[#allocation8 + $0xa0] sm:$0xf]
        %v2798 = vld [vmem:[#allocation8 + $0xa4] sm:$0xf]
        %v2799 = vld [vmem:[#allocation8 + $0xa8] sm:$0xf]
        %v2800 = vld [vmem:[#allocation8 + $0xac] sm:$0xf]
        %v2801 = vld [vmem:[#allocation8 + $0xb0] sm:$0xf]
        %v2802 = vld [vmem:[#allocation8 + $0xb4] sm:$0xf]
        %v2803 = vld [vmem:[#allocation8 + $0xb8] sm:$0xf]
        %v2804 = vld [vmem:[#allocation8 + $0xbc] sm:$0xf]
        %v2805 = vld [vmem:[#allocation8 + $0xc0] sm:$0xf]
        %v2806 = vld [vmem:[#allocation8 + $0xc4] sm:$0xf]
        %v2807 = vld [vmem:[#allocation8 + $0xc8] sm:$0xf]
        %v2808 = vld [vmem:[#allocation8 + $0xcc] sm:$0xf]
        %v2809 = vld [vmem:[#allocation8 + $0xd0] sm:$0xf]
        %v2810 = vld [vmem:[#allocation8 + $0xd4] sm:$0xf]
        %v2811 = vld [vmem:[#allocation8 + $0xd8] sm:$0xf]
        %v2812 = vld [vmem:[#allocation8 + $0xdc] sm:$0xf]
        %v2813 = vld [vmem:[#allocation8 + $0xe0] sm:$0xf]
        %v2814 = vld [vmem:[#allocation8 + $0xe4] sm:$0xf]
        %v2815 = vld [vmem:[#allocation8 + $0xe8] sm:$0xf]
        %v2816 = vld [vmem:[#allocation8 + $0xec] sm:$0xf]
        %v2817 = vld [vmem:[#allocation8 + $0xf0] sm:$0xf]
        %v2818 = vld [vmem:[#allocation8 + $0xf4] sm:$0xf]
        %v2819 = vld [vmem:[#allocation8 + $0xf8] sm:$0xf]
        %v2820 = vld [vmem:[#allocation8 + $0xfc] sm:$0xf]
        %v2821 = vld [vmem:[#allocation8 + $0x100] sm:$0xf]
        %v2822 = vld [vmem:[#allocation8 + $0x104] sm:$0xf]
        %v2823 = vld [vmem:[#allocation8 + $0x108] sm:$0xf]
        %v2824 = vld [vmem:[#allocation8 + $0x10c] sm:$0xf]
        %v2825 = vld [vmem:[#allocation8 + $0x110] sm:$0xf]
        %v2826 = vld [vmem:[#allocation8 + $0x114] sm:$0xf]
        %v2827 = vld [vmem:[#allocation8 + $0x118] sm:$0xf]
        %v2828 = vld [vmem:[#allocation8 + $0x11c] sm:$0xf]
        %v2829 = vld [vmem:[#allocation8 + $0x120] sm:$0xf]
        %v2830 = vld [vmem:[#allocation8 + $0x124] sm:$0xf]
        %v2831 = vld [vmem:[#allocation8 + $0x128] sm:$0xf]
        %v2832 = vld [vmem:[#allocation8 + $0x12c] sm:$0xf]
        %v2833 = vld [vmem:[#allocation8 + $0x130] sm:$0xf]
        %v2834 = vld [vmem:[#allocation8 + $0x134] sm:$0xf]
        %v2835 = vld [vmem:[#allocation8 + $0x138] sm:$0xf]
        %v2836 = vld [vmem:[#allocation8 + $0x13c] sm:$0xf]
        %v2837 = vld [vmem:[#allocation8 + $0x140] sm:$0xf]
        %v2838 = vld [vmem:[#allocation8 + $0x144] sm:$0xf]
        %v2839 = vld [vmem:[#allocation8 + $0x148] sm:$0xf]
        %v2840 = vld [vmem:[#allocation8 + $0x14c] sm:$0xf]
        %v2841 = vld [vmem:[#allocation8 + $0x150] sm:$0xf]
        %v2842 = vld [vmem:[#allocation8 + $0x154] sm:$0xf]
        %v2843 = vld [vmem:[#allocation8 + $0x158] sm:$0xf]
        %v2844 = vld [vmem:[#allocation8 + $0x15c] sm:$0xf]
        %v2845 = vld [vmem:[#allocation8 + $0x160] sm:$0xf]
        %v2846 = vld [vmem:[#allocation8 + $0x164] sm:$0xf]
        %v2847 = vld [vmem:[#allocation8 + $0x168] sm:$0xf]
        %v2848 = vld [vmem:[#allocation8 + $0x16c] sm:$0xf]
        %v2849 = vld [vmem:[#allocation8 + $0x170] sm:$0xf]
        %v2850 = vld [vmem:[#allocation8 + $0x174] sm:$0xf]
        %v2851 = vld [vmem:[#allocation8 + $0x178] sm:$0xf]
        %v2852 = vld [vmem:[#allocation8 + $0x17c] sm:$0xf]
        %v2853 = vld [vmem:[#allocation8 + $0x180] sm:$0xf]
        %v2854 = vld [vmem:[#allocation8 + $0x184] sm:$0xf]
        %v2855 = vld [vmem:[#allocation8 + $0x188] sm:$0xf]
        %v2856 = vld [vmem:[#allocation8 + $0x18c] sm:$0xf]
        %v2857 = vld [vmem:[#allocation8 + $0x190] sm:$0xf]
        %v2858 = vld [vmem:[#allocation8 + $0x194] sm:$0xf]
        %v2859 = vld [vmem:[#allocation8 + $0x198] sm:$0xf]
        %v2860 = vld [vmem:[#allocation8 + $0x19c] sm:$0xf]
        %v2861 = vld [vmem:[#allocation8 + $0x1a0] sm:$0xf]
        %v2862 = vld [vmem:[#allocation8 + $0x1a4] sm:$0xf]
        %v2863 = vld [vmem:[#allocation8 + $0x1a8] sm:$0xf]
        %v2864 = vld [vmem:[#allocation8 + $0x1ac] sm:$0xf]
        %v2865 = vld [vmem:[#allocation8 + $0x1b0] sm:$0xf]
        %v2866 = vld [vmem:[#allocation8 + $0x1b4] sm:$0xf]
        %v2867 = vld [vmem:[#allocation8 + $0x1b8] sm:$0xf]
        %v2868 = vld [vmem:[#allocation8 + $0x1bc] sm:$0xf]
        %v2869 = vld [vmem:[#allocation8 + $0x1c0] sm:$0xf]
        %v2870 = vld [vmem:[#allocation8 + $0x1c4] sm:$0xf]
        %v2871 = vld [vmem:[#allocation8 + $0x1c8] sm:$0xf]
        %v2872 = vld [vmem:[#allocation8 + $0x1cc] sm:$0xf]
        %v2873 = vld [vmem:[#allocation8 + $0x1d0] sm:$0xf]
        %v2874 = vld [vmem:[#allocation8 + $0x1d4] sm:$0xf]
        %v2875 = vld [vmem:[#allocation8 + $0x1d8] sm:$0xf]
        %v2876 = vld [vmem:[#allocation8 + $0x1dc] sm:$0xf]
        %v2877 = vld [vmem:[#allocation8 + $0x1e0] sm:$0xf]
        %v2878 = vld [vmem:[#allocation8 + $0x1e4] sm:$0xf]
        %v2879 = vld [vmem:[#allocation8 + $0x1e8] sm:$0xf]
        %v2880 = vld [vmem:[#allocation8 + $0x1ec] sm:$0xf]
        %v2881 = vld [vmem:[#allocation8 + $0x1f0] sm:$0xf]
        %v2882 = vld [vmem:[#allocation8 + $0x1f4] sm:$0xf]
        %v2883 = vld [vmem:[#allocation8 + $0x1f8] sm:$0xf]
        %v2884 = vld [vmem:[#allocation8 + $0x1fc] sm:$0xf]
        %v2885 = vld [vmem:[#allocation8 + $0x200] sm:$0xf]
        %v2886 = vld [vmem:[#allocation8 + $0x204] sm:$0xf]
        %v2887 = vld [vmem:[#allocation8 + $0x208] sm:$0xf]
        %v2888 = vld [vmem:[#allocation8 + $0x20c] sm:$0xf]
        %v2889 = vld [vmem:[#allocation8 + $0x210] sm:$0xf]
        %v2890 = vld [vmem:[#allocation8 + $0x214] sm:$0xf]
        %v2891 = vld [vmem:[#allocation8 + $0x218] sm:$0xf]
        %v2892 = vld [vmem:[#allocation8 + $0x21c] sm:$0xf]
        %v2893 = vld [vmem:[#allocation8 + $0x220] sm:$0xf]
        %v2894 = vld [vmem:[#allocation8 + $0x224] sm:$0xf]
        %v2895 = vld [vmem:[#allocation8 + $0x228] sm:$0xf]
        %v2896 = vld [vmem:[#allocation8 + $0x22c] sm:$0xf]
        %v2897 = vld [vmem:[#allocation8 + $0x230] sm:$0xf]
        %v2898 = vld [vmem:[#allocation8 + $0x234] sm:$0xf]
        %v2899 = vld [vmem:[#allocation8 + $0x238] sm:$0xf]
        %v2900 = vld [vmem:[#allocation8 + $0x23c] sm:$0xf]
        %v2901 = vld [vmem:[%s4] sm:$0x1]
        %v2903 = vlaneseq
        %v2904 = vshrl.u32 %v2903, 7
        %v2905 = vsub.s32 0, %v2904
        %v2906 = vrot.slane %v2901, %v2905
        %v3052 = vunpack.c.l.b16 %v2757
        %v3053 = vunpack.c.l.b16 %v2758
        %v3054 = vunpack.c.l.b16 %v2759
        %v3055 = vunpack.c.l.b16 %v2760
        %v3056 = vunpack.c.l.b16 %v2761
        %v3057 = vunpack.c.l.b16 %v2762
        %v3058 = vunpack.c.l.b16 %v2763
        %v3059 = vunpack.c.l.b16 %v2764
        %v3060 = vunpack.c.l.b16 %v2765
        %v3061 = vunpack.c.l.b16 %v2766
        %v3062 = vunpack.c.l.b16 %v2767
        %v3063 = vunpack.c.l.b16 %v2768
        %v3064 = vunpack.c.l.b16 %v2769
        %v3065 = vunpack.c.l.b16 %v2770
        %v3066 = vunpack.c.l.b16 %v2771
        %v3067 = vunpack.c.l.b16 %v2772
        %v3068 = vunpack.c.l.b16 %v2773
        %v3069 = vunpack.c.l.b16 %v2774
        %v3070 = vunpack.c.l.b16 %v2775
        %v3071 = vunpack.c.l.b16 %v2776
        %v3072 = vunpack.c.l.b16 %v2777
        %v3073 = vunpack.c.l.b16 %v2778
        %v3074 = vunpack.c.l.b16 %v2779
        %v3075 = vunpack.c.l.b16 %v2780
        %v3076 = vunpack.c.l.b16 %v2781
        %v3077 = vunpack.c.l.b16 %v2782
        %v3078 = vunpack.c.l.b16 %v2783
        %v3079 = vunpack.c.l.b16 %v2784
        %v3080 = vunpack.c.l.b16 %v2785
        %v3081 = vunpack.c.l.b16 %v2786
        %v3082 = vunpack.c.l.b16 %v2787
        %v3083 = vunpack.c.l.b16 %v2788
        %v3084 = vunpack.c.l.b16 %v2789
        %v3085 = vunpack.c.l.b16 %v2790
        %v3086 = vunpack.c.l.b16 %v2791
        %v3087 = vunpack.c.l.b16 %v2792
        %v3088 = vunpack.c.l.b16 %v2793
        %v3089 = vunpack.c.l.b16 %v2794
        %v3090 = vunpack.c.l.b16 %v2795
        %v3091 = vunpack.c.l.b16 %v2796
        %v3092 = vunpack.c.l.b16 %v2797
        %v3093 = vunpack.c.l.b16 %v2798
        %v3094 = vunpack.c.l.b16 %v2799
        %v3095 = vunpack.c.l.b16 %v2800
        %v3096 = vunpack.c.l.b16 %v2801
        %v3097 = vunpack.c.l.b16 %v2802
        %v3098 = vunpack.c.l.b16 %v2803
        %v3099 = vunpack.c.l.b16 %v2804
        %v3100 = vunpack.c.l.b16 %v2805
        %v3101 = vunpack.c.l.b16 %v2806
        %v3102 = vunpack.c.l.b16 %v2807
        %v3103 = vunpack.c.l.b16 %v2808
        %v3104 = vunpack.c.l.b16 %v2809
        %v3105 = vunpack.c.l.b16 %v2810
        %v3106 = vunpack.c.l.b16 %v2811
        %v3107 = vunpack.c.l.b16 %v2812
        %v3108 = vunpack.c.l.b16 %v2813
        %v3109 = vunpack.c.l.b16 %v2814
        %v3110 = vunpack.c.l.b16 %v2815
        %v3111 = vunpack.c.l.b16 %v2816
        %v3112 = vunpack.c.l.b16 %v2817
        %v3113 = vunpack.c.l.b16 %v2818
        %v3114 = vunpack.c.l.b16 %v2819
        %v3115 = vunpack.c.l.b16 %v2820
        %v3116 = vunpack.c.l.b16 %v2821
        %v3117 = vunpack.c.l.b16 %v2822
        %v3118 = vunpack.c.l.b16 %v2823
        %v3119 = vunpack.c.l.b16 %v2824
        %v3120 = vunpack.c.l.b16 %v2825
        %v3121 = vunpack.c.l.b16 %v2826
        %v3122 = vunpack.c.l.b16 %v2827
        %v3123 = vunpack.c.l.b16 %v2828
        %v3124 = vunpack.c.l.b16 %v2829
        %v3125 = vunpack.c.l.b16 %v2830
        %v3126 = vunpack.c.l.b16 %v2831
        %v3127 = vunpack.c.l.b16 %v2832
        %v3128 = vunpack.c.l.b16 %v2833
        %v3129 = vunpack.c.l.b16 %v2834
        %v3130 = vunpack.c.l.b16 %v2835
        %v3131 = vunpack.c.l.b16 %v2836
        %v3132 = vunpack.c.l.b16 %v2837
        %v3133 = vunpack.c.l.b16 %v2838
        %v3134 = vunpack.c.l.b16 %v2839
        %v3135 = vunpack.c.l.b16 %v2840
        %v3136 = vunpack.c.l.b16 %v2841
        %v3137 = vunpack.c.l.b16 %v2842
        %v3138 = vunpack.c.l.b16 %v2843
        %v3139 = vunpack.c.l.b16 %v2844
        %v3140 = vunpack.c.l.b16 %v2845
        %v3141 = vunpack.c.l.b16 %v2846
        %v3142 = vunpack.c.l.b16 %v2847
        %v3143 = vunpack.c.l.b16 %v2848
        %v3144 = vunpack.c.l.b16 %v2849
        %v3145 = vunpack.c.l.b16 %v2850
        %v3146 = vunpack.c.l.b16 %v2851
        %v3147 = vunpack.c.l.b16 %v2852
        %v3148 = vunpack.c.l.b16 %v2853
        %v3149 = vunpack.c.l.b16 %v2854
        %v3150 = vunpack.c.l.b16 %v2855
        %v3151 = vunpack.c.l.b16 %v2856
        %v3152 = vunpack.c.l.b16 %v2857
        %v3153 = vunpack.c.l.b16 %v2858
        %v3154 = vunpack.c.l.b16 %v2859
        %v3155 = vunpack.c.l.b16 %v2860
        %v3156 = vunpack.c.l.b16 %v2861
        %v3157 = vunpack.c.l.b16 %v2862
        %v3158 = vunpack.c.l.b16 %v2863
        %v3159 = vunpack.c.l.b16 %v2864
        %v3160 = vunpack.c.l.b16 %v2865
        %v3161 = vunpack.c.l.b16 %v2866
        %v3162 = vunpack.c.l.b16 %v2867
        %v3163 = vunpack.c.l.b16 %v2868
        %v3164 = vunpack.c.l.b16 %v2869
        %v3165 = vunpack.c.l.b16 %v2870
        %v3166 = vunpack.c.l.b16 %v2871
        %v3167 = vunpack.c.l.b16 %v2872
        %v3168 = vunpack.c.l.b16 %v2873
        %v3169 = vunpack.c.l.b16 %v2874
        %v3170 = vunpack.c.l.b16 %v2875
        %v3171 = vunpack.c.l.b16 %v2876
        %v3172 = vunpack.c.l.b16 %v2877
        %v3173 = vunpack.c.l.b16 %v2878
        %v3174 = vunpack.c.l.b16 %v2879
        %v3175 = vunpack.c.l.b16 %v2880
        %v3176 = vunpack.c.l.b16 %v2881
        %v3177 = vunpack.c.l.b16 %v2882
        %v3178 = vunpack.c.l.b16 %v2883
        %v3179 = vunpack.c.l.b16 %v2884
        %v3180 = vunpack.c.l.b16 %v2885
        %v3181 = vunpack.c.l.b16 %v2886
        %v3182 = vunpack.c.l.b16 %v2887
        %v3183 = vunpack.c.l.b16 %v2888
        %v3184 = vunpack.c.l.b16 %v2889
        %v3185 = vunpack.c.l.b16 %v2890
        %v3186 = vunpack.c.l.b16 %v2891
        %v3187 = vunpack.c.l.b16 %v2892
        %v3188 = vunpack.c.l.b16 %v2893
        %v3189 = vunpack.c.l.b16 %v2894
        %v3190 = vunpack.c.l.b16 %v2895
        %v3191 = vunpack.c.l.b16 %v2896
        %v3192 = vunpack.c.l.b16 %v2897
        %v3193 = vunpack.c.l.b16 %v2898
        %v3194 = vunpack.c.l.b16 %v2899
        %v3195 = vunpack.c.l.b16 %v2900
        %v3196 = vpack.c.b16 %v3053, %v3052
        %v3197 = vpack.c.b16 %v3055, %v3054
        %v3198 = vpack.c.b16 %v3057, %v3056
        %v3199 = vpack.c.b16 %v3059, %v3058
        %v3200 = vpack.c.b16 %v3061, %v3060
        %v3201 = vpack.c.b16 %v3063, %v3062
        %v3202 = vpack.c.b16 %v3065, %v3064
        %v3203 = vpack.c.b16 %v3067, %v3066
        %v3204 = vpack.c.b16 %v3069, %v3068
        %v3205 = vpack.c.b16 %v3071, %v3070
        %v3206 = vpack.c.b16 %v3073, %v3072
        %v3207 = vpack.c.b16 %v3075, %v3074
        %v3208 = vpack.c.b16 %v3077, %v3076
        %v3209 = vpack.c.b16 %v3079, %v3078
        %v3210 = vpack.c.b16 %v3081, %v3080
        %v3211 = vpack.c.b16 %v3083, %v3082
        %v3212 = vpack.c.b16 %v3085, %v3084
        %v3213 = vpack.c.b16 %v3087, %v3086
        %v3214 = vpack.c.b16 %v3089, %v3088
        %v3215 = vpack.c.b16 %v3091, %v3090
        %v3216 = vpack.c.b16 %v3093, %v3092
        %v3217 = vpack.c.b16 %v3095, %v3094
        %v3218 = vpack.c.b16 %v3097, %v3096
        %v3219 = vpack.c.b16 %v3099, %v3098
        %v3220 = vpack.c.b16 %v3101, %v3100
        %v3221 = vpack.c.b16 %v3103, %v3102
        %v3222 = vpack.c.b16 %v3105, %v3104
        %v3223 = vpack.c.b16 %v3107, %v3106
        %v3224 = vpack.c.b16 %v3109, %v3108
        %v3225 = vpack.c.b16 %v3111, %v3110
        %v3226 = vpack.c.b16 %v3113, %v3112
        %v3227 = vpack.c.b16 %v3115, %v3114
        %v3228 = vpack.c.b16 %v3117, %v3116
        %v3229 = vpack.c.b16 %v3119, %v3118
        %v3230 = vpack.c.b16 %v3121, %v3120
        %v3231 = vpack.c.b16 %v3123, %v3122
        %v3232 = vpack.c.b16 %v3125, %v3124
        %v3233 = vpack.c.b16 %v3127, %v3126
        %v3234 = vpack.c.b16 %v3129, %v3128
        %v3235 = vpack.c.b16 %v3131, %v3130
        %v3236 = vpack.c.b16 %v3133, %v3132
        %v3237 = vpack.c.b16 %v3135, %v3134
        %v3238 = vpack.c.b16 %v3137, %v3136
        %v3239 = vpack.c.b16 %v3139, %v3138
        %v3240 = vpack.c.b16 %v3141, %v3140
        %v3241 = vpack.c.b16 %v3143, %v3142
        %v3242 = vpack.c.b16 %v3145, %v3144
        %v3243 = vpack.c.b16 %v3147, %v3146
        %v3244 = vpack.c.b16 %v3149, %v3148
        %v3245 = vpack.c.b16 %v3151, %v3150
        %v3246 = vpack.c.b16 %v3153, %v3152
        %v3247 = vpack.c.b16 %v3155, %v3154
        %v3248 = vpack.c.b16 %v3157, %v3156
        %v3249 = vpack.c.b16 %v3159, %v3158
        %v3250 = vpack.c.b16 %v3161, %v3160
        %v3251 = vpack.c.b16 %v3163, %v3162
        %v3252 = vpack.c.b16 %v3165, %v3164
        %v3253 = vpack.c.b16 %v3167, %v3166
        %v3254 = vpack.c.b16 %v3169, %v3168
        %v3255 = vpack.c.b16 %v3171, %v3170
        %v3256 = vpack.c.b16 %v3173, %v3172
        %v3257 = vpack.c.b16 %v3175, %v3174
        %v3258 = vpack.c.b16 %v3177, %v3176
        %v3259 = vpack.c.b16 %v3179, %v3178
        %v3260 = vpack.c.b16 %v3181, %v3180
        %v3261 = vpack.c.b16 %v3183, %v3182
        %v3262 = vpack.c.b16 %v3185, %v3184
        %v3263 = vpack.c.b16 %v3187, %v3186
        %v3264 = vpack.c.b16 %v3189, %v3188
        %v3265 = vpack.c.b16 %v3191, %v3190
        %v3266 = vpack.c.b16 %v3193, %v3192
        %v3267 = vpack.c.b16 %v3195, %v3194
        %3340 = vmatprep.subr.bf16.mxu0 0
        %3341 = vmatpush1.bf16.msra.mxu0 %v3196
        %3342 = vmatprep.subr.bf16.mxu0 0
        %3343 = vmatpush1.bf16.msra.mxu0 %v3197
        %3344 = vmatprep.subr.bf16.mxu0 0
        %3345 = vmatpush1.bf16.msra.mxu0 %v3198
        %3346 = vmatprep.subr.bf16.mxu0 0
        %3347 = vmatpush1.bf16.msra.mxu0 %v3199
        %3348 = vmatprep.subr.bf16.mxu0 0
        %3349 = vmatpush1.bf16.msra.mxu0 %v3200
        %3350 = vmatprep.subr.bf16.mxu0 0
        %3351 = vmatpush1.bf16.msra.mxu0 %v3201
        %3352 = vmatprep.subr.bf16.mxu0 0
        %3353 = vmatpush1.bf16.msra.mxu0 %v3202
        %3354 = vmatprep.subr.bf16.mxu0 0
        %3355 = vmatpush1.bf16.msra.mxu0 %v3203
        %3356 = vmatprep.subr.bf16.mxu0 0
        %3357 = vmatpush1.bf16.msra.mxu0 %v3204
        %3358 = vmatprep.subr.bf16.mxu0 0
        %3359 = vmatpush1.bf16.msra.mxu0 %v3205
        %3360 = vmatprep.subr.bf16.mxu0 0
        %3361 = vmatpush1.bf16.msra.mxu0 %v3206
        %3362 = vmatprep.subr.bf16.mxu0 0
        %3363 = vmatpush1.bf16.msra.mxu0 %v3207
        %3364 = vmatprep.subr.bf16.mxu0 0
        %3365 = vmatpush1.bf16.msra.mxu0 %v3208
        %3366 = vmatprep.subr.bf16.mxu0 0
        %3367 = vmatpush1.bf16.msra.mxu0 %v3209
        %3368 = vmatprep.subr.bf16.mxu0 0
        %3369 = vmatpush1.bf16.msra.mxu0 %v3210
        %3370 = vmatprep.subr.bf16.mxu0 0
        %3371 = vmatpush1.bf16.msra.mxu0 %v3211
        %3372 = vmatprep.mubr.bf16.mxu0 %v1954
        %3373 = vmatmul.mubr.bf16.gmra.mrb[0].mxu0 %v1945
        %v3374 = vpop.f32.mrb[0].mxu0
        %v3375 = vadd.f32 %v2906, %v3374
        %v3376 = vpop.f32.mrb[0].mxu0
        %v3377 = vpop.f32.mrb[0].mxu0
        %v3378 = vadd.f32 %v2906, %v3377
        %v3379 = vpop.f32.mrb[0].mxu0
        %3380 = vmatprep.mubr.bf16.mxu0 %v1997
        %3381 = vmatmul.mubr.bf16.gmra.mrb[0].mxu0 %v1988
        %v3382 = vpop.f32.mrb[0].mxu0
        %v3383 = vadd.f32 %v2906, %v3382
        %v3384 = vpop.f32.mrb[0].mxu0
        %v3385 = vpop.f32.mrb[0].mxu0
        %v3386 = vadd.f32 %v2906, %v3385
        %v3387 = vpop.f32.mrb[0].mxu0
        %3388 = vmatprep.mubr.bf16.mxu0 %v2040
        %3389 = vmatmul.mubr.bf16.gmra.mrb[0].mxu0 %v2031
        %v3390 = vpop.f32.mrb[0].mxu0
        %v3391 = vadd.f32 %v2906, %v3390
        %v3392 = vpop.f32.mrb[0].mxu0
        %v3393 = vpop.f32.mrb[0].mxu0
        %v3394 = vadd.f32 %v2906, %v3393
        %v3395 = vpop.f32.mrb[0].mxu0
        %3396 = vmatprep.mubr.bf16.mxu0 %v2083
        %3397 = vmatmul.mubr.bf16.gmra.mrb[0].mxu0 %v2074
        %v3398 = vpop.f32.mrb[0].mxu0
        %v3399 = vadd.f32 %v2906, %v3398
        %v3400 = vpop.f32.mrb[0].mxu0
        %v3401 = vpop.f32.mrb[0].mxu0
        %v3402 = vadd.f32 %v2906, %v3401
        %v3403 = vpop.f32.mrb[0].mxu0
        %3404 = vmatprep.mubr.bf16.mxu0 %v2126
        %3405 = vmatmul.mubr.bf16.gmra.mrb[0].mxu0 %v2117
        %v3406 = vpop.f32.mrb[0].mxu0
        %v3407 = vadd.f32 %v2906, %v3406
        %v3408 = vpop.f32.mrb[0].mxu0
        %v3409 = vpop.f32.mrb[0].mxu0
        %v3410 = vadd.f32 %v2906, %v3409
        %v3411 = vpop.f32.mrb[0].mxu0
        %3412 = vmatprep.mubr.bf16.mxu0 %v2169
        %3413 = vmatmul.mubr.bf16.gmra.mrb[0].mxu0 %v2160
        %v3414 = vpop.f32.mrb[0].mxu0
        %v3415 = vadd.f32 %v2906, %v3414
        %v3416 = vpop.f32.mrb[0].mxu0
        %v3417 = vpop.f32.mrb[0].mxu0
        %v3418 = vadd.f32 %v2906, %v3417
        %v3419 = vpop.f32.mrb[0].mxu0
        %3420 = vmatprep.mubr.bf16.mxu0 %v2212
        %3421 = vmatmul.mubr.bf16.gmra.mrb[0].mxu0 %v2203
        %v3422 = vpop.f32.mrb[0].mxu0
        %v3423 = vadd.f32 %v2906, %v3422
        %v3424 = vpop.f32.mrb[0].mxu0
        %v3425 = vpop.f32.mrb[0].mxu0
        %v3426 = vadd.f32 %v2906, %v3425
        %v3427 = vpop.f32.mrb[0].mxu0
        %3428 = vmatprep.mubr.bf16.mxu0 %v2255
        %3429 = vmatmul.mubr.bf16.gmra.mrb[0].mxu0 %v2246
        %v3430 = vpop.f32.mrb[0].mxu0
        %v3431 = vadd.f32 %v2906, %v3430
        %v3432 = vpop.f32.mrb[0].mxu0
        %v3433 = vpop.f32.mrb[0].mxu0
        %v3434 = vadd.f32 %v2906, %v3433
        %v3435 = vpop.f32.mrb[0].mxu0
        %3436 = vmatprep.mubr.bf16.mxu0 %v2298
        %3437 = vmatmul.mubr.bf16.gmra.mrb[0].mxu0 %v2289
        %v3438 = vpop.f32.mrb[0].mxu0
        %v3439 = vadd.f32 %v2906, %v3438
        %v3440 = vpop.f32.mrb[0].mxu0
        %v3441 = vpop.f32.mrb[0].mxu0
        %v3442 = vadd.f32 %v2906, %v3441
        %v3443 = vpop.f32.mrb[0].mxu0
        %3444 = vmatprep.mubr.bf16.mxu0 %v2341
        %3445 = vmatmul.mubr.bf16.gmra.mrb[0].mxu0 %v2332
        %v3446 = vpop.f32.mrb[0].mxu0
        %v3447 = vadd.f32 %v2906, %v3446
        %v3448 = vpop.f32.mrb[0].mxu0
        %v3449 = vpop.f32.mrb[0].mxu0
        %v3450 = vadd.f32 %v2906, %v3449
        %v3451 = vpop.f32.mrb[0].mxu0
        %3452 = vmatprep.mubr.bf16.mxu0 %v2384
        %3453 = vmatmul.mubr.bf16.gmra.mrb[0].mxu0 %v2375
        %v3454 = vpop.f32.mrb[0].mxu0
        %v3455 = vadd.f32 %v2906, %v3454
        %v3456 = vpop.f32.mrb[0].mxu0
        %v3457 = vpop.f32.mrb[0].mxu0
        %v3458 = vadd.f32 %v2906, %v3457
        %v3459 = vpop.f32.mrb[0].mxu0
        %3460 = vmatprep.mubr.bf16.mxu0 %v2427
        %3461 = vmatmul.mubr.bf16.gmra.mrb[0].mxu0 %v2418
        %v3462 = vpop.f32.mrb[0].mxu0
        %v3463 = vadd.f32 %v2906, %v3462
        %v3464 = vpop.f32.mrb[0].mxu0
        %v3465 = vpop.f32.mrb[0].mxu0
        %v3466 = vadd.f32 %v2906, %v3465
        %v3467 = vpop.f32.mrb[0].mxu0
        %3468 = vmatprep.mubr.bf16.mxu0 %v2470
        %3469 = vmatmul.mubr.bf16.gmra.mrb[0].mxu0 %v2461
        %v3470 = vpop.f32.mrb[0].mxu0
        %v3471 = vadd.f32 %v2906, %v3470
        %v3472 = vpop.f32.mrb[0].mxu0
        %v3473 = vpop.f32.mrb[0].mxu0
        %v3474 = vadd.f32 %v2906, %v3473
        %v3475 = vpop.f32.mrb[0].mxu0
        %3476 = vmatprep.mubr.bf16.mxu0 %v2513
        %3477 = vmatmul.mubr.bf16.gmra.mrb[0].mxu0 %v2504
        %v3478 = vpop.f32.mrb[0].mxu0
        %v3479 = vadd.f32 %v2906, %v3478
        %v3480 = vpop.f32.mrb[0].mxu0
        %v3481 = vpop.f32.mrb[0].mxu0
        %v3482 = vadd.f32 %v2906, %v3481
        %v3483 = vpop.f32.mrb[0].mxu0
        %3484 = vmatprep.mubr.bf16.mxu0 %v2556
        %3485 = vmatmul.mubr.bf16.gmra.mrb[0].mxu0 %v2547
        %v3486 = vpop.f32.mrb[0].mxu0
        %v3487 = vadd.f32 %v2906, %v3486
        %v3488 = vpop.f32.mrb[0].mxu0
        %v3489 = vpop.f32.mrb[0].mxu0
        %v3490 = vadd.f32 %v2906, %v3489
        %v3491 = vpop.f32.mrb[0].mxu0
        %3492 = vmatprep.mubr.bf16.mxu0 %v2599
        %3493 = vmatmul.mubr.bf16.gmra.mrb[0].mxu0 %v2590
        %v3494 = vpop.f32.mrb[0].mxu0
        %v3495 = vadd.f32 %v2906, %v3494
        %v3496 = vpop.f32.mrb[0].mxu0
        %v3497 = vpop.f32.mrb[0].mxu0
        %v3498 = vadd.f32 %v2906, %v3497
        %v3499 = vpop.f32.mrb[0].mxu0
        %3500 = vdwg.mxu0
        %3501 = vmatprep.subr.bf16.mxu0 0
        %3502 = vmatpush1.bf16.msra.mxu0 %v3212
        %3503 = vmatprep.subr.bf16.mxu0 0
        %3504 = vmatpush1.bf16.msra.mxu0 %v3213
        %3505 = vmatprep.subr.bf16.mxu0 0
        %3506 = vmatpush1.bf16.msra.mxu0 %v3214
        %3507 = vmatprep.subr.bf16.mxu0 0
        %3508 = vmatpush1.bf16.msra.mxu0 %v3215
        %3509 = vmatprep.subr.bf16.mxu0 0
        %3510 = vmatpush1.bf16.msra.mxu0 %v3216
        %3511 = vmatprep.subr.bf16.mxu0 0
        %3512 = vmatpush1.bf16.msra.mxu0 %v3217
        %3513 = vmatprep.subr.bf16.mxu0 0
        %3514 = vmatpush1.bf16.msra.mxu0 %v3218
        %3515 = vmatprep.subr.bf16.mxu0 0
        %3516 = vmatpush1.bf16.msra.mxu0 %v3219
        %3517 = vmatprep.subr.bf16.mxu0 0
        %3518 = vmatpush1.bf16.msra.mxu0 %v3220
        %3519 = vmatprep.subr.bf16.mxu0 0
        %3520 = vmatpush1.bf16.msra.mxu0 %v3221
        %3521 = vmatprep.subr.bf16.mxu0 0
        %3522 = vmatpush1.bf16.msra.mxu0 %v3222
        %3523 = vmatprep.subr.bf16.mxu0 0
        %3524 = vmatpush1.bf16.msra.mxu0 %v3223
        %3525 = vmatprep.subr.bf16.mxu0 0
        %3526 = vmatpush1.bf16.msra.mxu0 %v3224
        %3527 = vmatprep.subr.bf16.mxu0 0
        %3528 = vmatpush1.bf16.msra.mxu0 %v3225
        %3529 = vmatprep.subr.bf16.mxu0 0
        %3530 = vmatpush1.bf16.msra.mxu0 %v3226
        %3531 = vmatprep.subr.bf16.mxu0 0
        %3532 = vmatpush1.bf16.msra.mxu0 %v3227
        %3533 = vmatprep.mubr.bf16.mxu0 %v1988
        %3534 = vmatmul.mubr.bf16.gmra.mrb[0].mxu0 %v1971
        %v3535 = vpop.f32.mrb[0].mxu0
        %v3536 = vadd.f32 %v3375, %v3535
        %v3537 = vpop.f32.mrb[0].mxu0
        %v3538 = vpop.f32.mrb[0].mxu0
        %v3539 = vadd.f32 %v3378, %v3538
        %v3540 = vpop.f32.mrb[0].mxu0
        %3541 = vmatprep.mubr.bf16.mxu0 %v2031
        %3542 = vmatmul.mubr.bf16.gmra.mrb[0].mxu0 %v2014
        %v3543 = vpop.f32.mrb[0].mxu0
        %v3544 = vadd.f32 %v3383, %v3543
        %v3545 = vpop.f32.mrb[0].mxu0
        %v3546 = vpop.f32.mrb[0].mxu0
        %v3547 = vadd.f32 %v3386, %v3546
        %v3548 = vpop.f32.mrb[0].mxu0
        %3549 = vmatprep.mubr.bf16.mxu0 %v2074
        %3550 = vmatmul.mubr.bf16.gmra.mrb[0].mxu0 %v2057
        %v3551 = vpop.f32.mrb[0].mxu0
        %v3552 = vadd.f32 %v3391, %v3551
        %v3553 = vpop.f32.mrb[0].mxu0
        %v3554 = vpop.f32.mrb[0].mxu0
        %v3555 = vadd.f32 %v3394, %v3554
        %v3556 = vpop.f32.mrb[0].mxu0
        %3557 = vmatprep.mubr.bf16.mxu0 %v2117
        %3558 = vmatmul.mubr.bf16.gmra.mrb[0].mxu0 %v2100
        %v3559 = vpop.f32.mrb[0].mxu0
        %v3560 = vadd.f32 %v3399, %v3559
        %v3561 = vpop.f32.mrb[0].mxu0
        %v3562 = vpop.f32.mrb[0].mxu0
        %v3563 = vadd.f32 %v3402, %v3562
        %v3564 = vpop.f32.mrb[0].mxu0
        %3565 = vmatprep.mubr.bf16.mxu0 %v2160
        %3566 = vmatmul.mubr.bf16.gmra.mrb[0].mxu0 %v2143
        %v3567 = vpop.f32.mrb[0].mxu0
        %v3568 = vadd.f32 %v3407, %v3567
        %v3569 = vpop.f32.mrb[0].mxu0
        %v3570 = vpop.f32.mrb[0].mxu0
        %v3571 = vadd.f32 %v3410, %v3570
        %v3572 = vpop.f32.mrb[0].mxu0
        %3573 = vmatprep.mubr.bf16.mxu0 %v2203
        %3574 = vmatmul.mubr.bf16.gmra.mrb[0].mxu0 %v2186
        %v3575 = vpop.f32.mrb[0].mxu0
        %v3576 = vadd.f32 %v3415, %v3575
        %v3577 = vpop.f32.mrb[0].mxu0
        %v3578 = vpop.f32.mrb[0].mxu0
        %v3579 = vadd.f32 %v3418, %v3578
        %v3580 = vpop.f32.mrb[0].mxu0
        %3581 = vmatprep.mubr.bf16.mxu0 %v2246
        %3582 = vmatmul.mubr.bf16.gmra.mrb[0].mxu0 %v2229
        %v3583 = vpop.f32.mrb[0].mxu0
        %v3584 = vadd.f32 %v3423, %v3583
        %v3585 = vpop.f32.mrb[0].mxu0
        %v3586 = vpop.f32.mrb[0].mxu0
        %v3587 = vadd.f32 %v3426, %v3586
        %v3588 = vpop.f32.mrb[0].mxu0
        %3589 = vmatprep.mubr.bf16.mxu0 %v2289
        %3590 = vmatmul.mubr.bf16.gmra.mrb[0].mxu0 %v2272
        %v3591 = vpop.f32.mrb[0].mxu0
        %v3592 = vadd.f32 %v3431, %v3591
        %v3593 = vpop.f32.mrb[0].mxu0
        %v3594 = vpop.f32.mrb[0].mxu0
        %v3595 = vadd.f32 %v3434, %v3594
        %v3596 = vpop.f32.mrb[0].mxu0
        %3597 = vmatprep.mubr.bf16.mxu0 %v2332
        %3598 = vmatmul.mubr.bf16.gmra.mrb[0].mxu0 %v2315
        %v3599 = vpop.f32.mrb[0].mxu0
        %v3600 = vadd.f32 %v3439, %v3599
        %v3601 = vpop.f32.mrb[0].mxu0
        %v3602 = vpop.f32.mrb[0].mxu0
        %v3603 = vadd.f32 %v3442, %v3602
        %v3604 = vpop.f32.mrb[0].mxu0
        %3605 = vmatprep.mubr.bf16.mxu0 %v2375
        %3606 = vmatmul.mubr.bf16.gmra.mrb[0].mxu0 %v2358
        %v3607 = vpop.f32.mrb[0].mxu0
        %v3608 = vadd.f32 %v3447, %v3607
        %v3609 = vpop.f32.mrb[0].mxu0
        %v3610 = vpop.f32.mrb[0].mxu0
        %v3611 = vadd.f32 %v3450, %v3610
        %v3612 = vpop.f32.mrb[0].mxu0
        %3613 = vmatprep.mubr.bf16.mxu0 %v2418
        %3614 = vmatmul.mubr.bf16.gmra.mrb[0].mxu0 %v2401
        %v3615 = vpop.f32.mrb[0].mxu0
        %v3616 = vadd.f32 %v3455, %v3615
        %v3617 = vpop.f32.mrb[0].mxu0
        %v3618 = vpop.f32.mrb[0].mxu0
        %v3619 = vadd.f32 %v3458, %v3618
        %v3620 = vpop.f32.mrb[0].mxu0
        %3621 = vmatprep.mubr.bf16.mxu0 %v2461
        %3622 = vmatmul.mubr.bf16.gmra.mrb[0].mxu0 %v2444
        %v3623 = vpop.f32.mrb[0].mxu0
        %v3624 = vadd.f32 %v3463, %v3623
        %v3625 = vpop.f32.mrb[0].mxu0
        %v3626 = vpop.f32.mrb[0].mxu0
        %v3627 = vadd.f32 %v3466, %v3626
        %v3628 = vpop.f32.mrb[0].mxu0
        %3629 = vmatprep.mubr.bf16.mxu0 %v2504
        %3630 = vmatmul.mubr.bf16.gmra.mrb[0].mxu0 %v2487
        %v3631 = vpop.f32.mrb[0].mxu0
        %v3632 = vadd.f32 %v3471, %v3631
        %v3633 = vpop.f32.mrb[0].mxu0
        %v3634 = vpop.f32.mrb[0].mxu0
        %v3635 = vadd.f32 %v3474, %v3634
        %v3636 = vpop.f32.mrb[0].mxu0
        %3637 = vmatprep.mubr.bf16.mxu0 %v2547
        %3638 = vmatmul.mubr.bf16.gmra.mrb[0].mxu0 %v2530
        %v3639 = vpop.f32.mrb[0].mxu0
        %v3640 = vadd.f32 %v3479, %v3639
        %v3641 = vpop.f32.mrb[0].mxu0
        %v3642 = vpop.f32.mrb[0].mxu0
        %v3643 = vadd.f32 %v3482, %v3642
        %v3644 = vpop.f32.mrb[0].mxu0
        %3645 = vmatprep.mubr.bf16.mxu0 %v2590
        %3646 = vmatmul.mubr.bf16.gmra.mrb[0].mxu0 %v2573
        %v3647 = vpop.f32.mrb[0].mxu0
        %v3648 = vadd.f32 %v3487, %v3647
        %v3649 = vpop.f32.mrb[0].mxu0
        %v3650 = vpop.f32.mrb[0].mxu0
        %v3651 = vadd.f32 %v3490, %v3650
        %v3652 = vpop.f32.mrb[0].mxu0
        %3653 = vmatprep.mubr.bf16.mxu0 %v2633
        %3654 = vmatmul.mubr.bf16.gmra.mrb[0].mxu0 %v2616
        %v3655 = vpop.f32.mrb[0].mxu0
        %v3656 = vadd.f32 %v3495, %v3655
        %v3657 = vpop.f32.mrb[0].mxu0
        %v3658 = vpop.f32.mrb[0].mxu0
        %v3659 = vadd.f32 %v3498, %v3658
        %v3660 = vpop.f32.mrb[0].mxu0
        %3661 = vdwg.mxu0
        %3662 = vmatprep.subr.bf16.mxu0 0
        %3663 = vmatpush1.bf16.msra.mxu0 %v3228
        %3664 = vmatprep.subr.bf16.mxu0 0
        %3665 = vmatpush1.bf16.msra.mxu0 %v3229
        %3666 = vmatprep.subr.bf16.mxu0 0
        %3667 = vmatpush1.bf16.msra.mxu0 %v3230
        %3668 = vmatprep.subr.bf16.mxu0 0
        %3669 = vmatpush1.bf16.msra.mxu0 %v3231
        %3670 = vmatprep.subr.bf16.mxu0 0
        %3671 = vmatpush1.bf16.msra.mxu0 %v3232
        %3672 = vmatprep.subr.bf16.mxu0 0
        %3673 = vmatpush1.bf16.msra.mxu0 %v3233
        %3674 = vmatprep.subr.bf16.mxu0 0
        %3675 = vmatpush1.bf16.msra.mxu0 %v3234
        %3676 = vmatprep.subr.bf16.mxu0 0
        %3677 = vmatpush1.bf16.msra.mxu0 %v3235
        %3678 = vmatprep.subr.bf16.mxu0 0
        %3679 = vmatpush1.bf16.msra.mxu0 %v3236
        %3680 = vmatprep.subr.bf16.mxu0 0
        %3681 = vmatpush1.bf16.msra.mxu0 %v3237
        %3682 = vmatprep.subr.bf16.mxu0 0
        %3683 = vmatpush1.bf16.msra.mxu0 %v3238
        %3684 = vmatprep.subr.bf16.mxu0 0
        %3685 = vmatpush1.bf16.msra.mxu0 %v3239
        %3686 = vmatprep.subr.bf16.mxu0 0
        %3687 = vmatpush1.bf16.msra.mxu0 %v3240
        %3688 = vmatprep.subr.bf16.mxu0 0
        %3689 = vmatpush1.bf16.msra.mxu0 %v3241
        %3690 = vmatprep.subr.bf16.mxu0 0
        %3691 = vmatpush1.bf16.msra.mxu0 %v3242
        %3692 = vmatprep.subr.bf16.mxu0 0
        %3693 = vmatpush1.bf16.msra.mxu0 %v3243
        %3694 = vmatprep.mubr.bf16.mxu0 %v2014
        %3695 = vmatmul.mubr.bf16.gmra.mrb[0].mxu0 %v1997
        %v3696 = vpop.f32.mrb[0].mxu0
        %v3697 = vadd.f32 %v3536, %v3696
        %v3698 = vpop.f32.mrb[0].mxu0
        %v3699 = vpop.f32.mrb[0].mxu0
        %v3700 = vadd.f32 %v3539, %v3699
        %v3701 = vpop.f32.mrb[0].mxu0
        %3702 = vmatprep.mubr.bf16.mxu0 %v2057
        %3703 = vmatmul.mubr.bf16.gmra.mrb[0].mxu0 %v2040
        %v3704 = vpop.f32.mrb[0].mxu0
        %v3705 = vadd.f32 %v3544, %v3704
        %v3706 = vpop.f32.mrb[0].mxu0
        %v3707 = vpop.f32.mrb[0].mxu0
        %v3708 = vadd.f32 %v3547, %v3707
        %v3709 = vpop.f32.mrb[0].mxu0
        %3710 = vmatprep.mubr.bf16.mxu0 %v2100
        %3711 = vmatmul.mubr.bf16.gmra.mrb[0].mxu0 %v2083
        %v3712 = vpop.f32.mrb[0].mxu0
        %v3713 = vadd.f32 %v3552, %v3712
        %v3714 = vpop.f32.mrb[0].mxu0
        %v3715 = vpop.f32.mrb[0].mxu0
        %v3716 = vadd.f32 %v3555, %v3715
        %v3717 = vpop.f32.mrb[0].mxu0
        %3718 = vmatprep.mubr.bf16.mxu0 %v2143
        %3719 = vmatmul.mubr.bf16.gmra.mrb[0].mxu0 %v2126
        %v3720 = vpop.f32.mrb[0].mxu0
        %v3721 = vadd.f32 %v3560, %v3720
        %v3722 = vpop.f32.mrb[0].mxu0
        %v3723 = vpop.f32.mrb[0].mxu0
        %v3724 = vadd.f32 %v3563, %v3723
        %v3725 = vpop.f32.mrb[0].mxu0
        %3726 = vmatprep.mubr.bf16.mxu0 %v2186
        %3727 = vmatmul.mubr.bf16.gmra.mrb[0].mxu0 %v2169
        %v3728 = vpop.f32.mrb[0].mxu0
        %v3729 = vadd.f32 %v3568, %v3728
        %v3730 = vpop.f32.mrb[0].mxu0
        %v3731 = vpop.f32.mrb[0].mxu0
        %v3732 = vadd.f32 %v3571, %v3731
        %v3733 = vpop.f32.mrb[0].mxu0
        %3734 = vmatprep.mubr.bf16.mxu0 %v2229
        %3735 = vmatmul.mubr.bf16.gmra.mrb[0].mxu0 %v2212
        %v3736 = vpop.f32.mrb[0].mxu0
        %v3737 = vadd.f32 %v3576, %v3736
        %v3738 = vpop.f32.mrb[0].mxu0
        %v3739 = vpop.f32.mrb[0].mxu0
        %v3740 = vadd.f32 %v3579, %v3739
        %v3741 = vpop.f32.mrb[0].mxu0
        %3742 = vmatprep.mubr.bf16.mxu0 %v2272
        %3743 = vmatmul.mubr.bf16.gmra.mrb[0].mxu0 %v2255
        %v3744 = vpop.f32.mrb[0].mxu0
        %v3745 = vadd.f32 %v3584, %v3744
        %v3746 = vpop.f32.mrb[0].mxu0
        %v3747 = vpop.f32.mrb[0].mxu0
        %v3748 = vadd.f32 %v3587, %v3747
        %v3749 = vpop.f32.mrb[0].mxu0
        %3750 = vmatprep.mubr.bf16.mxu0 %v2315
        %3751 = vmatmul.mubr.bf16.gmra.mrb[0].mxu0 %v2298
        %v3752 = vpop.f32.mrb[0].mxu0
        %v3753 = vadd.f32 %v3592, %v3752
        %v3754 = vpop.f32.mrb[0].mxu0
        %v3755 = vpop.f32.mrb[0].mxu0
        %v3756 = vadd.f32 %v3595, %v3755
        %v3757 = vpop.f32.mrb[0].mxu0
        %3758 = vmatprep.mubr.bf16.mxu0 %v2358
        %3759 = vmatmul.mubr.bf16.gmra.mrb[0].mxu0 %v2341
        %v3760 = vpop.f32.mrb[0].mxu0
        %v3761 = vadd.f32 %v3600, %v3760
        %v3762 = vpop.f32.mrb[0].mxu0
        %v3763 = vpop.f32.mrb[0].mxu0
        %v3764 = vadd.f32 %v3603, %v3763
        %v3765 = vpop.f32.mrb[0].mxu0
        %3766 = vmatprep.mubr.bf16.mxu0 %v2401
        %3767 = vmatmul.mubr.bf16.gmra.mrb[0].mxu0 %v2384
        %v3768 = vpop.f32.mrb[0].mxu0
        %v3769 = vadd.f32 %v3608, %v3768
        %v3770 = vpop.f32.mrb[0].mxu0
        %v3771 = vpop.f32.mrb[0].mxu0
        %v3772 = vadd.f32 %v3611, %v3771
        %v3773 = vpop.f32.mrb[0].mxu0
        %3774 = vmatprep.mubr.bf16.mxu0 %v2444
        %3775 = vmatmul.mubr.bf16.gmra.mrb[0].mxu0 %v2427
        %v3776 = vpop.f32.mrb[0].mxu0
        %v3777 = vadd.f32 %v3616, %v3776
        %v3778 = vpop.f32.mrb[0].mxu0
        %v3779 = vpop.f32.mrb[0].mxu0
        %v3780 = vadd.f32 %v3619, %v3779
        %v3781 = vpop.f32.mrb[0].mxu0
        %3782 = vmatprep.mubr.bf16.mxu0 %v2487
        %3783 = vmatmul.mubr.bf16.gmra.mrb[0].mxu0 %v2470
        %v3784 = vpop.f32.mrb[0].mxu0
        %v3785 = vadd.f32 %v3624, %v3784
        %v3786 = vpop.f32.mrb[0].mxu0
        %v3787 = vpop.f32.mrb[0].mxu0
        %v3788 = vadd.f32 %v3627, %v3787
        %v3789 = vpop.f32.mrb[0].mxu0
        %3790 = vmatprep.mubr.bf16.mxu0 %v2530
        %3791 = vmatmul.mubr.bf16.gmra.mrb[0].mxu0 %v2513
        %v3792 = vpop.f32.mrb[0].mxu0
        %v3793 = vadd.f32 %v3632, %v3792
        %v3794 = vpop.f32.mrb[0].mxu0
        %v3795 = vpop.f32.mrb[0].mxu0
        %v3796 = vadd.f32 %v3635, %v3795
        %v3797 = vpop.f32.mrb[0].mxu0
        %3798 = vmatprep.mubr.bf16.mxu0 %v2573
        %3799 = vmatmul.mubr.bf16.gmra.mrb[0].mxu0 %v2556
        %v3800 = vpop.f32.mrb[0].mxu0
        %v3801 = vadd.f32 %v3640, %v3800
        %v3802 = vpop.f32.mrb[0].mxu0
        %v3803 = vpop.f32.mrb[0].mxu0
        %v3804 = vadd.f32 %v3643, %v3803
        %v3805 = vpop.f32.mrb[0].mxu0
        %3806 = vmatprep.mubr.bf16.mxu0 %v2616
        %3807 = vmatmul.mubr.bf16.gmra.mrb[0].mxu0 %v2599
        %v3808 = vpop.f32.mrb[0].mxu0
        %v3809 = vadd.f32 %v3648, %v3808
        %v3810 = vpop.f32.mrb[0].mxu0
        %v3811 = vpop.f32.mrb[0].mxu0
        %v3812 = vadd.f32 %v3651, %v3811
        %v3813 = vpop.f32.mrb[0].mxu0
        %3814 = vmatprep.mubr.bf16.mxu0 %v2659
        %3815 = vmatmul.mubr.bf16.gmra.mrb[0].mxu0 %v2642
        %v3816 = vpop.f32.mrb[0].mxu0
        %v3817 = vadd.f32 %v3656, %v3816
        %v3818 = vpop.f32.mrb[0].mxu0
        %v3819 = vpop.f32.mrb[0].mxu0
        %v3820 = vadd.f32 %v3659, %v3819
        %v3821 = vpop.f32.mrb[0].mxu0
        %3822 = vdwg.mxu0
        %3823 = vmatprep.subr.bf16.mxu0 0
        %3824 = vmatpush1.bf16.msra.mxu0 %v3244
        %3825 = vmatprep.subr.bf16.mxu0 0
        %3826 = vmatpush1.bf16.msra.mxu0 %v3245
        %3827 = vmatprep.subr.bf16.mxu0 0
        %3828 = vmatpush1.bf16.msra.mxu0 %v3246
        %3829 = vmatprep.subr.bf16.mxu0 0
        %3830 = vmatpush1.bf16.msra.mxu0 %v3247
        %3831 = vmatprep.subr.bf16.mxu0 0
        %3832 = vmatpush1.bf16.msra.mxu0 %v3248
        %3833 = vmatprep.subr.bf16.mxu0 0
        %3834 = vmatpush1.bf16.msra.mxu0 %v3249
        %3835 = vmatprep.subr.bf16.mxu0 0
        %3836 = vmatpush1.bf16.msra.mxu0 %v3250
        %3837 = vmatprep.subr.bf16.mxu0 0
        %3838 = vmatpush1.bf16.msra.mxu0 %v3251
        %3839 = vmatprep.subr.bf16.mxu0 0
        %3840 = vmatpush1.bf16.msra.mxu0 %v3252
        %3841 = vmatprep.subr.bf16.mxu0 0
        %3842 = vmatpush1.bf16.msra.mxu0 %v3253
        %3843 = vmatprep.subr.bf16.mxu0 0
        %3844 = vmatpush1.bf16.msra.mxu0 %v3254
        %3845 = vmatprep.subr.bf16.mxu0 0
        %3846 = vmatpush1.bf16.msra.mxu0 %v3255
        %3847 = vmatprep.subr.bf16.mxu0 0
        %3848 = vmatpush1.bf16.msra.mxu0 %v3256
        %3849 = vmatprep.subr.bf16.mxu0 0
        %3850 = vmatpush1.bf16.msra.mxu0 %v3257
        %3851 = vmatprep.subr.bf16.mxu0 0
        %3852 = vmatpush1.bf16.msra.mxu0 %v3258
        %3853 = vmatprep.subr.bf16.mxu0 0
        %3854 = vmatpush1.bf16.msra.mxu0 %v3259
        %3855 = vmatprep.mubr.bf16.mxu0 %v2040
        %3856 = vmatmul.mubr.bf16.gmra.mrb[0].mxu0 %v2031
        %v3857 = vpop.f32.mrb[0].mxu0
        %v3858 = vadd.f32 %v3697, %v3857
        %v3859 = vpop.f32.mrb[0].mxu0
        %v3860 = vpop.f32.mrb[0].mxu0
        %v3861 = vadd.f32 %v3700, %v3860
        %v3862 = vpop.f32.mrb[0].mxu0
        %3863 = vmatprep.mubr.bf16.mxu0 %v2083
        %3864 = vmatmul.mubr.bf16.gmra.mrb[0].mxu0 %v2074
        %v3865 = vpop.f32.mrb[0].mxu0
        %v3866 = vadd.f32 %v3705, %v3865
        %v3867 = vpop.f32.mrb[0].mxu0
        %v3868 = vpop.f32.mrb[0].mxu0
        %v3869 = vadd.f32 %v3708, %v3868
        %v3870 = vpop.f32.mrb[0].mxu0
        %3871 = vmatprep.mubr.bf16.mxu0 %v2126
        %3872 = vmatmul.mubr.bf16.gmra.mrb[0].mxu0 %v2117
        %v3873 = vpop.f32.mrb[0].mxu0
        %v3874 = vadd.f32 %v3713, %v3873
        %v3875 = vpop.f32.mrb[0].mxu0
        %v3876 = vpop.f32.mrb[0].mxu0
        %v3877 = vadd.f32 %v3716, %v3876
        %v3878 = vpop.f32.mrb[0].mxu0
        %3879 = vmatprep.mubr.bf16.mxu0 %v2169
        %3880 = vmatmul.mubr.bf16.gmra.mrb[0].mxu0 %v2160
        %v3881 = vpop.f32.mrb[0].mxu0
        %v3882 = vadd.f32 %v3721, %v3881
        %v3883 = vpop.f32.mrb[0].mxu0
        %v3884 = vpop.f32.mrb[0].mxu0
        %v3885 = vadd.f32 %v3724, %v3884
        %v3886 = vpop.f32.mrb[0].mxu0
        %3887 = vmatprep.mubr.bf16.mxu0 %v2212
        %3888 = vmatmul.mubr.bf16.gmra.mrb[0].mxu0 %v2203
        %v3889 = vpop.f32.mrb[0].mxu0
        %v3890 = vadd.f32 %v3729, %v3889
        %v3891 = vpop.f32.mrb[0].mxu0
        %v3892 = vpop.f32.mrb[0].mxu0
        %v3893 = vadd.f32 %v3732, %v3892
        %v3894 = vpop.f32.mrb[0].mxu0
        %3895 = vmatprep.mubr.bf16.mxu0 %v2255
        %3896 = vmatmul.mubr.bf16.gmra.mrb[0].mxu0 %v2246
        %v3897 = vpop.f32.mrb[0].mxu0
        %v3898 = vadd.f32 %v3737, %v3897
        %v3899 = vpop.f32.mrb[0].mxu0
        %v3900 = vpop.f32.mrb[0].mxu0
        %v3901 = vadd.f32 %v3740, %v3900
        %v3902 = vpop.f32.mrb[0].mxu0
        %3903 = vmatprep.mubr.bf16.mxu0 %v2298
        %3904 = vmatmul.mubr.bf16.gmra.mrb[0].mxu0 %v2289
        %v3905 = vpop.f32.mrb[0].mxu0
        %v3906 = vadd.f32 %v3745, %v3905
        %v3907 = vpop.f32.mrb[0].mxu0
        %v3908 = vpop.f32.mrb[0].mxu0
        %v3909 = vadd.f32 %v3748, %v3908
        %v3910 = vpop.f32.mrb[0].mxu0
        %3911 = vmatprep.mubr.bf16.mxu0 %v2341
        %3912 = vmatmul.mubr.bf16.gmra.mrb[0].mxu0 %v2332
        %v3913 = vpop.f32.mrb[0].mxu0
        %v3914 = vadd.f32 %v3753, %v3913
        %v3915 = vpop.f32.mrb[0].mxu0
        %v3916 = vpop.f32.mrb[0].mxu0
        %v3917 = vadd.f32 %v3756, %v3916
        %v3918 = vpop.f32.mrb[0].mxu0
        %3919 = vmatprep.mubr.bf16.mxu0 %v2384
        %3920 = vmatmul.mubr.bf16.gmra.mrb[0].mxu0 %v2375
        %v3921 = vpop.f32.mrb[0].mxu0
        %v3922 = vadd.f32 %v3761, %v3921
        %v3923 = vpop.f32.mrb[0].mxu0
        %v3924 = vpop.f32.mrb[0].mxu0
        %v3925 = vadd.f32 %v3764, %v3924
        %v3926 = vpop.f32.mrb[0].mxu0
        %3927 = vmatprep.mubr.bf16.mxu0 %v2427
        %3928 = vmatmul.mubr.bf16.gmra.mrb[0].mxu0 %v2418
        %v3929 = vpop.f32.mrb[0].mxu0
        %v3930 = vadd.f32 %v3769, %v3929
        %v3931 = vpop.f32.mrb[0].mxu0
        %v3932 = vpop.f32.mrb[0].mxu0
        %v3933 = vadd.f32 %v3772, %v3932
        %v3934 = vpop.f32.mrb[0].mxu0
        %3935 = vmatprep.mubr.bf16.mxu0 %v2470
        %3936 = vmatmul.mubr.bf16.gmra.mrb[0].mxu0 %v2461
        %v3937 = vpop.f32.mrb[0].mxu0
        %v3938 = vadd.f32 %v3777, %v3937
        %v3939 = vpop.f32.mrb[0].mxu0
        %v3940 = vpop.f32.mrb[0].mxu0
        %v3941 = vadd.f32 %v3780, %v3940
        %v3942 = vpop.f32.mrb[0].mxu0
        %3943 = vmatprep.mubr.bf16.mxu0 %v2513
        %3944 = vmatmul.mubr.bf16.gmra.mrb[0].mxu0 %v2504
        %v3945 = vpop.f32.mrb[0].mxu0
        %v3946 = vadd.f32 %v3785, %v3945
        %v3947 = vpop.f32.mrb[0].mxu0
        %v3948 = vpop.f32.mrb[0].mxu0
        %v3949 = vadd.f32 %v3788, %v3948
        %v3950 = vpop.f32.mrb[0].mxu0
        %3951 = vmatprep.mubr.bf16.mxu0 %v2556
        %3952 = vmatmul.mubr.bf16.gmra.mrb[0].mxu0 %v2547
        %v3953 = vpop.f32.mrb[0].mxu0
        %v3954 = vadd.f32 %v3793, %v3953
        %v3955 = vpop.f32.mrb[0].mxu0
        %v3956 = vpop.f32.mrb[0].mxu0
        %v3957 = vadd.f32 %v3796, %v3956
        %v3958 = vpop.f32.mrb[0].mxu0
        %3959 = vmatprep.mubr.bf16.mxu0 %v2599
        %3960 = vmatmul.mubr.bf16.gmra.mrb[0].mxu0 %v2590
        %v3961 = vpop.f32.mrb[0].mxu0
        %v3962 = vadd.f32 %v3801, %v3961
        %v3963 = vpop.f32.mrb[0].mxu0
        %v3964 = vpop.f32.mrb[0].mxu0
        %v3965 = vadd.f32 %v3804, %v3964
        %v3966 = vpop.f32.mrb[0].mxu0
        %3967 = vmatprep.mubr.bf16.mxu0 %v2642
        %3968 = vmatmul.mubr.bf16.gmra.mrb[0].mxu0 %v2633
        %v3969 = vpop.f32.mrb[0].mxu0
        %v3970 = vadd.f32 %v3809, %v3969
        %v3971 = vpop.f32.mrb[0].mxu0
        %v3972 = vpop.f32.mrb[0].mxu0
        %v3973 = vadd.f32 %v3812, %v3972
        %v3974 = vpop.f32.mrb[0].mxu0
        %3975 = vmatprep.mubr.bf16.mxu0 %v2685
        %3976 = vmatmul.mubr.bf16.gmra.mrb[0].mxu0 %v2676
        %v3977 = vpop.f32.mrb[0].mxu0
        %v3978 = vadd.f32 %v3817, %v3977
        %v3979 = vpop.f32.mrb[0].mxu0
        %v3980 = vpop.f32.mrb[0].mxu0
        %v3981 = vadd.f32 %v3820, %v3980
        %v3982 = vpop.f32.mrb[0].mxu0
        %3983 = vdwg.mxu0
        %3984 = vmatprep.subr.bf16.mxu0 0
        %3985 = vmatpush1.bf16.msra.mxu0 %v3260
        %3986 = vmatprep.subr.bf16.mxu0 0
        %3987 = vmatpush1.bf16.msra.mxu0 %v3261
        %3988 = vmatprep.subr.bf16.mxu0 0
        %3989 = vmatpush1.bf16.msra.mxu0 %v3262
        %3990 = vmatprep.subr.bf16.mxu0 0
        %3991 = vmatpush1.bf16.msra.mxu0 %v3263
        %3992 = vmatprep.subr.bf16.mxu0 0
        %3993 = vmatpush1.bf16.msra.mxu0 %v3264
        %3994 = vmatprep.subr.bf16.mxu0 0
        %3995 = vmatpush1.bf16.msra.mxu0 %v3265
        %3996 = vmatprep.subr.bf16.mxu0 0
        %3997 = vmatpush1.bf16.msra.mxu0 %v3266
        %3998 = vmatprep.subr.bf16.mxu0 0
        %3999 = vmatpush1.bf16.msra.mxu0 %v3267
        %4000 = vmatprep.subr.bf16.mxu0 0
        %4001 = vmatpush1.bf16.msra.mxu0 0
        %4002 = vmatprep.subr.bf16.mxu0 0
        %4003 = vmatpush1.bf16.msra.mxu0 0
        %4004 = vmatprep.subr.bf16.mxu0 0
        %4005 = vmatpush1.bf16.msra.mxu0 0
        %4006 = vmatprep.subr.bf16.mxu0 0
        %4007 = vmatpush1.bf16.msra.mxu0 0
        %4008 = vmatprep.subr.bf16.mxu0 0
        %4009 = vmatpush1.bf16.msra.mxu0 0
        %4010 = vmatprep.subr.bf16.mxu0 0
        %4011 = vmatpush1.bf16.msra.mxu0 0
        %4012 = vmatprep.subr.bf16.mxu0 0
        %4013 = vmatpush1.bf16.msra.mxu0 0
        %4014 = vmatprep.subr.bf16.mxu0 0
        %4015 = vmatpush1.bf16.msra.mxu0 0
        %4016 = vmatprep.mubr.bf16.mxu0 0
        %4017 = vmatmul.mubr.bf16.gmra.mrb[0].mxu0 %v2057
        %v4018 = vpop.f32.mrb[0].mxu0
        %v4019 = vadd.f32 %v3858, %v4018
        %v4020 = vpop.f32.mrb[0].mxu0
        %v4021 = vpop.f32.mrb[0].mxu0
        %v4022 = vadd.f32 %v3861, %v4021
        %v4023 = vpop.f32.mrb[0].mxu0
        %4024 = vmatprep.mubr.bf16.mxu0 0
        %4025 = vmatmul.mubr.bf16.gmra.mrb[0].mxu0 %v2100
        %v4026 = vpop.f32.mrb[0].mxu0
        %v4027 = vadd.f32 %v3866, %v4026
        %v4028 = vpop.f32.mrb[0].mxu0
        %v4029 = vpop.f32.mrb[0].mxu0
        %v4030 = vadd.f32 %v3869, %v4029
        %v4031 = vpop.f32.mrb[0].mxu0
        %4032 = vmatprep.mubr.bf16.mxu0 0
        %4033 = vmatmul.mubr.bf16.gmra.mrb[0].mxu0 %v2143
        %v4034 = vpop.f32.mrb[0].mxu0
        %v4035 = vadd.f32 %v3874, %v4034
        %v4036 = vpop.f32.mrb[0].mxu0
        %v4037 = vpop.f32.mrb[0].mxu0
        %v4038 = vadd.f32 %v3877, %v4037
        %v4039 = vpop.f32.mrb[0].mxu0
        %4040 = vmatprep.mubr.bf16.mxu0 0
        %4041 = vmatmul.mubr.bf16.gmra.mrb[0].mxu0 %v2186
        %v4042 = vpop.f32.mrb[0].mxu0
        %v4043 = vadd.f32 %v3882, %v4042
        %v4044 = vpop.f32.mrb[0].mxu0
        %v4045 = vpop.f32.mrb[0].mxu0
        %v4046 = vadd.f32 %v3885, %v4045
        %v4047 = vpop.f32.mrb[0].mxu0
        %4048 = vmatprep.mubr.bf16.mxu0 0
        %4049 = vmatmul.mubr.bf16.gmra.mrb[0].mxu0 %v2229
        %v4050 = vpop.f32.mrb[0].mxu0
        %v4051 = vadd.f32 %v3890, %v4050
        %v4052 = vpop.f32.mrb[0].mxu0
        %v4053 = vpop.f32.mrb[0].mxu0
        %v4054 = vadd.f32 %v3893, %v4053
        %v4055 = vpop.f32.mrb[0].mxu0
        %4056 = vmatprep.mubr.bf16.mxu0 0
        %4057 = vmatmul.mubr.bf16.gmra.mrb[0].mxu0 %v2272
        %v4058 = vpop.f32.mrb[0].mxu0
        %v4059 = vadd.f32 %v3898, %v4058
        %v4060 = vpop.f32.mrb[0].mxu0
        %v4061 = vpop.f32.mrb[0].mxu0
        %v4062 = vadd.f32 %v3901, %v4061
        %v4063 = vpop.f32.mrb[0].mxu0
        %4064 = vmatprep.mubr.bf16.mxu0 0
        %4065 = vmatmul.mubr.bf16.gmra.mrb[0].mxu0 %v2315
        %v4066 = vpop.f32.mrb[0].mxu0
        %v4067 = vadd.f32 %v3906, %v4066
        %v4068 = vpop.f32.mrb[0].mxu0
        %v4069 = vpop.f32.mrb[0].mxu0
        %v4070 = vadd.f32 %v3909, %v4069
        %v4071 = vpop.f32.mrb[0].mxu0
        %4072 = vmatprep.mubr.bf16.mxu0 0
        %4073 = vmatmul.mubr.bf16.gmra.mrb[0].mxu0 %v2358
        %v4074 = vpop.f32.mrb[0].mxu0
        %v4075 = vadd.f32 %v3914, %v4074
        %v4076 = vpop.f32.mrb[0].mxu0
        %v4077 = vpop.f32.mrb[0].mxu0
        %v4078 = vadd.f32 %v3917, %v4077
        %v4079 = vpop.f32.mrb[0].mxu0
        %4080 = vmatprep.mubr.bf16.mxu0 0
        %4081 = vmatmul.mubr.bf16.gmra.mrb[0].mxu0 %v2401
        %v4082 = vpop.f32.mrb[0].mxu0
        %v4083 = vadd.f32 %v3922, %v4082
        %v4084 = vpop.f32.mrb[0].mxu0
        %v4085 = vpop.f32.mrb[0].mxu0
        %v4086 = vadd.f32 %v3925, %v4085
        %v4087 = vpop.f32.mrb[0].mxu0
        %4088 = vmatprep.mubr.bf16.mxu0 0
        %4089 = vmatmul.mubr.bf16.gmra.mrb[0].mxu0 %v2444
        %v4090 = vpop.f32.mrb[0].mxu0
        %v4091 = vadd.f32 %v3930, %v4090
        %v4092 = vpop.f32.mrb[0].mxu0
        %v4093 = vpop.f32.mrb[0].mxu0
        %v4094 = vadd.f32 %v3933, %v4093
        %v4095 = vpop.f32.mrb[0].mxu0
        %4096 = vmatprep.mubr.bf16.mxu0 0
        %4097 = vmatmul.mubr.bf16.gmra.mrb[0].mxu0 %v2487
        %v4098 = vpop.f32.mrb[0].mxu0
        %v4099 = vadd.f32 %v3938, %v4098
        %v4100 = vpop.f32.mrb[0].mxu0
        %v4101 = vpop.f32.mrb[0].mxu0
        %v4102 = vadd.f32 %v3941, %v4101
        %v4103 = vpop.f32.mrb[0].mxu0
        %4104 = vmatprep.mubr.bf16.mxu0 0
        %4105 = vmatmul.mubr.bf16.gmra.mrb[0].mxu0 %v2530
        %v4106 = vpop.f32.mrb[0].mxu0
        %v4107 = vadd.f32 %v3946, %v4106
        %v4108 = vpop.f32.mrb[0].mxu0
        %v4109 = vpop.f32.mrb[0].mxu0
        %v4110 = vadd.f32 %v3949, %v4109
        %v4111 = vpop.f32.mrb[0].mxu0
        %4112 = vmatprep.mubr.bf16.mxu0 0
        %4113 = vmatmul.mubr.bf16.gmra.mrb[0].mxu0 %v2573
        %v4114 = vpop.f32.mrb[0].mxu0
        %v4115 = vadd.f32 %v3954, %v4114
        %v4116 = vpop.f32.mrb[0].mxu0
        %v4117 = vpop.f32.mrb[0].mxu0
        %v4118 = vadd.f32 %v3957, %v4117
        %v4119 = vpop.f32.mrb[0].mxu0
        %4120 = vmatprep.mubr.bf16.mxu0 0
        %4121 = vmatmul.mubr.bf16.gmra.mrb[0].mxu0 %v2616
        %v4122 = vpop.f32.mrb[0].mxu0
        %v4123 = vadd.f32 %v3962, %v4122
        %v4124 = vpop.f32.mrb[0].mxu0
        %v4125 = vpop.f32.mrb[0].mxu0
        %v4126 = vadd.f32 %v3965, %v4125
        %v4127 = vpop.f32.mrb[0].mxu0
        %4128 = vmatprep.mubr.bf16.mxu0 0
        %4129 = vmatmul.mubr.bf16.gmra.mrb[0].mxu0 %v2659
        %v4130 = vpop.f32.mrb[0].mxu0
        %v4131 = vadd.f32 %v3970, %v4130
        %v4132 = vpop.f32.mrb[0].mxu0
        %v4133 = vpop.f32.mrb[0].mxu0
        %v4134 = vadd.f32 %v3973, %v4133
        %v4135 = vpop.f32.mrb[0].mxu0
        %4136 = vmatprep.mubr.bf16.mxu0 0
        %4137 = vmatmul.mubr.bf16.gmra.mrb[0].mxu0 %v2702
        %v4138 = vpop.f32.mrb[0].mxu0
        %v4139 = vadd.f32 %v3978, %v4138
        %v4140 = vpop.f32.mrb[0].mxu0
        %v4141 = vpop.f32.mrb[0].mxu0
        %v4142 = vadd.f32 %v3981, %v4141
        %v4143 = vpop.f32.mrb[0].mxu0
        %4144 = vdwg.mxu0
        %v4145 = vmax.f32 %v4019, 0.0
        %v4146 = vmax.f32 %v4022, 0.0
        %v4147 = vmax.f32 %v4027, 0.0
        %v4148 = vmax.f32 %v4030, 0.0
        %v4149 = vmax.f32 %v4035, 0.0
        %v4150 = vmax.f32 %v4038, 0.0
        %v4151 = vmax.f32 %v4043, 0.0
        %v4152 = vmax.f32 %v4046, 0.0
        %v4153 = vmax.f32 %v4051, 0.0
        %v4154 = vmax.f32 %v4054, 0.0
        %v4155 = vmax.f32 %v4059, 0.0
        %v4156 = vmax.f32 %v4062, 0.0
        %v4157 = vmax.f32 %v4067, 0.0
        %v4158 = vmax.f32 %v4070, 0.0
        %v4159 = vmax.f32 %v4075, 0.0
        %v4160 = vmax.f32 %v4078, 0.0
        %v4161 = vmax.f32 %v4083, 0.0
        %v4162 = vmax.f32 %v4086, 0.0
        %v4163 = vmax.f32 %v4091, 0.0
        %v4164 = vmax.f32 %v4094, 0.0
        %v4165 = vmax.f32 %v4099, 0.0
        %v4166 = vmax.f32 %v4102, 0.0
        %v4167 = vmax.f32 %v4107, 0.0
        %v4168 = vmax.f32 %v4110, 0.0
        %v4169 = vmax.f32 %v4115, 0.0
        %v4170 = vmax.f32 %v4118, 0.0
        %v4171 = vmax.f32 %v4123, 0.0
        %v4172 = vmax.f32 %v4126, 0.0
        %v4173 = vmax.f32 %v4131, 0.0
        %v4174 = vmax.f32 %v4134, 0.0
        %v4175 = vmax.f32 %v4139, 0.0
        %v4176 = vmax.f32 %v4142, 0.0
        %v4177 = vpack.c.bf16 %v4146, %v4145
        %v4178 = vpack.c.bf16 %v4148, %v4147
        %v4179 = vpack.c.bf16 %v4150, %v4149
        %v4180 = vpack.c.bf16 %v4152, %v4151
        %v4181 = vpack.c.bf16 %v4154, %v4153
        %v4182 = vpack.c.bf16 %v4156, %v4155
        %v4183 = vpack.c.bf16 %v4158, %v4157
        %v4184 = vpack.c.bf16 %v4160, %v4159
        %v4185 = vpack.c.bf16 %v4162, %v4161
        %v4186 = vpack.c.bf16 %v4164, %v4163
        %v4187 = vpack.c.bf16 %v4166, %v4165
        %v4188 = vpack.c.bf16 %v4168, %v4167
        %v4189 = vpack.c.bf16 %v4170, %v4169
        %v4190 = vpack.c.bf16 %v4172, %v4171
        %v4191 = vpack.c.bf16 %v4174, %v4173
        %v4192 = vpack.c.bf16 %v4176, %v4175
        %v4193 = vld [vmem:[#allocation9] sm:$0xff]
        %v4194 = vld [vmem:[#allocation9 + $0x8] sm:$0xff]
        %v4195 = vld [vmem:[#allocation9 + $0x10] sm:$0xff]
        %v4196 = vld [vmem:[#allocation9 + $0x18] sm:$0xff]
        %v4197 = vld [vmem:[#allocation9 + $0x20] sm:$0xff]
        %v4198 = vld [vmem:[#allocation9 + $0x28] sm:$0xff]
        %v4199 = vld [vmem:[#allocation9 + $0x30] sm:$0xff]
        %v4200 = vld [vmem:[#allocation9 + $0x38] sm:$0xff]
        %v4201 = vld [vmem:[#allocation9 + $0x40] sm:$0xff]
        %v4202 = vld [vmem:[#allocation9 + $0x48] sm:$0xff]
        %v4203 = vld [vmem:[#allocation9 + $0x50] sm:$0xff]
        %v4204 = vld [vmem:[#allocation9 + $0x58] sm:$0xff]
        %v4205 = vld [vmem:[#allocation9 + $0x60] sm:$0xff]
        %v4206 = vld [vmem:[#allocation9 + $0x68] sm:$0xff]
        %v4207 = vld [vmem:[#allocation9 + $0x70] sm:$0xff]
        %v4208 = vld [vmem:[#allocation9 + $0x78] sm:$0xff]
        %v4209 = vld [vmem:[#allocation9 + $0x80] sm:$0xff]
        %v4210 = vld [vmem:[#allocation9 + $0x88] sm:$0xff]
        %v4211 = vld [vmem:[#allocation9 + $0x90] sm:$0xff]
        %v4212 = vld [vmem:[#allocation9 + $0x98] sm:$0xff]
        %v4213 = vld [vmem:[#allocation9 + $0xa0] sm:$0xff]
        %v4214 = vld [vmem:[#allocation9 + $0xa8] sm:$0xff]
        %v4215 = vld [vmem:[#allocation9 + $0xb0] sm:$0xff]
        %v4216 = vld [vmem:[#allocation9 + $0xb8] sm:$0xff]
        %v4217 = vld [vmem:[#allocation9 + $0xc0] sm:$0xff]
        %v4218 = vld [vmem:[#allocation9 + $0xc8] sm:$0xff]
        %v4219 = vld [vmem:[#allocation9 + $0xd0] sm:$0xff]
        %v4220 = vld [vmem:[#allocation9 + $0xd8] sm:$0xff]
        %v4221 = vld [vmem:[#allocation9 + $0xe0] sm:$0xff]
        %v4222 = vld [vmem:[#allocation9 + $0xe8] sm:$0xff]
        %v4223 = vld [vmem:[#allocation9 + $0xf0] sm:$0xff]
        %v4224 = vld [vmem:[#allocation9 + $0xf8] sm:$0xff]
        %v4225 = vld [vmem:[%s6] sm:$0xf]
        %v4227 = vlaneseq
        %v4228 = vshrl.u32 %v4227, 7
        %v4229 = vsub.s32 0, %v4228
        %v4230 = vrot.slane %v4225, %v4229
        %v4231 = vlaneseq
        %v4232 = vshrl.u32 %v4231, 7
        %v4233 = vsub.s32 1, %v4232
        %v4234 = vrot.slane %v4225, %v4233
        %v4235 = vlaneseq
        %v4236 = vshrl.u32 %v4235, 7
        %v4237 = vsub.s32 2, %v4236
        %v4238 = vrot.slane %v4225, %v4237
        %v4239 = vlaneseq
        %v4240 = vshrl.u32 %v4239, 7
        %v4241 = vsub.s32 3, %v4240
        %v4242 = vrot.slane %v4225, %v4241
        %v4279 = vunpack.c.l.b16 %v4193
        %v4280 = vunpack.c.h.b16 %v4193
        %v4281 = vunpack.c.l.b16 %v4194
        %v4282 = vunpack.c.h.b16 %v4194
        %v4283 = vunpack.c.l.b16 %v4195
        %v4284 = vunpack.c.h.b16 %v4195
        %v4285 = vunpack.c.l.b16 %v4196
        %v4286 = vunpack.c.h.b16 %v4196
        %v4287 = vunpack.c.l.b16 %v4197
        %v4288 = vunpack.c.h.b16 %v4197
        %v4289 = vunpack.c.l.b16 %v4198
        %v4290 = vunpack.c.h.b16 %v4198
        %v4291 = vunpack.c.l.b16 %v4199
        %v4292 = vunpack.c.h.b16 %v4199
        %v4293 = vunpack.c.l.b16 %v4200
        %v4294 = vunpack.c.h.b16 %v4200
        %v4295 = vunpack.c.l.b16 %v4201
        %v4296 = vunpack.c.h.b16 %v4201
        %v4297 = vunpack.c.l.b16 %v4202
        %v4298 = vunpack.c.h.b16 %v4202
        %v4299 = vunpack.c.l.b16 %v4203
        %v4300 = vunpack.c.h.b16 %v4203
        %v4301 = vunpack.c.l.b16 %v4204
        %v4302 = vunpack.c.h.b16 %v4204
        %v4303 = vunpack.c.l.b16 %v4205
        %v4304 = vunpack.c.h.b16 %v4205
        %v4305 = vunpack.c.l.b16 %v4206
        %v4306 = vunpack.c.h.b16 %v4206
        %v4307 = vunpack.c.l.b16 %v4207
        %v4308 = vunpack.c.h.b16 %v4207
        %v4309 = vunpack.c.l.b16 %v4208
        %v4310 = vunpack.c.h.b16 %v4208
        %v4311 = vunpack.c.l.b16 %v4209
        %v4312 = vunpack.c.h.b16 %v4209
        %v4313 = vunpack.c.l.b16 %v4210
        %v4314 = vunpack.c.h.b16 %v4210
        %v4315 = vunpack.c.l.b16 %v4211
        %v4316 = vunpack.c.h.b16 %v4211
        %v4317 = vunpack.c.l.b16 %v4212
        %v4318 = vunpack.c.h.b16 %v4212
        %v4319 = vunpack.c.l.b16 %v4213
        %v4320 = vunpack.c.h.b16 %v4213
        %v4321 = vunpack.c.l.b16 %v4214
        %v4322 = vunpack.c.h.b16 %v4214
        %v4323 = vunpack.c.l.b16 %v4215
        %v4324 = vunpack.c.h.b16 %v4215
        %v4325 = vunpack.c.l.b16 %v4216
        %v4326 = vunpack.c.h.b16 %v4216
        %v4327 = vunpack.c.l.b16 %v4217
        %v4328 = vunpack.c.h.b16 %v4217
        %v4329 = vunpack.c.l.b16 %v4218
        %v4330 = vunpack.c.h.b16 %v4218
        %v4331 = vunpack.c.l.b16 %v4219
        %v4332 = vunpack.c.h.b16 %v4219
        %v4333 = vunpack.c.l.b16 %v4220
        %v4334 = vunpack.c.h.b16 %v4220
        %v4335 = vunpack.c.l.b16 %v4221
        %v4336 = vunpack.c.h.b16 %v4221
        %v4337 = vunpack.c.l.b16 %v4222
        %v4338 = vunpack.c.h.b16 %v4222
        %v4339 = vunpack.c.l.b16 %v4223
        %v4340 = vunpack.c.h.b16 %v4223
        %v4341 = vunpack.c.l.b16 %v4224
        %v4342 = vunpack.c.h.b16 %v4224
        %v4343 = vpack.c.b16 %v4283, %v4279
        %v4344 = vpack.c.b16 %v4284, %v4280
        %v4345 = vpack.c.b16 %v4285, %v4281
        %v4346 = vpack.c.b16 %v4286, %v4282
        %v4347 = vpack.c.b16 %v4291, %v4287
        %v4348 = vpack.c.b16 %v4292, %v4288
        %v4349 = vpack.c.b16 %v4293, %v4289
        %v4350 = vpack.c.b16 %v4294, %v4290
        %v4351 = vpack.c.b16 %v4299, %v4295
        %v4352 = vpack.c.b16 %v4300, %v4296
        %v4353 = vpack.c.b16 %v4301, %v4297
        %v4354 = vpack.c.b16 %v4302, %v4298
        %v4355 = vpack.c.b16 %v4307, %v4303
        %v4356 = vpack.c.b16 %v4308, %v4304
        %v4357 = vpack.c.b16 %v4309, %v4305
        %v4358 = vpack.c.b16 %v4310, %v4306
        %v4359 = vpack.c.b16 %v4315, %v4311
        %v4360 = vpack.c.b16 %v4316, %v4312
        %v4361 = vpack.c.b16 %v4317, %v4313
        %v4362 = vpack.c.b16 %v4318, %v4314
        %v4363 = vpack.c.b16 %v4323, %v4319
        %v4364 = vpack.c.b16 %v4324, %v4320
        %v4365 = vpack.c.b16 %v4325, %v4321
        %v4366 = vpack.c.b16 %v4326, %v4322
        %v4367 = vpack.c.b16 %v4331, %v4327
        %v4368 = vpack.c.b16 %v4332, %v4328
        %v4369 = vpack.c.b16 %v4333, %v4329
        %v4370 = vpack.c.b16 %v4334, %v4330
        %v4371 = vpack.c.b16 %v4339, %v4335
        %v4372 = vpack.c.b16 %v4340, %v4336
        %v4373 = vpack.c.b16 %v4341, %v4337
        %v4374 = vpack.c.b16 %v4342, %v4338
        %4407 = vmatprep.subr.bf16.mxu0 %v4344
        %4408 = vmatpush1.bf16.msra.mxu0 %v4343
        %4409 = vmatprep.subr.bf16.mxu0 %v4348
        %4410 = vmatpush1.bf16.msra.mxu0 %v4347
        %4411 = vmatprep.subr.bf16.mxu0 %v4352
        %4412 = vmatpush1.bf16.msra.mxu0 %v4351
        %4413 = vmatprep.subr.bf16.mxu0 %v4356
        %4414 = vmatpush1.bf16.msra.mxu0 %v4355
        %4415 = vmatprep.subr.bf16.mxu0 %v4360
        %4416 = vmatpush1.bf16.msra.mxu0 %v4359
        %4417 = vmatprep.subr.bf16.mxu0 %v4364
        %4418 = vmatpush1.bf16.msra.mxu0 %v4363
        %4419 = vmatprep.subr.bf16.mxu0 %v4368
        %4420 = vmatpush1.bf16.msra.mxu0 %v4367
        %4421 = vmatprep.subr.bf16.mxu0 %v4372
        %4422 = vmatpush1.bf16.msra.mxu0 %v4371
        %4423 = vmatprep.subr.bf16.mxu0 0
        %4424 = vmatpush1.bf16.msra.mxu0 0
        %4425 = vmatprep.subr.bf16.mxu0 0
        %4426 = vmatpush1.bf16.msra.mxu0 0
        %4427 = vmatprep.subr.bf16.mxu0 0
        %4428 = vmatpush1.bf16.msra.mxu0 0
        %4429 = vmatprep.subr.bf16.mxu0 0
        %4430 = vmatpush1.bf16.msra.mxu0 0
        %4431 = vmatprep.subr.bf16.mxu0 0
        %4432 = vmatpush1.bf16.msra.mxu0 0
        %4433 = vmatprep.subr.bf16.mxu0 0
        %4434 = vmatpush1.bf16.msra.mxu0 0
        %4435 = vmatprep.subr.bf16.mxu0 0
        %4436 = vmatpush1.bf16.msra.mxu0 0
        %4437 = vmatprep.subr.bf16.mxu0 0
        %4438 = vmatpush1.bf16.msra.mxu0 0
        %4439 = vmatprep.mubr.bf16.mxu0 0
        %4440 = vmatmul.mubr.bf16.gmra.mrb[0].mxu0 %v4177
        %v4441 = vpop.f32.mrb[0].mxu0
        %v4442 = vadd.f32 %v4230, %v4441
        %v4443 = vpop.f32.mrb[0].mxu0
        %v4444 = vadd.f32 %v4234, %v4443
        %v4445 = vpop.f32.mrb[0].mxu0
        %v4446 = vadd.f32 %v4230, %v4445
        %v4447 = vpop.f32.mrb[0].mxu0
        %v4448 = vadd.f32 %v4234, %v4447
        %4449 = vmatprep.mubr.bf16.mxu0 0
        %4450 = vmatmul.mubr.bf16.gmra.mrb[0].mxu0 %v4178
        %v4451 = vpop.f32.mrb[0].mxu0
        %v4452 = vadd.f32 %v4230, %v4451
        %v4453 = vpop.f32.mrb[0].mxu0
        %v4454 = vadd.f32 %v4234, %v4453
        %v4455 = vpop.f32.mrb[0].mxu0
        %v4456 = vadd.f32 %v4230, %v4455
        %v4457 = vpop.f32.mrb[0].mxu0
        %v4458 = vadd.f32 %v4234, %v4457
        %4459 = vmatprep.mubr.bf16.mxu0 0
        %4460 = vmatmul.mubr.bf16.gmra.mrb[0].mxu0 %v4179
        %v4461 = vpop.f32.mrb[0].mxu0
        %v4462 = vadd.f32 %v4230, %v4461
        %v4463 = vpop.f32.mrb[0].mxu0
        %v4464 = vadd.f32 %v4234, %v4463
        %v4465 = vpop.f32.mrb[0].mxu0
        %v4466 = vadd.f32 %v4230, %v4465
        %v4467 = vpop.f32.mrb[0].mxu0
        %v4468 = vadd.f32 %v4234, %v4467
        %4469 = vmatprep.mubr.bf16.mxu0 0
        %4470 = vmatmul.mubr.bf16.gmra.mrb[0].mxu0 %v4180
        %v4471 = vpop.f32.mrb[0].mxu0
        %v4472 = vadd.f32 %v4230, %v4471
        %v4473 = vpop.f32.mrb[0].mxu0
        %v4474 = vadd.f32 %v4234, %v4473
        %v4475 = vpop.f32.mrb[0].mxu0
        %v4476 = vadd.f32 %v4230, %v4475
        %v4477 = vpop.f32.mrb[0].mxu0
        %v4478 = vadd.f32 %v4234, %v4477
        %4479 = vmatprep.mubr.bf16.mxu0 0
        %4480 = vmatmul.mubr.bf16.gmra.mrb[0].mxu0 %v4181
        %v4481 = vpop.f32.mrb[0].mxu0
        %v4482 = vadd.f32 %v4230, %v4481
        %v4483 = vpop.f32.mrb[0].mxu0
        %v4484 = vadd.f32 %v4234, %v4483
        %v4485 = vpop.f32.mrb[0].mxu0
        %v4486 = vadd.f32 %v4230, %v4485
        %v4487 = vpop.f32.mrb[0].mxu0
        %v4488 = vadd.f32 %v4234, %v4487
        %4489 = vmatprep.mubr.bf16.mxu0 0
        %4490 = vmatmul.mubr.bf16.gmra.mrb[0].mxu0 %v4182
        %v4491 = vpop.f32.mrb[0].mxu0
        %v4492 = vadd.f32 %v4230, %v4491
        %v4493 = vpop.f32.mrb[0].mxu0
        %v4494 = vadd.f32 %v4234, %v4493
        %v4495 = vpop.f32.mrb[0].mxu0
        %v4496 = vadd.f32 %v4230, %v4495
        %v4497 = vpop.f32.mrb[0].mxu0
        %v4498 = vadd.f32 %v4234, %v4497
        %4499 = vmatprep.mubr.bf16.mxu0 0
        %4500 = vmatmul.mubr.bf16.gmra.mrb[0].mxu0 %v4183
        %v4501 = vpop.f32.mrb[0].mxu0
        %v4502 = vadd.f32 %v4230, %v4501
        %v4503 = vpop.f32.mrb[0].mxu0
        %v4504 = vadd.f32 %v4234, %v4503
        %v4505 = vpop.f32.mrb[0].mxu0
        %v4506 = vadd.f32 %v4230, %v4505
        %v4507 = vpop.f32.mrb[0].mxu0
        %v4508 = vadd.f32 %v4234, %v4507
        %4509 = vmatprep.mubr.bf16.mxu0 0
        %4510 = vmatmul.mubr.bf16.gmra.mrb[0].mxu0 %v4184
        %v4511 = vpop.f32.mrb[0].mxu0
        %v4512 = vadd.f32 %v4230, %v4511
        %v4513 = vpop.f32.mrb[0].mxu0
        %v4514 = vadd.f32 %v4234, %v4513
        %v4515 = vpop.f32.mrb[0].mxu0
        %v4516 = vadd.f32 %v4230, %v4515
        %v4517 = vpop.f32.mrb[0].mxu0
        %v4518 = vadd.f32 %v4234, %v4517
        %4519 = vmatprep.mubr.bf16.mxu0 0
        %4520 = vmatmul.mubr.bf16.gmra.mrb[0].mxu0 %v4185
        %v4521 = vpop.f32.mrb[0].mxu0
        %v4522 = vadd.f32 %v4230, %v4521
        %v4523 = vpop.f32.mrb[0].mxu0
        %v4524 = vadd.f32 %v4234, %v4523
        %v4525 = vpop.f32.mrb[0].mxu0
        %v4526 = vadd.f32 %v4230, %v4525
        %v4527 = vpop.f32.mrb[0].mxu0
        %v4528 = vadd.f32 %v4234, %v4527
        %4529 = vmatprep.mubr.bf16.mxu0 0
        %4530 = vmatmul.mubr.bf16.gmra.mrb[0].mxu0 %v4186
        %v4531 = vpop.f32.mrb[0].mxu0
        %v4532 = vadd.f32 %v4230, %v4531
        %v4533 = vpop.f32.mrb[0].mxu0
        %v4534 = vadd.f32 %v4234, %v4533
        %v4535 = vpop.f32.mrb[0].mxu0
        %v4536 = vadd.f32 %v4230, %v4535
        %v4537 = vpop.f32.mrb[0].mxu0
        %v4538 = vadd.f32 %v4234, %v4537
        %4539 = vmatprep.mubr.bf16.mxu0 0
        %4540 = vmatmul.mubr.bf16.gmra.mrb[0].mxu0 %v4187
        %v4541 = vpop.f32.mrb[0].mxu0
        %v4542 = vadd.f32 %v4230, %v4541
        %v4543 = vpop.f32.mrb[0].mxu0
        %v4544 = vadd.f32 %v4234, %v4543
        %v4545 = vpop.f32.mrb[0].mxu0
        %v4546 = vadd.f32 %v4230, %v4545
        %v4547 = vpop.f32.mrb[0].mxu0
        %v4548 = vadd.f32 %v4234, %v4547
        %4549 = vmatprep.mubr.bf16.mxu0 0
        %4550 = vmatmul.mubr.bf16.gmra.mrb[0].mxu0 %v4188
        %v4551 = vpop.f32.mrb[0].mxu0
        %v4552 = vadd.f32 %v4230, %v4551
        %v4553 = vpop.f32.mrb[0].mxu0
        %v4554 = vadd.f32 %v4234, %v4553
        %v4555 = vpop.f32.mrb[0].mxu0
        %v4556 = vadd.f32 %v4230, %v4555
        %v4557 = vpop.f32.mrb[0].mxu0
        %v4558 = vadd.f32 %v4234, %v4557
        %4559 = vmatprep.mubr.bf16.mxu0 0
        %4560 = vmatmul.mubr.bf16.gmra.mrb[0].mxu0 %v4189
        %v4561 = vpop.f32.mrb[0].mxu0
        %v4562 = vadd.f32 %v4230, %v4561
        %v4563 = vpop.f32.mrb[0].mxu0
        %v4564 = vadd.f32 %v4234, %v4563
        %v4565 = vpop.f32.mrb[0].mxu0
        %v4566 = vadd.f32 %v4230, %v4565
        %v4567 = vpop.f32.mrb[0].mxu0
        %v4568 = vadd.f32 %v4234, %v4567
        %4569 = vmatprep.mubr.bf16.mxu0 0
        %4570 = vmatmul.mubr.bf16.gmra.mrb[0].mxu0 %v4190
        %v4571 = vpop.f32.mrb[0].mxu0
        %v4572 = vadd.f32 %v4230, %v4571
        %v4573 = vpop.f32.mrb[0].mxu0
        %v4574 = vadd.f32 %v4234, %v4573
        %v4575 = vpop.f32.mrb[0].mxu0
        %v4576 = vadd.f32 %v4230, %v4575
        %v4577 = vpop.f32.mrb[0].mxu0
        %v4578 = vadd.f32 %v4234, %v4577
        %4579 = vmatprep.mubr.bf16.mxu0 0
        %4580 = vmatmul.mubr.bf16.gmra.mrb[0].mxu0 %v4191
        %v4581 = vpop.f32.mrb[0].mxu0
        %v4582 = vadd.f32 %v4230, %v4581
        %v4583 = vpop.f32.mrb[0].mxu0
        %v4584 = vadd.f32 %v4234, %v4583
        %v4585 = vpop.f32.mrb[0].mxu0
        %v4586 = vadd.f32 %v4230, %v4585
        %v4587 = vpop.f32.mrb[0].mxu0
        %v4588 = vadd.f32 %v4234, %v4587
        %4589 = vmatprep.mubr.bf16.mxu0 0
        %4590 = vmatmul.mubr.bf16.gmra.mrb[0].mxu0 %v4192
        %v4591 = vpop.f32.mrb[0].mxu0
        %v4592 = vadd.f32 %v4230, %v4591
        %v4593 = vpop.f32.mrb[0].mxu0
        %v4594 = vadd.f32 %v4234, %v4593
        %v4595 = vpop.f32.mrb[0].mxu0
        %v4596 = vadd.f32 %v4230, %v4595
        %v4597 = vpop.f32.mrb[0].mxu0
        %v4598 = vadd.f32 %v4234, %v4597
        %4599 = vdwg.mxu0
        %4600 = vmatprep.subr.bf16.mxu0 %v4346
        %4601 = vmatpush1.bf16.msra.mxu0 %v4345
        %4602 = vmatprep.subr.bf16.mxu0 %v4350
        %4603 = vmatpush1.bf16.msra.mxu0 %v4349
        %4604 = vmatprep.subr.bf16.mxu0 %v4354
        %4605 = vmatpush1.bf16.msra.mxu0 %v4353
        %4606 = vmatprep.subr.bf16.mxu0 %v4358
        %4607 = vmatpush1.bf16.msra.mxu0 %v4357
        %4608 = vmatprep.subr.bf16.mxu0 %v4362
        %4609 = vmatpush1.bf16.msra.mxu0 %v4361
        %4610 = vmatprep.subr.bf16.mxu0 %v4366
        %4611 = vmatpush1.bf16.msra.mxu0 %v4365
        %4612 = vmatprep.subr.bf16.mxu0 %v4370
        %4613 = vmatpush1.bf16.msra.mxu0 %v4369
        %4614 = vmatprep.subr.bf16.mxu0 %v4374
        %4615 = vmatpush1.bf16.msra.mxu0 %v4373
        %4616 = vmatprep.subr.bf16.mxu0 0
        %4617 = vmatpush1.bf16.msra.mxu0 0
        %4618 = vmatprep.subr.bf16.mxu0 0
        %4619 = vmatpush1.bf16.msra.mxu0 0
        %4620 = vmatprep.subr.bf16.mxu0 0
        %4621 = vmatpush1.bf16.msra.mxu0 0
        %4622 = vmatprep.subr.bf16.mxu0 0
        %4623 = vmatpush1.bf16.msra.mxu0 0
        %4624 = vmatprep.subr.bf16.mxu0 0
        %4625 = vmatpush1.bf16.msra.mxu0 0
        %4626 = vmatprep.subr.bf16.mxu0 0
        %4627 = vmatpush1.bf16.msra.mxu0 0
        %4628 = vmatprep.subr.bf16.mxu0 0
        %4629 = vmatpush1.bf16.msra.mxu0 0
        %4630 = vmatprep.subr.bf16.mxu0 0
        %4631 = vmatpush1.bf16.msra.mxu0 0
        %4632 = vmatprep.mubr.bf16.mxu0 0
        %4633 = vmatmul.mubr.bf16.gmra.mrb[0].mxu0 %v4177
        %v4634 = vpop.f32.mrb[0].mxu0
        %v4635 = vadd.f32 %v4238, %v4634
        %v4636 = vpop.f32.mrb[0].mxu0
        %v4637 = vadd.f32 %v4242, %v4636
        %v4638 = vpop.f32.mrb[0].mxu0
        %v4639 = vadd.f32 %v4238, %v4638
        %v4640 = vpop.f32.mrb[0].mxu0
        %v4641 = vadd.f32 %v4242, %v4640
        %4642 = vmatprep.mubr.bf16.mxu0 0
        %4643 = vmatmul.mubr.bf16.gmra.mrb[0].mxu0 %v4178
        %v4644 = vpop.f32.mrb[0].mxu0
        %v4645 = vadd.f32 %v4238, %v4644
        %v4646 = vpop.f32.mrb[0].mxu0
        %v4647 = vadd.f32 %v4242, %v4646
        %v4648 = vpop.f32.mrb[0].mxu0
        %v4649 = vadd.f32 %v4238, %v4648
        %v4650 = vpop.f32.mrb[0].mxu0
        %v4651 = vadd.f32 %v4242, %v4650
        %4652 = vmatprep.mubr.bf16.mxu0 0
        %4653 = vmatmul.mubr.bf16.gmra.mrb[0].mxu0 %v4179
        %v4654 = vpop.f32.mrb[0].mxu0
        %v4655 = vadd.f32 %v4238, %v4654
        %v4656 = vpop.f32.mrb[0].mxu0
        %v4657 = vadd.f32 %v4242, %v4656
        %v4658 = vpop.f32.mrb[0].mxu0
        %v4659 = vadd.f32 %v4238, %v4658
        %v4660 = vpop.f32.mrb[0].mxu0
        %v4661 = vadd.f32 %v4242, %v4660
        %4662 = vmatprep.mubr.bf16.mxu0 0
        %4663 = vmatmul.mubr.bf16.gmra.mrb[0].mxu0 %v4180
        %v4664 = vpop.f32.mrb[0].mxu0
        %v4665 = vadd.f32 %v4238, %v4664
        %v4666 = vpop.f32.mrb[0].mxu0
        %v4667 = vadd.f32 %v4242, %v4666
        %v4668 = vpop.f32.mrb[0].mxu0
        %v4669 = vadd.f32 %v4238, %v4668
        %v4670 = vpop.f32.mrb[0].mxu0
        %v4671 = vadd.f32 %v4242, %v4670
        %4672 = vmatprep.mubr.bf16.mxu0 0
        %4673 = vmatmul.mubr.bf16.gmra.mrb[0].mxu0 %v4181
        %v4674 = vpop.f32.mrb[0].mxu0
        %v4675 = vadd.f32 %v4238, %v4674
        %v4676 = vpop.f32.mrb[0].mxu0
        %v4677 = vadd.f32 %v4242, %v4676
        %v4678 = vpop.f32.mrb[0].mxu0
        %v4679 = vadd.f32 %v4238, %v4678
        %v4680 = vpop.f32.mrb[0].mxu0
        %v4681 = vadd.f32 %v4242, %v4680
        %4682 = vmatprep.mubr.bf16.mxu0 0
        %4683 = vmatmul.mubr.bf16.gmra.mrb[0].mxu0 %v4182
        %v4684 = vpop.f32.mrb[0].mxu0
        %v4685 = vadd.f32 %v4238, %v4684
        %v4686 = vpop.f32.mrb[0].mxu0
        %v4687 = vadd.f32 %v4242, %v4686
        %v4688 = vpop.f32.mrb[0].mxu0
        %v4689 = vadd.f32 %v4238, %v4688
        %v4690 = vpop.f32.mrb[0].mxu0
        %v4691 = vadd.f32 %v4242, %v4690
        %4692 = vmatprep.mubr.bf16.mxu0 0
        %4693 = vmatmul.mubr.bf16.gmra.mrb[0].mxu0 %v4183
        %v4694 = vpop.f32.mrb[0].mxu0
        %v4695 = vadd.f32 %v4238, %v4694
        %v4696 = vpop.f32.mrb[0].mxu0
        %v4697 = vadd.f32 %v4242, %v4696
        %v4698 = vpop.f32.mrb[0].mxu0
        %v4699 = vadd.f32 %v4238, %v4698
        %v4700 = vpop.f32.mrb[0].mxu0
        %v4701 = vadd.f32 %v4242, %v4700
        %4702 = vmatprep.mubr.bf16.mxu0 0
        %4703 = vmatmul.mubr.bf16.gmra.mrb[0].mxu0 %v4184
        %v4704 = vpop.f32.mrb[0].mxu0
        %v4705 = vadd.f32 %v4238, %v4704
        %v4706 = vpop.f32.mrb[0].mxu0
        %v4707 = vadd.f32 %v4242, %v4706
        %v4708 = vpop.f32.mrb[0].mxu0
        %v4709 = vadd.f32 %v4238, %v4708
        %v4710 = vpop.f32.mrb[0].mxu0
        %v4711 = vadd.f32 %v4242, %v4710
        %4712 = vmatprep.mubr.bf16.mxu0 0
        %4713 = vmatmul.mubr.bf16.gmra.mrb[0].mxu0 %v4185
        %v4714 = vpop.f32.mrb[0].mxu0
        %v4715 = vadd.f32 %v4238, %v4714
        %v4716 = vpop.f32.mrb[0].mxu0
        %v4717 = vadd.f32 %v4242, %v4716
        %v4718 = vpop.f32.mrb[0].mxu0
        %v4719 = vadd.f32 %v4238, %v4718
        %v4720 = vpop.f32.mrb[0].mxu0
        %v4721 = vadd.f32 %v4242, %v4720
        %4722 = vmatprep.mubr.bf16.mxu0 0
        %4723 = vmatmul.mubr.bf16.gmra.mrb[0].mxu0 %v4186
        %v4724 = vpop.f32.mrb[0].mxu0
        %v4725 = vadd.f32 %v4238, %v4724
        %v4726 = vpop.f32.mrb[0].mxu0
        %v4727 = vadd.f32 %v4242, %v4726
        %v4728 = vpop.f32.mrb[0].mxu0
        %v4729 = vadd.f32 %v4238, %v4728
        %v4730 = vpop.f32.mrb[0].mxu0
        %v4731 = vadd.f32 %v4242, %v4730
        %4732 = vmatprep.mubr.bf16.mxu0 0
        %4733 = vmatmul.mubr.bf16.gmra.mrb[0].mxu0 %v4187
        %v4734 = vpop.f32.mrb[0].mxu0
        %v4735 = vadd.f32 %v4238, %v4734
        %v4736 = vpop.f32.mrb[0].mxu0
        %v4737 = vadd.f32 %v4242, %v4736
        %v4738 = vpop.f32.mrb[0].mxu0
        %v4739 = vadd.f32 %v4238, %v4738
        %v4740 = vpop.f32.mrb[0].mxu0
        %v4741 = vadd.f32 %v4242, %v4740
        %4742 = vmatprep.mubr.bf16.mxu0 0
        %4743 = vmatmul.mubr.bf16.gmra.mrb[0].mxu0 %v4188
        %v4744 = vpop.f32.mrb[0].mxu0
        %v4745 = vadd.f32 %v4238, %v4744
        %v4746 = vpop.f32.mrb[0].mxu0
        %v4747 = vadd.f32 %v4242, %v4746
        %v4748 = vpop.f32.mrb[0].mxu0
        %v4749 = vadd.f32 %v4238, %v4748
        %v4750 = vpop.f32.mrb[0].mxu0
        %v4751 = vadd.f32 %v4242, %v4750
        %4752 = vmatprep.mubr.bf16.mxu0 0
        %4753 = vmatmul.mubr.bf16.gmra.mrb[0].mxu0 %v4189
        %v4754 = vpop.f32.mrb[0].mxu0
        %v4755 = vadd.f32 %v4238, %v4754
        %v4756 = vpop.f32.mrb[0].mxu0
        %v4757 = vadd.f32 %v4242, %v4756
        %v4758 = vpop.f32.mrb[0].mxu0
        %v4759 = vadd.f32 %v4238, %v4758
        %v4760 = vpop.f32.mrb[0].mxu0
        %v4761 = vadd.f32 %v4242, %v4760
        %4762 = vmatprep.mubr.bf16.mxu0 0
        %4763 = vmatmul.mubr.bf16.gmra.mrb[0].mxu0 %v4190
        %v4764 = vpop.f32.mrb[0].mxu0
        %v4765 = vadd.f32 %v4238, %v4764
        %v4766 = vpop.f32.mrb[0].mxu0
        %v4767 = vadd.f32 %v4242, %v4766
        %v4768 = vpop.f32.mrb[0].mxu0
        %v4769 = vadd.f32 %v4238, %v4768
        %v4770 = vpop.f32.mrb[0].mxu0
        %v4771 = vadd.f32 %v4242, %v4770
        %4772 = vmatprep.mubr.bf16.mxu0 0
        %4773 = vmatmul.mubr.bf16.gmra.mrb[0].mxu0 %v4191
        %v4774 = vpop.f32.mrb[0].mxu0
        %v4775 = vadd.f32 %v4238, %v4774
        %v4776 = vpop.f32.mrb[0].mxu0
        %v4777 = vadd.f32 %v4242, %v4776
        %v4778 = vpop.f32.mrb[0].mxu0
        %v4779 = vadd.f32 %v4238, %v4778
        %v4780 = vpop.f32.mrb[0].mxu0
        %v4781 = vadd.f32 %v4242, %v4780
        %4782 = vmatprep.mubr.bf16.mxu0 0
        %4783 = vmatmul.mubr.bf16.gmra.mrb[0].mxu0 %v4192
        %v4784 = vpop.f32.mrb[0].mxu0
        %v4785 = vadd.f32 %v4238, %v4784
        %v4786 = vpop.f32.mrb[0].mxu0
        %v4787 = vadd.f32 %v4242, %v4786
        %v4788 = vpop.f32.mrb[0].mxu0
        %v4789 = vadd.f32 %v4238, %v4788
        %v4790 = vpop.f32.mrb[0].mxu0
        %v4791 = vadd.f32 %v4242, %v4790
        %4792 = vdwg.mxu0
        %v4793 = vld [vmem:[%s298] sm:$0xff]
        %v4794 = vld [vmem:[%s298 + $0x8] sm:$0xff]
        %v4795 = vld [vmem:[%s298 + $0x10] sm:$0xff]
        %v4796 = vld [vmem:[%s298 + $0x18] sm:$0xff]
        %v4797 = vld [vmem:[%s298 + $0x20] sm:$0xff]
        %v4798 = vld [vmem:[%s298 + $0x28] sm:$0xff]
        %v4799 = vld [vmem:[%s298 + $0x30] sm:$0xff]
        %v4800 = vld [vmem:[%s298 + $0x38] sm:$0xff]
        %v4801 = vld [vmem:[%s298 + $0x40] sm:$0xff]
        %v4802 = vld [vmem:[%s298 + $0x48] sm:$0xff]
        %v4803 = vld [vmem:[%s298 + $0x50] sm:$0xff]
        %v4804 = vld [vmem:[%s298 + $0x58] sm:$0xff]
        %v4805 = vld [vmem:[%s298 + $0x60] sm:$0xff]
        %v4806 = vld [vmem:[%s298 + $0x68] sm:$0xff]
        %v4807 = vld [vmem:[%s298 + $0x70] sm:$0xff]
        %v4808 = vld [vmem:[%s298 + $0x78] sm:$0xff]
        %v4809 = vld [vmem:[%s298 + $0x80] sm:$0xff]
        %v4810 = vld [vmem:[%s298 + $0x88] sm:$0xff]
        %v4811 = vld [vmem:[%s298 + $0x90] sm:$0xff]
        %v4812 = vld [vmem:[%s298 + $0x98] sm:$0xff]
        %v4813 = vld [vmem:[%s298 + $0xa0] sm:$0xff]
        %v4814 = vld [vmem:[%s298 + $0xa8] sm:$0xff]
        %v4815 = vld [vmem:[%s298 + $0xb0] sm:$0xff]
        %v4816 = vld [vmem:[%s298 + $0xb8] sm:$0xff]
        %v4817 = vld [vmem:[%s298 + $0xc0] sm:$0xff]
        %v4818 = vld [vmem:[%s298 + $0xc8] sm:$0xff]
        %v4819 = vld [vmem:[%s298 + $0xd0] sm:$0xff]
        %v4820 = vld [vmem:[%s298 + $0xd8] sm:$0xff]
        %v4821 = vld [vmem:[%s298 + $0xe0] sm:$0xff]
        %v4822 = vld [vmem:[%s298 + $0xe8] sm:$0xff]
        %v4823 = vld [vmem:[%s298 + $0xf0] sm:$0xff]
        %v4824 = vld [vmem:[%s298 + $0xf8] sm:$0xff]
        %v4825 = vld [vmem:[%s298 + $0x100] sm:$0xff]
        %v4826 = vld [vmem:[%s298 + $0x108] sm:$0xff]
        %v4827 = vld [vmem:[%s298 + $0x110] sm:$0xff]
        %v4828 = vld [vmem:[%s298 + $0x118] sm:$0xff]
        %v4829 = vld [vmem:[%s298 + $0x120] sm:$0xff]
        %v4830 = vld [vmem:[%s298 + $0x128] sm:$0xff]
        %v4831 = vld [vmem:[%s298 + $0x130] sm:$0xff]
        %v4832 = vld [vmem:[%s298 + $0x138] sm:$0xff]
        %v4833 = vld [vmem:[%s298 + $0x140] sm:$0xff]
        %v4834 = vld [vmem:[%s298 + $0x148] sm:$0xff]
        %v4835 = vld [vmem:[%s298 + $0x150] sm:$0xff]
        %v4836 = vld [vmem:[%s298 + $0x158] sm:$0xff]
        %v4837 = vld [vmem:[%s298 + $0x160] sm:$0xff]
        %v4838 = vld [vmem:[%s298 + $0x168] sm:$0xff]
        %v4839 = vld [vmem:[%s298 + $0x170] sm:$0xff]
        %v4840 = vld [vmem:[%s298 + $0x178] sm:$0xff]
        %v4841 = vld [vmem:[%s298 + $0x180] sm:$0xff]
        %v4842 = vld [vmem:[%s298 + $0x188] sm:$0xff]
        %v4843 = vld [vmem:[%s298 + $0x190] sm:$0xff]
        %v4844 = vld [vmem:[%s298 + $0x198] sm:$0xff]
        %v4845 = vld [vmem:[%s298 + $0x1a0] sm:$0xff]
        %v4846 = vld [vmem:[%s298 + $0x1a8] sm:$0xff]
        %v4847 = vld [vmem:[%s298 + $0x1b0] sm:$0xff]
        %v4848 = vld [vmem:[%s298 + $0x1b8] sm:$0xff]
        %v4849 = vld [vmem:[%s298 + $0x1c0] sm:$0xff]
        %v4850 = vld [vmem:[%s298 + $0x1c8] sm:$0xff]
        %v4851 = vld [vmem:[%s298 + $0x1d0] sm:$0xff]
        %v4852 = vld [vmem:[%s298 + $0x1d8] sm:$0xff]
        %v4853 = vld [vmem:[%s298 + $0x1e0] sm:$0xff]
        %v4854 = vld [vmem:[%s298 + $0x1e8] sm:$0xff]
        %v4855 = vld [vmem:[%s298 + $0x1f0] sm:$0xff]
        %v4856 = vld [vmem:[%s298 + $0x1f8] sm:$0xff]
        %v4857 = vld [vmem:[%s298 + $0x200] sm:$0xff]
        %v4858 = vld [vmem:[%s298 + $0x208] sm:$0xff]
        %v4859 = vld [vmem:[%s298 + $0x210] sm:$0xff]
        %v4860 = vld [vmem:[%s298 + $0x218] sm:$0xff]
        %v4861 = vld [vmem:[%s298 + $0x220] sm:$0xff]
        %v4862 = vld [vmem:[%s298 + $0x228] sm:$0xff]
        %v4863 = vld [vmem:[%s298 + $0x230] sm:$0xff]
        %v4864 = vld [vmem:[%s298 + $0x238] sm:$0xff]
        %v4865 = vld [vmem:[%s298 + $0x240] sm:$0xff]
        %v4866 = vld [vmem:[%s298 + $0x248] sm:$0xff]
        %v4867 = vld [vmem:[%s298 + $0x250] sm:$0xff]
        %v4868 = vld [vmem:[%s298 + $0x258] sm:$0xff]
        %v4869 = vld [vmem:[%s298 + $0x260] sm:$0xff]
        %v4870 = vld [vmem:[%s298 + $0x268] sm:$0xff]
        %v4871 = vld [vmem:[%s298 + $0x270] sm:$0xff]
        %v4872 = vld [vmem:[%s298 + $0x278] sm:$0xff]
        %v4873 = vld [vmem:[%s298 + $0x280] sm:$0xff]
        %v4874 = vld [vmem:[%s298 + $0x288] sm:$0xff]
        %v4875 = vld [vmem:[%s298 + $0x290] sm:$0xff]
        %v4876 = vld [vmem:[%s298 + $0x298] sm:$0xff]
        %v4877 = vld [vmem:[%s298 + $0x2a0] sm:$0xff]
        %v4878 = vld [vmem:[%s298 + $0x2a8] sm:$0xff]
        %v4879 = vld [vmem:[%s298 + $0x2b0] sm:$0xff]
        %v4880 = vld [vmem:[%s298 + $0x2b8] sm:$0xff]
        %v4881 = vld [vmem:[%s298 + $0x2c0] sm:$0xff]
        %v4882 = vld [vmem:[%s298 + $0x2c8] sm:$0xff]
        %v4883 = vld [vmem:[%s298 + $0x2d0] sm:$0xff]
        %v4884 = vld [vmem:[%s298 + $0x2d8] sm:$0xff]
        %v4885 = vld [vmem:[%s298 + $0x2e0] sm:$0xff]
        %v4886 = vld [vmem:[%s298 + $0x2e8] sm:$0xff]
        %v4887 = vld [vmem:[%s298 + $0x2f0] sm:$0xff]
        %v4888 = vld [vmem:[%s298 + $0x2f8] sm:$0xff]
        %v4889 = vld [vmem:[%s298 + $0x300] sm:$0xff]
        %v4890 = vld [vmem:[%s298 + $0x308] sm:$0xff]
        %v4891 = vld [vmem:[%s298 + $0x310] sm:$0xff]
        %v4892 = vld [vmem:[%s298 + $0x318] sm:$0xff]
        %v4893 = vld [vmem:[%s298 + $0x320] sm:$0xff]
        %v4894 = vld [vmem:[%s298 + $0x328] sm:$0xff]
        %v4895 = vld [vmem:[%s298 + $0x330] sm:$0xff]
        %v4896 = vld [vmem:[%s298 + $0x338] sm:$0xff]
        %v4897 = vld [vmem:[%s298 + $0x340] sm:$0xff]
        %v4898 = vld [vmem:[%s298 + $0x348] sm:$0xff]
        %v4899 = vld [vmem:[%s298 + $0x350] sm:$0xff]
        %v4900 = vld [vmem:[%s298 + $0x358] sm:$0xff]
        %v4901 = vld [vmem:[%s298 + $0x360] sm:$0xff]
        %v4902 = vld [vmem:[%s298 + $0x368] sm:$0xff]
        %v4903 = vld [vmem:[%s298 + $0x370] sm:$0xff]
        %v4904 = vld [vmem:[%s298 + $0x378] sm:$0xff]
        %v4905 = vld [vmem:[%s298 + $0x380] sm:$0xff]
        %v4906 = vld [vmem:[%s298 + $0x388] sm:$0xff]
        %v4907 = vld [vmem:[%s298 + $0x390] sm:$0xff]
        %v4908 = vld [vmem:[%s298 + $0x398] sm:$0xff]
        %v4909 = vld [vmem:[%s298 + $0x3a0] sm:$0xff]
        %v4910 = vld [vmem:[%s298 + $0x3a8] sm:$0xff]
        %v4911 = vld [vmem:[%s298 + $0x3b0] sm:$0xff]
        %v4912 = vld [vmem:[%s298 + $0x3b8] sm:$0xff]
        %v4913 = vld [vmem:[%s298 + $0x3c0] sm:$0xff]
        %v4914 = vld [vmem:[%s298 + $0x3c8] sm:$0xff]
        %v4915 = vld [vmem:[%s298 + $0x3d0] sm:$0xff]
        %v4916 = vld [vmem:[%s298 + $0x3d8] sm:$0xff]
        %v4917 = vld [vmem:[%s298 + $0x3e0] sm:$0xff]
        %v4918 = vld [vmem:[%s298 + $0x3e8] sm:$0xff]
        %v4919 = vld [vmem:[%s298 + $0x3f0] sm:$0xff]
        %v4920 = vld [vmem:[%s298 + $0x3f8] sm:$0xff]
        %v4921 = vadd.f32 %v4442, %v4793
        %v4922 = vadd.f32 %v4444, %v4794
        %v4923 = vadd.f32 %v4635, %v4795
        %v4924 = vadd.f32 %v4637, %v4796
        %v4925 = vadd.f32 %v4446, %v4797
        %v4926 = vadd.f32 %v4448, %v4798
        %v4927 = vadd.f32 %v4639, %v4799
        %v4928 = vadd.f32 %v4641, %v4800
        %v4929 = vadd.f32 %v4452, %v4801
        %v4930 = vadd.f32 %v4454, %v4802
        %v4931 = vadd.f32 %v4645, %v4803
        %v4932 = vadd.f32 %v4647, %v4804
        %v4933 = vadd.f32 %v4456, %v4805
        %v4934 = vadd.f32 %v4458, %v4806
        %v4935 = vadd.f32 %v4649, %v4807
        %v4936 = vadd.f32 %v4651, %v4808
        %v4937 = vadd.f32 %v4462, %v4809
        %v4938 = vadd.f32 %v4464, %v4810
        %v4939 = vadd.f32 %v4655, %v4811
        %v4940 = vadd.f32 %v4657, %v4812
        %v4941 = vadd.f32 %v4466, %v4813
        %v4942 = vadd.f32 %v4468, %v4814
        %v4943 = vadd.f32 %v4659, %v4815
        %v4944 = vadd.f32 %v4661, %v4816
        %v4945 = vadd.f32 %v4472, %v4817
        %v4946 = vadd.f32 %v4474, %v4818
        %v4947 = vadd.f32 %v4665, %v4819
        %v4948 = vadd.f32 %v4667, %v4820
        %v4949 = vadd.f32 %v4476, %v4821
        %v4950 = vadd.f32 %v4478, %v4822
        %v4951 = vadd.f32 %v4669, %v4823
        %v4952 = vadd.f32 %v4671, %v4824
        %v4953 = vadd.f32 %v4482, %v4825
        %v4954 = vadd.f32 %v4484, %v4826
        %v4955 = vadd.f32 %v4675, %v4827
        %v4956 = vadd.f32 %v4677, %v4828
        %v4957 = vadd.f32 %v4486, %v4829
        %v4958 = vadd.f32 %v4488, %v4830
        %v4959 = vadd.f32 %v4679, %v4831
        %v4960 = vadd.f32 %v4681, %v4832
        %v4961 = vadd.f32 %v4492, %v4833
        %v4962 = vadd.f32 %v4494, %v4834
        %v4963 = vadd.f32 %v4685, %v4835
        %v4964 = vadd.f32 %v4687, %v4836
        %v4965 = vadd.f32 %v4496, %v4837
        %v4966 = vadd.f32 %v4498, %v4838
        %v4967 = vadd.f32 %v4689, %v4839
        %v4968 = vadd.f32 %v4691, %v4840
        %v4969 = vadd.f32 %v4502, %v4841
        %v4970 = vadd.f32 %v4504, %v4842
        %v4971 = vadd.f32 %v4695, %v4843
        %v4972 = vadd.f32 %v4697, %v4844
        %v4973 = vadd.f32 %v4506, %v4845
        %v4974 = vadd.f32 %v4508, %v4846
        %v4975 = vadd.f32 %v4699, %v4847
        %v4976 = vadd.f32 %v4701, %v4848
        %v4977 = vadd.f32 %v4512, %v4849
        %v4978 = vadd.f32 %v4514, %v4850
        %v4979 = vadd.f32 %v4705, %v4851
        %v4980 = vadd.f32 %v4707, %v4852
        %v4981 = vadd.f32 %v4516, %v4853
        %v4982 = vadd.f32 %v4518, %v4854
        %v4983 = vadd.f32 %v4709, %v4855
        %v4984 = vadd.f32 %v4711, %v4856
        %v4985 = vadd.f32 %v4522, %v4857
        %v4986 = vadd.f32 %v4524, %v4858
        %v4987 = vadd.f32 %v4715, %v4859
        %v4988 = vadd.f32 %v4717, %v4860
        %v4989 = vadd.f32 %v4526, %v4861
        %v4990 = vadd.f32 %v4528, %v4862
        %v4991 = vadd.f32 %v4719, %v4863
        %v4992 = vadd.f32 %v4721, %v4864
        %v4993 = vadd.f32 %v4532, %v4865
        %v4994 = vadd.f32 %v4534, %v4866
        %v4995 = vadd.f32 %v4725, %v4867
        %v4996 = vadd.f32 %v4727, %v4868
        %v4997 = vadd.f32 %v4536, %v4869
        %v4998 = vadd.f32 %v4538, %v4870
        %v4999 = vadd.f32 %v4729, %v4871
        %v5000 = vadd.f32 %v4731, %v4872
        %v5001 = vadd.f32 %v4542, %v4873
        %v5002 = vadd.f32 %v4544, %v4874
        %v5003 = vadd.f32 %v4735, %v4875
        %v5004 = vadd.f32 %v4737, %v4876
        %v5005 = vadd.f32 %v4546, %v4877
        %v5006 = vadd.f32 %v4548, %v4878
        %v5007 = vadd.f32 %v4739, %v4879
        %v5008 = vadd.f32 %v4741, %v4880
        %v5009 = vadd.f32 %v4552, %v4881
        %v5010 = vadd.f32 %v4554, %v4882
        %v5011 = vadd.f32 %v4745, %v4883
        %v5012 = vadd.f32 %v4747, %v4884
        %v5013 = vadd.f32 %v4556, %v4885
        %v5014 = vadd.f32 %v4558, %v4886
        %v5015 = vadd.f32 %v4749, %v4887
        %v5016 = vadd.f32 %v4751, %v4888
        %v5017 = vadd.f32 %v4562, %v4889
        %v5018 = vadd.f32 %v4564, %v4890
        %v5019 = vadd.f32 %v4755, %v4891
        %v5020 = vadd.f32 %v4757, %v4892
        %v5021 = vadd.f32 %v4566, %v4893
        %v5022 = vadd.f32 %v4568, %v4894
        %v5023 = vadd.f32 %v4759, %v4895
        %v5024 = vadd.f32 %v4761, %v4896
        %v5025 = vadd.f32 %v4572, %v4897
        %v5026 = vadd.f32 %v4574, %v4898
        %v5027 = vadd.f32 %v4765, %v4899
        %v5028 = vadd.f32 %v4767, %v4900
        %v5029 = vadd.f32 %v4576, %v4901
        %v5030 = vadd.f32 %v4578, %v4902
        %v5031 = vadd.f32 %v4769, %v4903
        %v5032 = vadd.f32 %v4771, %v4904
        %v5033 = vadd.f32 %v4582, %v4905
        %v5034 = vadd.f32 %v4584, %v4906
        %v5035 = vadd.f32 %v4775, %v4907
        %v5036 = vadd.f32 %v4777, %v4908
        %v5037 = vadd.f32 %v4586, %v4909
        %v5038 = vadd.f32 %v4588, %v4910
        %v5039 = vadd.f32 %v4779, %v4911
        %v5040 = vadd.f32 %v4781, %v4912
        %v5041 = vadd.f32 %v4592, %v4913
        %v5042 = vadd.f32 %v4594, %v4914
        %v5043 = vadd.f32 %v4785, %v4915
        %v5044 = vadd.f32 %v4787, %v4916
        %v5045 = vadd.f32 %v4596, %v4917
        %v5046 = vadd.f32 %v4598, %v4918
        %v5047 = vadd.f32 %v4789, %v4919
        %v5048 = vadd.f32 %v4791, %v4920
        %v5049 = vmax.f32 %v4921, 0.0
        %v5050 = vmax.f32 %v4922, 0.0
        %v5051 = vmax.f32 %v4923, 0.0
        %v5052 = vmax.f32 %v4924, 0.0
        %v5053 = vmax.f32 %v4925, 0.0
        %v5054 = vmax.f32 %v4926, 0.0
        %v5055 = vmax.f32 %v4927, 0.0
        %v5056 = vmax.f32 %v4928, 0.0
        %v5057 = vmax.f32 %v4929, 0.0
        %v5058 = vmax.f32 %v4930, 0.0
        %v5059 = vmax.f32 %v4931, 0.0
        %v5060 = vmax.f32 %v4932, 0.0
        %v5061 = vmax.f32 %v4933, 0.0
        %v5062 = vmax.f32 %v4934, 0.0
        %v5063 = vmax.f32 %v4935, 0.0
        %v5064 = vmax.f32 %v4936, 0.0
        %v5065 = vmax.f32 %v4937, 0.0
        %v5066 = vmax.f32 %v4938, 0.0
        %v5067 = vmax.f32 %v4939, 0.0
        %v5068 = vmax.f32 %v4940, 0.0
        %v5069 = vmax.f32 %v4941, 0.0
        %v5070 = vmax.f32 %v4942, 0.0
        %v5071 = vmax.f32 %v4943, 0.0
        %v5072 = vmax.f32 %v4944, 0.0
        %v5073 = vmax.f32 %v4945, 0.0
        %v5074 = vmax.f32 %v4946, 0.0
        %v5075 = vmax.f32 %v4947, 0.0
        %v5076 = vmax.f32 %v4948, 0.0
        %v5077 = vmax.f32 %v4949, 0.0
        %v5078 = vmax.f32 %v4950, 0.0
        %v5079 = vmax.f32 %v4951, 0.0
        %v5080 = vmax.f32 %v4952, 0.0
        %v5081 = vmax.f32 %v4953, 0.0
        %v5082 = vmax.f32 %v4954, 0.0
        %v5083 = vmax.f32 %v4955, 0.0
        %v5084 = vmax.f32 %v4956, 0.0
        %v5085 = vmax.f32 %v4957, 0.0
        %v5086 = vmax.f32 %v4958, 0.0
        %v5087 = vmax.f32 %v4959, 0.0
        %v5088 = vmax.f32 %v4960, 0.0
        %v5089 = vmax.f32 %v4961, 0.0
        %v5090 = vmax.f32 %v4962, 0.0
        %v5091 = vmax.f32 %v4963, 0.0
        %v5092 = vmax.f32 %v4964, 0.0
        %v5093 = vmax.f32 %v4965, 0.0
        %v5094 = vmax.f32 %v4966, 0.0
        %v5095 = vmax.f32 %v4967, 0.0
        %v5096 = vmax.f32 %v4968, 0.0
        %v5097 = vmax.f32 %v4969, 0.0
        %v5098 = vmax.f32 %v4970, 0.0
        %v5099 = vmax.f32 %v4971, 0.0
        %v5100 = vmax.f32 %v4972, 0.0
        %v5101 = vmax.f32 %v4973, 0.0
        %v5102 = vmax.f32 %v4974, 0.0
        %v5103 = vmax.f32 %v4975, 0.0
        %v5104 = vmax.f32 %v4976, 0.0
        %v5105 = vmax.f32 %v4977, 0.0
        %v5106 = vmax.f32 %v4978, 0.0
        %v5107 = vmax.f32 %v4979, 0.0
        %v5108 = vmax.f32 %v4980, 0.0
        %v5109 = vmax.f32 %v4981, 0.0
        %v5110 = vmax.f32 %v4982, 0.0
        %v5111 = vmax.f32 %v4983, 0.0
        %v5112 = vmax.f32 %v4984, 0.0
        %v5113 = vmax.f32 %v4985, 0.0
        %v5114 = vmax.f32 %v4986, 0.0
        %v5115 = vmax.f32 %v4987, 0.0
        %v5116 = vmax.f32 %v4988, 0.0
        %v5117 = vmax.f32 %v4989, 0.0
        %v5118 = vmax.f32 %v4990, 0.0
        %v5119 = vmax.f32 %v4991, 0.0
        %v5120 = vmax.f32 %v4992, 0.0
        %v5121 = vmax.f32 %v4993, 0.0
        %v5122 = vmax.f32 %v4994, 0.0
        %v5123 = vmax.f32 %v4995, 0.0
        %v5124 = vmax.f32 %v4996, 0.0
        %v5125 = vmax.f32 %v4997, 0.0
        %v5126 = vmax.f32 %v4998, 0.0
        %v5127 = vmax.f32 %v4999, 0.0
        %v5128 = vmax.f32 %v5000, 0.0
        %v5129 = vmax.f32 %v5001, 0.0
        %v5130 = vmax.f32 %v5002, 0.0
        %v5131 = vmax.f32 %v5003, 0.0
        %v5132 = vmax.f32 %v5004, 0.0
        %v5133 = vmax.f32 %v5005, 0.0
        %v5134 = vmax.f32 %v5006, 0.0
        %v5135 = vmax.f32 %v5007, 0.0
        %v5136 = vmax.f32 %v5008, 0.0
        %v5137 = vmax.f32 %v5009, 0.0
        %v5138 = vmax.f32 %v5010, 0.0
        %v5139 = vmax.f32 %v5011, 0.0
        %v5140 = vmax.f32 %v5012, 0.0
        %v5141 = vmax.f32 %v5013, 0.0
        %v5142 = vmax.f32 %v5014, 0.0
        %v5143 = vmax.f32 %v5015, 0.0
        %v5144 = vmax.f32 %v5016, 0.0
        %v5145 = vmax.f32 %v5017, 0.0
        %v5146 = vmax.f32 %v5018, 0.0
        %v5147 = vmax.f32 %v5019, 0.0
        %v5148 = vmax.f32 %v5020, 0.0
        %v5149 = vmax.f32 %v5021, 0.0
        %v5150 = vmax.f32 %v5022, 0.0
        %v5151 = vmax.f32 %v5023, 0.0
        %v5152 = vmax.f32 %v5024, 0.0
        %v5153 = vmax.f32 %v5025, 0.0
        %v5154 = vmax.f32 %v5026, 0.0
        %v5155 = vmax.f32 %v5027, 0.0
        %v5156 = vmax.f32 %v5028, 0.0
        %v5157 = vmax.f32 %v5029, 0.0
        %v5158 = vmax.f32 %v5030, 0.0
        %v5159 = vmax.f32 %v5031, 0.0
        %v5160 = vmax.f32 %v5032, 0.0
        %v5161 = vmax.f32 %v5033, 0.0
        %v5162 = vmax.f32 %v5034, 0.0
        %v5163 = vmax.f32 %v5035, 0.0
        %v5164 = vmax.f32 %v5036, 0.0
        %v5165 = vmax.f32 %v5037, 0.0
        %v5166 = vmax.f32 %v5038, 0.0
        %v5167 = vmax.f32 %v5039, 0.0
        %v5168 = vmax.f32 %v5040, 0.0
        %v5169 = vmax.f32 %v5041, 0.0
        %v5170 = vmax.f32 %v5042, 0.0
        %v5171 = vmax.f32 %v5043, 0.0
        %v5172 = vmax.f32 %v5044, 0.0
        %v5173 = vmax.f32 %v5045, 0.0
        %v5174 = vmax.f32 %v5046, 0.0
        %v5175 = vmax.f32 %v5047, 0.0
        %v5176 = vmax.f32 %v5048, 0.0
        %5177 = vst [vmem:[%s340] sm:$0xff] %v5049
        %5178 = vst [vmem:[%s340 + $0x8] sm:$0xff] %v5050
        %5179 = vst [vmem:[%s340 + $0x10] sm:$0xff] %v5051
        %5180 = vst [vmem:[%s340 + $0x18] sm:$0xff] %v5052
        %5181 = vst [vmem:[%s340 + $0x20] sm:$0xff] %v5053
        %5182 = vst [vmem:[%s340 + $0x28] sm:$0xff] %v5054
        %5183 = vst [vmem:[%s340 + $0x30] sm:$0xff] %v5055
        %5184 = vst [vmem:[%s340 + $0x38] sm:$0xff] %v5056
        %5185 = vst [vmem:[%s340 + $0x40] sm:$0xff] %v5057
        %5186 = vst [vmem:[%s340 + $0x48] sm:$0xff] %v5058
        %5187 = vst [vmem:[%s340 + $0x50] sm:$0xff] %v5059
        %5188 = vst [vmem:[%s340 + $0x58] sm:$0xff] %v5060
        %5189 = vst [vmem:[%s340 + $0x60] sm:$0xff] %v5061
        %5190 = vst [vmem:[%s340 + $0x68] sm:$0xff] %v5062
        %5191 = vst [vmem:[%s340 + $0x70] sm:$0xff] %v5063
        %5192 = vst [vmem:[%s340 + $0x78] sm:$0xff] %v5064
        %5193 = vst [vmem:[%s340 + $0x80] sm:$0xff] %v5065
        %5194 = vst [vmem:[%s340 + $0x88] sm:$0xff] %v5066
        %5195 = vst [vmem:[%s340 + $0x90] sm:$0xff] %v5067
        %5196 = vst [vmem:[%s340 + $0x98] sm:$0xff] %v5068
        %5197 = vst [vmem:[%s340 + $0xa0] sm:$0xff] %v5069
        %5198 = vst [vmem:[%s340 + $0xa8] sm:$0xff] %v5070
        %5199 = vst [vmem:[%s340 + $0xb0] sm:$0xff] %v5071
        %5200 = vst [vmem:[%s340 + $0xb8] sm:$0xff] %v5072
        %5201 = vst [vmem:[%s340 + $0xc0] sm:$0xff] %v5073
        %5202 = vst [vmem:[%s340 + $0xc8] sm:$0xff] %v5074
        %5203 = vst [vmem:[%s340 + $0xd0] sm:$0xff] %v5075
        %5204 = vst [vmem:[%s340 + $0xd8] sm:$0xff] %v5076
        %5205 = vst [vmem:[%s340 + $0xe0] sm:$0xff] %v5077
        %5206 = vst [vmem:[%s340 + $0xe8] sm:$0xff] %v5078
        %5207 = vst [vmem:[%s340 + $0xf0] sm:$0xff] %v5079
        %5208 = vst [vmem:[%s340 + $0xf8] sm:$0xff] %v5080
        %5209 = vst [vmem:[%s340 + $0x100] sm:$0xff] %v5081
        %5210 = vst [vmem:[%s340 + $0x108] sm:$0xff] %v5082
        %5211 = vst [vmem:[%s340 + $0x110] sm:$0xff] %v5083
        %5212 = vst [vmem:[%s340 + $0x118] sm:$0xff] %v5084
        %5213 = vst [vmem:[%s340 + $0x120] sm:$0xff] %v5085
        %5214 = vst [vmem:[%s340 + $0x128] sm:$0xff] %v5086
        %5215 = vst [vmem:[%s340 + $0x130] sm:$0xff] %v5087
        %5216 = vst [vmem:[%s340 + $0x138] sm:$0xff] %v5088
        %5217 = vst [vmem:[%s340 + $0x140] sm:$0xff] %v5089
        %5218 = vst [vmem:[%s340 + $0x148] sm:$0xff] %v5090
        %5219 = vst [vmem:[%s340 + $0x150] sm:$0xff] %v5091
        %5220 = vst [vmem:[%s340 + $0x158] sm:$0xff] %v5092
        %5221 = vst [vmem:[%s340 + $0x160] sm:$0xff] %v5093
        %5222 = vst [vmem:[%s340 + $0x168] sm:$0xff] %v5094
        %5223 = vst [vmem:[%s340 + $0x170] sm:$0xff] %v5095
        %5224 = vst [vmem:[%s340 + $0x178] sm:$0xff] %v5096
        %5225 = vst [vmem:[%s340 + $0x180] sm:$0xff] %v5097
        %5226 = vst [vmem:[%s340 + $0x188] sm:$0xff] %v5098
        %5227 = vst [vmem:[%s340 + $0x190] sm:$0xff] %v5099
        %5228 = vst [vmem:[%s340 + $0x198] sm:$0xff] %v5100
        %5229 = vst [vmem:[%s340 + $0x1a0] sm:$0xff] %v5101
        %5230 = vst [vmem:[%s340 + $0x1a8] sm:$0xff] %v5102
        %5231 = vst [vmem:[%s340 + $0x1b0] sm:$0xff] %v5103
        %5232 = vst [vmem:[%s340 + $0x1b8] sm:$0xff] %v5104
        %5233 = vst [vmem:[%s340 + $0x1c0] sm:$0xff] %v5105
        %5234 = vst [vmem:[%s340 + $0x1c8] sm:$0xff] %v5106
        %5235 = vst [vmem:[%s340 + $0x1d0] sm:$0xff] %v5107
        %5236 = vst [vmem:[%s340 + $0x1d8] sm:$0xff] %v5108
        %5237 = vst [vmem:[%s340 + $0x1e0] sm:$0xff] %v5109
        %5238 = vst [vmem:[%s340 + $0x1e8] sm:$0xff] %v5110
        %5239 = vst [vmem:[%s340 + $0x1f0] sm:$0xff] %v5111
        %5240 = vst [vmem:[%s340 + $0x1f8] sm:$0xff] %v5112
        %5241 = vst [vmem:[%s340 + $0x200] sm:$0xff] %v5113
        %5242 = vst [vmem:[%s340 + $0x208] sm:$0xff] %v5114
        %5243 = vst [vmem:[%s340 + $0x210] sm:$0xff] %v5115
        %5244 = vst [vmem:[%s340 + $0x218] sm:$0xff] %v5116
        %5245 = vst [vmem:[%s340 + $0x220] sm:$0xff] %v5117
        %5246 = vst [vmem:[%s340 + $0x228] sm:$0xff] %v5118
        %5247 = vst [vmem:[%s340 + $0x230] sm:$0xff] %v5119
        %5248 = vst [vmem:[%s340 + $0x238] sm:$0xff] %v5120
        %5249 = vst [vmem:[%s340 + $0x240] sm:$0xff] %v5121
        %5250 = vst [vmem:[%s340 + $0x248] sm:$0xff] %v5122
        %5251 = vst [vmem:[%s340 + $0x250] sm:$0xff] %v5123
        %5252 = vst [vmem:[%s340 + $0x258] sm:$0xff] %v5124
        %5253 = vst [vmem:[%s340 + $0x260] sm:$0xff] %v5125
        %5254 = vst [vmem:[%s340 + $0x268] sm:$0xff] %v5126
        %5255 = vst [vmem:[%s340 + $0x270] sm:$0xff] %v5127
        %5256 = vst [vmem:[%s340 + $0x278] sm:$0xff] %v5128
        %5257 = vst [vmem:[%s340 + $0x280] sm:$0xff] %v5129
        %5258 = vst [vmem:[%s340 + $0x288] sm:$0xff] %v5130
        %5259 = vst [vmem:[%s340 + $0x290] sm:$0xff] %v5131
        %5260 = vst [vmem:[%s340 + $0x298] sm:$0xff] %v5132
        %5261 = vst [vmem:[%s340 + $0x2a0] sm:$0xff] %v5133
        %5262 = vst [vmem:[%s340 + $0x2a8] sm:$0xff] %v5134
        %5263 = vst [vmem:[%s340 + $0x2b0] sm:$0xff] %v5135
        %5264 = vst [vmem:[%s340 + $0x2b8] sm:$0xff] %v5136
        %5265 = vst [vmem:[%s340 + $0x2c0] sm:$0xff] %v5137
        %5266 = vst [vmem:[%s340 + $0x2c8] sm:$0xff] %v5138
        %5267 = vst [vmem:[%s340 + $0x2d0] sm:$0xff] %v5139
        %5268 = vst [vmem:[%s340 + $0x2d8] sm:$0xff] %v5140
        %5269 = vst [vmem:[%s340 + $0x2e0] sm:$0xff] %v5141
        %5270 = vst [vmem:[%s340 + $0x2e8] sm:$0xff] %v5142
        %5271 = vst [vmem:[%s340 + $0x2f0] sm:$0xff] %v5143
        %5272 = vst [vmem:[%s340 + $0x2f8] sm:$0xff] %v5144
        %5273 = vst [vmem:[%s340 + $0x300] sm:$0xff] %v5145
        %5274 = vst [vmem:[%s340 + $0x308] sm:$0xff] %v5146
        %5275 = vst [vmem:[%s340 + $0x310] sm:$0xff] %v5147
        %5276 = vst [vmem:[%s340 + $0x318] sm:$0xff] %v5148
        %5277 = vst [vmem:[%s340 + $0x320] sm:$0xff] %v5149
        %5278 = vst [vmem:[%s340 + $0x328] sm:$0xff] %v5150
        %5279 = vst [vmem:[%s340 + $0x330] sm:$0xff] %v5151
        %5280 = vst [vmem:[%s340 + $0x338] sm:$0xff] %v5152
        %5281 = vst [vmem:[%s340 + $0x340] sm:$0xff] %v5153
        %5282 = vst [vmem:[%s340 + $0x348] sm:$0xff] %v5154
        %5283 = vst [vmem:[%s340 + $0x350] sm:$0xff] %v5155
        %5284 = vst [vmem:[%s340 + $0x358] sm:$0xff] %v5156
        %5285 = vst [vmem:[%s340 + $0x360] sm:$0xff] %v5157
        %5286 = vst [vmem:[%s340 + $0x368] sm:$0xff] %v5158
        %5287 = vst [vmem:[%s340 + $0x370] sm:$0xff] %v5159
        %5288 = vst [vmem:[%s340 + $0x378] sm:$0xff] %v5160
        %5289 = vst [vmem:[%s340 + $0x380] sm:$0xff] %v5161
        %5290 = vst [vmem:[%s340 + $0x388] sm:$0xff] %v5162
        %5291 = vst [vmem:[%s340 + $0x390] sm:$0xff] %v5163
        %5292 = vst [vmem:[%s340 + $0x398] sm:$0xff] %v5164
        %5293 = vst [vmem:[%s340 + $0x3a0] sm:$0xff] %v5165
        %5294 = vst [vmem:[%s340 + $0x3a8] sm:$0xff] %v5166
        %5295 = vst [vmem:[%s340 + $0x3b0] sm:$0xff] %v5167
        %5296 = vst [vmem:[%s340 + $0x3b8] sm:$0xff] %v5168
        %5297 = vst [vmem:[%s340 + $0x3c0] sm:$0xff] %v5169
        %5298 = vst [vmem:[%s340 + $0x3c8] sm:$0xff] %v5170
        %5299 = vst [vmem:[%s340 + $0x3d0] sm:$0xff] %v5171
        %5300 = vst [vmem:[%s340 + $0x3d8] sm:$0xff] %v5172
        %5301 = vst [vmem:[%s340 + $0x3e0] sm:$0xff] %v5173
        %5302 = vst [vmem:[%s340 + $0x3e8] sm:$0xff] %v5174
        %5303 = vst [vmem:[%s340 + $0x3f0] sm:$0xff] %v5175
        %5304 = vst [vmem:[%s340 + $0x3f8] sm:$0xff] %v5176
        %s5305 = sand.u32 %s186, 1
        %s5306 = scalar_lea.sflag [#allocation5], %s5305
        %s5307 = sand.u32 %s186, 1
        %s5308 = smul.addr %s5307, 1024
        %s5309 = scalar_lea.vmem [#allocation11], %s5308
        // Predicated region
        $region65: #{tpu_custom_call.1} parent=47 // pred_check
          %p5310 = pneg %p196
        $region66: #{tpu_custom_call.1} parent=47 // pred_check_branch
          %5312 = sbr.rel (%p5310) target = $region68
        $region67: #{tpu_custom_call.1} parent=47 // pred_region
          %s5314 = ssub.s32 16384, 16384
          %5315 = vsyncadd %s5306, %s5314
          %s5316 = smul.addr %s26, 128
          %s5317 = smul.addr %s5316, 128
          %s5318 = scalar_lea.hbm %s7, %s5317
          %s5319 = sshll.u32 %s5309, 4
          %s5320 = int_to_ptr.vmem [resolvable:$true] %s5319
          %5325 = dma.vmem_to_hbm [thread:$0]  %s5320, 16384, %s5318, %s5306, 512, 512, 32
        $region68: #{tpu_custom_call.1} parent=47 // pred_fallthru
          _
      $region48: #{tpu_custom_call.1} parent=5 // pred_fallthru
        _
      %p5326 = scmp.le.s32.totalorder 2, %s21
      // Predicated region
      $region69: #{tpu_custom_call.1} parent=5 // pred_check
        %p5327 = pneg %p5326
      $region70: #{tpu_custom_call.1} parent=5 // pred_check_branch
        %5329 = sbr.rel (%p5327) target = $region72
      $region71: #{tpu_custom_call.1} parent=5 // pred_region
        %s5330 = ssub.s32 %s21, 2
        // Predicated region
        $region73: #{tpu_custom_call.1} parent=71 // pred_check
          %p5331 = pneg %p202
        $region74: #{tpu_custom_call.1} parent=71 // pred_check_branch
          %5333 = sbr.rel (%p5331) target = $region76
        $region75: #{tpu_custom_call.1} parent=71 // pred_region
          %s5334 = sand.u32 %s187, 1
          %s5335 = scalar_lea.sflag [#allocation5], %s5334
          %s5336 = sand.u32 %s187, 1
          %s5337 = smul.addr %s5336, 1024
          %s5338 = scalar_lea.vmem [#allocation11], %s5337
          %5339 = dma.done %s5335, 16384
        $region76: #{tpu_custom_call.1} parent=71 // pred_fallthru
          _
      $region72: #{tpu_custom_call.1} parent=5 // pred_fallthru
        _
    $region6: #{tpu_custom_call.1} parent=1 // loop_footer
      %s25 = sadd.s32 1, %s21
    $region7: #{tpu_custom_call.1} parent=1 // loop_footer_branch
      %20 = sbr.rel target = $region3
    $region8: #{tpu_custom_call.1} parent=1 // loop_exit
      _
    %5340 = vsyncpa [#allocation4], 1
    %s5341 = scalar_lea.sflag [#allocation4], 1
    %5342 = vsyncpa %s5341, 1
    %5343 = vsyncpa [#allocation7], 1
    %5344 = vsyncpa [#allocation10], 1
    %5345 = vsyncpa [#allocation5], 1
    %s5346 = scalar_lea.sflag [#allocation5], 1
    %5347 = vsyncpa %s5346, 1

</llo_original>
